<compile_context>
chip_gen: v7x
topology: tpu7x:2x2x1
jax: 0.10.0
libtpu: 0.0.40
codegen_flags: <defaults>
</compile_context>

<pallas_src>
import functools

import jax
import jax.numpy as jnp
from jax import lax
from jax.experimental import pallas as pl
from jax.experimental.pallas import tpu as pltpu

K = 7            # conv kernel size
PAD = K // 2     # conv padding (3)
POOL = 7         # maxpool kernel == stride
COUT = 32        # channels of every conv layer
CHUNK = 112      # conv rows per inner pass: multiple of POOL (7) and 8 (16*7=14*8)
BN_EPS = 1e-5


# ----------------------------------------------------------------------------
# Fused kernel: whole DemoModel forward for ROWS_PER_STEP batch rows
# ----------------------------------------------------------------------------
def _fused_forward_kernel(x_ref, w1_ref, b1_ref, w2_ref, b2_ref, w3_ref,
                          b3_ref, wl_ref, bl_ref, o_ref, y_ref,
                          *, seq_len, rows_per_step):
    """x_ref:  (BB, Lpad, Cin) bf16  conv-padded input rows (3 left / >=3 right zeros)
       wN_ref: (K, CinN, 32)   bf16  per-tap conv weight with BN scale folded in
       bN_ref: (1, 32)         f32   folded conv-bias + BN shift
       wl_ref: (32, Dpad)      f32   linear weight (transposed, lane-padded)
       bl_ref: (1, Dpad)       f32   linear bias (lane-padded)
       o_ref:  (BB, 1, Dpad)   f32   output rows
       y_ref:  (CHUNK, 32)     f32   VMEM scratch: pre-pool chunk activation
    """

    def conv_bn_relu_pool(get_tap, length, w_ref, b_ref):
        """Conv1d(k=7,s=1,p=3) + folded BN + ReLU + MaxPool1d(7,7), floor mode.

        get_tap(lo, k, n) -> (n, Cin) bf16 rows of the zero-padded layer input
        covering conv tap k for output rows [lo, lo+n).
        """
        shift = b_ref[...]                      # (1, 32) f32
        n_total = (length // POOL) * POOL       # conv rows the pool consumes
        pooled = []
        for lo in range(0, n_total, CHUNK):     # static, fully unrolled
            n = min(CHUNK, n_total - lo)        # multiple of POOL
            n_out = n // POOL
            # shift-add conv: 7 small MXU dots, no lane concat / gather
            acc = jnp.dot(get_tap(lo, 0, n), w_ref[0],
                          preferred_element_type=jnp.float32)
            for k in range(1, K):
                acc = acc + jnp.dot(get_tap(lo, k, n), w_ref[k],
                                    preferred_element_type=jnp.float32)
            act = jnp.maximum(acc + shift, 0.0)                 # (n, 32) f32
            if n == POOL:
                # single pool window: reduce directly on the value, no scratch
                pooled.append(jnp.max(act, axis=0, keepdims=True))
            else:
                # one dense store, then elementwise max of 7 strided views
                y_ref[0:n, :] = act
                m = y_ref[pl.ds(0, n_out, stride=POOL), :]
                for k in range(1, POOL):
                    m = jnp.maximum(m, y_ref[pl.ds(k, n_out, stride=POOL), :])
                pooled.append(m)
        return pooled[0] if len(pooled) == 1 else jnp.concatenate(pooled, axis=0)

    def taps_from_x(row):
        # wrapper already zero-padded x by PAD left / >= PAD right (bf16)
        def get(lo, k, n):
            return x_ref[row, lo + k:lo + k + n, :]
        return get

    def taps_from_value(a):
        # a: (n_rows, 32) f32 previous pooled output; pad with zeros in f32
        # (proven-lowering concat) and cast taps to bf16 at the MXU boundary.
        zpad = jnp.zeros((PAD, a.shape[1]), a.dtype)
        a_pad = jnp.concatenate([zpad, a, zpad], axis=0)        # (n_rows+6, 32)

        def get(lo, k, n):
            return a_pad[lo + k:lo + k + n, :].astype(jnp.bfloat16)
        return get

    for r in range(rows_per_step):              # static; weights stay resident
        a1 = conv_bn_relu_pool(taps_from_x(r), seq_len, w1_ref, b1_ref)
        a2 = conv_bn_relu_pool(taps_from_value(a1), a1.shape[0], w2_ref, b2_ref)
        a3 = conv_bn_relu_pool(taps_from_value(a2), a2.shape[0], w3_ref, b3_ref)
        # AdaptiveAvgPool1d(1) + squeeze + Linear, fused epilogue.
        feat = jnp.mean(a3, axis=0, keepdims=True)              # (1, 32) f32
        o_ref[r] = jnp.dot(feat, wl_ref[...],
                           preferred_element_type=jnp.float32) + bl_ref[...]


# ----------------------------------------------------------------------------
# Wrapper
# ----------------------------------------------------------------------------
def _round_up(x, m):
    return (x + m - 1) // m * m


def _fold_layer(p):
    """Fold conv bias + eval-mode BN into the weight (scale) and a shift."""
    scale = p["gamma"] / jnp.sqrt(p["var"] + BN_EPS)                     # (32,)
    shift = (p["beta"] + (p["b"] - p["mean"]) * scale).reshape(1, -1)    # (1,32)
    # (Cout, Cin, K) -> (K, Cin, Cout); fold BN scale, cast bf16 for the MXU.
    w = jnp.transpose(p["w"], (2, 1, 0)) * scale[None, None, :]
    return w.astype(jnp.bfloat16), shift.astype(jnp.float32)


def _replicated(arr):
    nd = arr.ndim
    return pl.BlockSpec(arr.shape, lambda b, _nd=nd: (0,) * _nd)


def _pick_rows_per_step(batch):
    """Amortize per-grid-step overhead while keeping grid >= 2 for v7x's 2 TCs."""
    if batch >= 4:
        for bb in (8, 4, 2):
            if batch % bb == 0 and batch // bb >= 2:
                return bb
    return 1


def forward_pallas(x_ncl, params, rows_per_step=None):
    """x_ncl: (B, Cin, L) PyTorch NCL layout -> (B, output_dim)."""
    B, c_in, L = x_ncl.shape
    if rows_per_step is None:
        rows_per_step = _pick_rows_per_step(B)
    assert B % rows_per_step == 0
    grid = (B // rows_per_step,)

    # NCL -> NLC, bf16 (half the DMA bytes; MXU-facing only), zero-pad the
    # length for the conv so the kernel never rebuilds padding in VMEM.
    l_pad = _round_up(L + 2 * PAD, 8)
    x = jnp.transpose(x_ncl, (0, 2, 1)).astype(jnp.bfloat16)
    x = jnp.pad(x, ((0, 0), (PAD, l_pad - L - PAD), (0, 0)))

    (w1, b1), (w2, b2), (w3, b3) = [_fold_layer(p) for p in params["layers"]]

    # Lane-dense linear: pad output features to a multiple of 128 lanes.
    d_out = params["lin_w"].shape[0]
    d_pad = _round_up(max(d_out, 128), 128)
    wl = jnp.zeros((COUT, d_pad), jnp.float32).at[:, :d_out].set(
        params["lin_w"].T.astype(jnp.float32))
    bl = jnp.zeros((1, d_pad), jnp.float32).at[0, :d_out].set(
        params["lin_b"].astype(jnp.float32))

    kernel = functools.partial(_fused_forward_kernel, seq_len=L,
                               rows_per_step=rows_per_step)
    out = pl.pallas_call(
        kernel,
        out_shape=jax.ShapeDtypeStruct((B, 1, d_pad), jnp.float32),
        grid_spec=pltpu.PrefetchScalarGridSpec(
            num_scalar_prefetch=0,
            grid=grid,
            in_specs=[
                pl.BlockSpec((rows_per_step, l_pad, c_in), lambda b: (b, 0, 0)),
                _replicated(w1), _replicated(b1),
                _replicated(w2), _replicated(b2),
                _replicated(w3), _replicated(b3),
                _replicated(wl), _replicated(bl),
            ],
            out_specs=pl.BlockSpec((rows_per_step, 1, d_pad),
                                   lambda b: (b, 0, 0)),
            scratch_shapes=[pltpu.VMEM((CHUNK, COUT), jnp.float32)],
        ),
        compiler_params=pltpu.CompilerParams(
            dimension_semantics=("parallel",)),
    )(x, w1, b1, w2, b2, w3, b3, wl, bl)
    return out[:, 0, :d_out]


# ----------------------------------------------------------------------------
# Parameters (deterministic, synthetic) and pure-XLA reference
# ----------------------------------------------------------------------------
def init_params(key, input_dim, output_dim):
    layers = []
    cin = input_dim
    for _ in range(3):
        key, k1, k2, k3, k4, k5, k6 = jax.random.split(key, 7)
        layers.append(dict(
            w=jax.random.normal(k1, (COUT, cin, K), jnp.float32)
              * (1.0 / jnp.sqrt(cin * K)),                     # Conv1d.weight (O, I, K)
            b=0.1 * jax.random.normal(k2, (COUT,), jnp.float32),
            gamma=1.0 + 0.1 * jax.random.normal(k3, (COUT,), jnp.float32),
            beta=0.1 * jax.random.normal(k4, (COUT,), jnp.float32),
            mean=0.1 * jax.random.normal(k5, (COUT,), jnp.float32),
            var=jnp.abs(jax.random.normal(k6, (COUT,), jnp.float32)) + 0.5,
        ))
        cin = COUT
    key, k1, k2 = jax.random.split(key, 3)
    lin_w = jax.random.normal(k1, (output_dim, COUT), jnp.float32) / jnp.sqrt(32.0)
    lin_b = 0.1 * jax.random.normal(k2, (output_dim,), jnp.float32)
    return dict(layers=layers, lin_w=lin_w, lin_b=lin_b)


def forward_reference(x_ncl, params):
    """Pure-XLA reference mirroring the PyTorch (eval-mode) forward, NCL layout."""
    x = x_ncl
    for p in params["layers"]:
        x = lax.conv_general_dilated(
            x, p["w"], window_strides=(1,), padding=[(PAD, PAD)],
            dimension_numbers=("NCH", "OIH", "NCH"),
            precision=lax.Precision.HIGHEST)
        x = x + p["b"][None, :, None]
        x = (x - p["mean"][None, :, None]) / jnp.sqrt(p["var"][None, :, None] + BN_EPS)
        x = x * p["gamma"][None, :, None] + p["beta"][None, :, None]
        x = jnp.maximum(x, 0.0)
        x = lax.reduce_window(x, -jnp.inf, lax.max,
                              window_dimensions=(1, 1, POOL),
                              window_strides=(1, 1, POOL), padding="VALID")
    x = jnp.mean(x, axis=-1)                       # AdaptiveAvgPool1d(1) + squeeze
    return jnp.dot(x, params["lin_w"].T,
                   precision=lax.Precision.HIGHEST) + params["lin_b"]


if __name__ == "__main__":
    B, input_dim, output_dim, L = 2, 4, 10, 343    # 343 = 7**3 survives 3 pools
    kx, kp = jax.random.split(jax.random.PRNGKey(0))
    x = jax.random.normal(kx, (B, input_dim, L), jnp.float32)   # PyTorch NCL input
    params = init_params(kp, input_dim, output_dim)

    out = jax.block_until_ready(forward_pallas(x, params))
    ref = jax.block_until_ready(forward_reference(x, params))

    assert out.shape == (B, output_dim), out.shape
    # bf16 MXU inputs (f32 accumulation, BN scale folded into bf16 weights)
    # vs. f32 HIGHEST reference -> 2e-2 tol.
    assert jnp.allclose(out, ref, rtol=2e-2, atol=2e-2), (out, ref)
    print("KERNEL_OK")
</pallas_src>

<mosaic_0001>
module attributes {stable_mosaic.version = 11 : i64} {
  func.func @_fused_forward_kernel(%arg0: i32, %arg1: memref<1x352x4xbf16, #tpu.memory_space<vmem>>, %arg2: memref<7x4x32xbf16, #tpu.memory_space<vmem>>, %arg3: memref<1x32xf32, #tpu.memory_space<vmem>>, %arg4: memref<7x32x32xbf16, #tpu.memory_space<vmem>>, %arg5: memref<1x32xf32, #tpu.memory_space<vmem>>, %arg6: memref<7x32x32xbf16, #tpu.memory_space<vmem>>, %arg7: memref<1x32xf32, #tpu.memory_space<vmem>>, %arg8: memref<32x128xf32, #tpu.memory_space<vmem>>, %arg9: memref<1x128xf32, #tpu.memory_space<vmem>>, %arg10: memref<1x1x128xf32, #tpu.memory_space<vmem>>, %arg11: memref<112x32xf32, #tpu.memory_space<vmem>>) attributes {dimension_semantics = [#tpu.dimension_semantics<parallel>], iteration_bounds = array<i64: 2>, scalar_prefetch = 0 : i64, scratch_operands = 1 : i64, tpu.core_type = #tpu.core_type<tc>, window_params = [{transform_indices = @transform_0, window_bounds = array<i64: 1, 352, 4>}, {pipeline_mode = #tpu.pipeline_mode<synchronous>, transform_indices = @transform_1, window_bounds = array<i64: 7, 4, 32>}, {pipeline_mode = #tpu.pipeline_mode<synchronous>, transform_indices = @transform_2, window_bounds = array<i64: 1, 32>}, {pipeline_mode = #tpu.pipeline_mode<synchronous>, transform_indices = @transform_3, window_bounds = array<i64: 7, 32, 32>}, {pipeline_mode = #tpu.pipeline_mode<synchronous>, transform_indices = @transform_4, window_bounds = array<i64: 1, 32>}, {pipeline_mode = #tpu.pipeline_mode<synchronous>, transform_indices = @transform_5, window_bounds = array<i64: 7, 32, 32>}, {pipeline_mode = #tpu.pipeline_mode<synchronous>, transform_indices = @transform_6, window_bounds = array<i64: 1, 32>}, {pipeline_mode = #tpu.pipeline_mode<synchronous>, transform_indices = @transform_7, window_bounds = array<i64: 32, 128>}, {pipeline_mode = #tpu.pipeline_mode<synchronous>, transform_indices = @transform_8, window_bounds = array<i64: 1, 128>}, {transform_indices = @transform_9, window_bounds = array<i64: 1, 1, 128>}]} {
    %c0 = arith.constant 0 : index
    %c0_0 = arith.constant 0 : index
    %0 = vector.load %arg3[%c0, %c0_0] : memref<1x32xf32, #tpu.memory_space<vmem>>, vector<1x32xf32>
    %c0_1 = arith.constant 0 : index
    %c0_2 = arith.constant 0 : index
    %c0_3 = arith.constant 0 : index
    %1 = vector.load %arg1[%c0_1, %c0_2, %c0_3] : memref<1x352x4xbf16, #tpu.memory_space<vmem>>, vector<1x112x4xbf16>
    %2 = vector.shape_cast %1 : vector<1x112x4xbf16> to vector<112x4xbf16>
    %c0_4 = arith.constant 0 : index
    %c0_5 = arith.constant 0 : index
    %c0_6 = arith.constant 0 : index
    %3 = vector.load %arg2[%c0_4, %c0_5, %c0_6] : memref<7x4x32xbf16, #tpu.memory_space<vmem>>, vector<1x4x32xbf16>
    %4 = vector.shape_cast %3 : vector<1x4x32xbf16> to vector<4x32xbf16>
    %cst = arith.constant dense<0.000000e+00> : vector<112x32xf32>
    %5 = tpu.matmul %2, %4, %cst {dimension_numbers = #tpu.dot_dimension_numbers<[1], [0], [0], [1], [0, 0, 1, 1], [], []>} : vector<112x4xbf16>, vector<4x32xbf16>, vector<112x32xf32> -> vector<112x32xf32>
    %c0_7 = arith.constant 0 : index
    %c1 = arith.constant 1 : index
    %c0_8 = arith.constant 0 : index
    %6 = vector.load %arg1[%c0_7, %c1, %c0_8] : memref<1x352x4xbf16, #tpu.memory_space<vmem>>, vector<1x112x4xbf16>
    %7 = vector.shape_cast %6 : vector<1x112x4xbf16> to vector<112x4xbf16>
    %c1_9 = arith.constant 1 : index
    %c0_10 = arith.constant 0 : index
    %c0_11 = arith.constant 0 : index
    %8 = vector.load %arg2[%c1_9, %c0_10, %c0_11] : memref<7x4x32xbf16, #tpu.memory_space<vmem>>, vector<1x4x32xbf16>
    %9 = vector.shape_cast %8 : vector<1x4x32xbf16> to vector<4x32xbf16>
    %cst_12 = arith.constant dense<0.000000e+00> : vector<112x32xf32>
    %10 = tpu.matmul %7, %9, %cst_12 {dimension_numbers = #tpu.dot_dimension_numbers<[1], [0], [0], [1], [0, 0, 1, 1], [], []>} : vector<112x4xbf16>, vector<4x32xbf16>, vector<112x32xf32> -> vector<112x32xf32>
    %11 = arith.addf %5, %10 : vector<112x32xf32>
    %c0_13 = arith.constant 0 : index
    %c2 = arith.constant 2 : index
    %c0_14 = arith.constant 0 : index
    %12 = vector.load %arg1[%c0_13, %c2, %c0_14] : memref<1x352x4xbf16, #tpu.memory_space<vmem>>, vector<1x112x4xbf16>
    %13 = vector.shape_cast %12 : vector<1x112x4xbf16> to vector<112x4xbf16>
    %c2_15 = arith.constant 2 : index
    %c0_16 = arith.constant 0 : index
    %c0_17 = arith.constant 0 : index
    %14 = vector.load %arg2[%c2_15, %c0_16, %c0_17] : memref<7x4x32xbf16, #tpu.memory_space<vmem>>, vector<1x4x32xbf16>
    %15 = vector.shape_cast %14 : vector<1x4x32xbf16> to vector<4x32xbf16>
    %cst_18 = arith.constant dense<0.000000e+00> : vector<112x32xf32>
    %16 = tpu.matmul %13, %15, %cst_18 {dimension_numbers = #tpu.dot_dimension_numbers<[1], [0], [0], [1], [0, 0, 1, 1], [], []>} : vector<112x4xbf16>, vector<4x32xbf16>, vector<112x32xf32> -> vector<112x32xf32>
    %17 = arith.addf %11, %16 : vector<112x32xf32>
    %c0_19 = arith.constant 0 : index
    %c3 = arith.constant 3 : index
    %c0_20 = arith.constant 0 : index
    %18 = vector.load %arg1[%c0_19, %c3, %c0_20] : memref<1x352x4xbf16, #tpu.memory_space<vmem>>, vector<1x112x4xbf16>
    %19 = vector.shape_cast %18 : vector<1x112x4xbf16> to vector<112x4xbf16>
    %c3_21 = arith.constant 3 : index
    %c0_22 = arith.constant 0 : index
    %c0_23 = arith.constant 0 : index
    %20 = vector.load %arg2[%c3_21, %c0_22, %c0_23] : memref<7x4x32xbf16, #tpu.memory_space<vmem>>, vector<1x4x32xbf16>
    %21 = vector.shape_cast %20 : vector<1x4x32xbf16> to vector<4x32xbf16>
    %cst_24 = arith.constant dense<0.000000e+00> : vector<112x32xf32>
    %22 = tpu.matmul %19, %21, %cst_24 {dimension_numbers = #tpu.dot_dimension_numbers<[1], [0], [0], [1], [0, 0, 1, 1], [], []>} : vector<112x4xbf16>, vector<4x32xbf16>, vector<112x32xf32> -> vector<112x32xf32>
    %23 = arith.addf %17, %22 : vector<112x32xf32>
    %c0_25 = arith.constant 0 : index
    %c4 = arith.constant 4 : index
    %c0_26 = arith.constant 0 : index
    %24 = vector.load %arg1[%c0_25, %c4, %c0_26] : memref<1x352x4xbf16, #tpu.memory_space<vmem>>, vector<1x112x4xbf16>
    %25 = vector.shape_cast %24 : vector<1x112x4xbf16> to vector<112x4xbf16>
    %c4_27 = arith.constant 4 : index
    %c0_28 = arith.constant 0 : index
    %c0_29 = arith.constant 0 : index
    %26 = vector.load %arg2[%c4_27, %c0_28, %c0_29] : memref<7x4x32xbf16, #tpu.memory_space<vmem>>, vector<1x4x32xbf16>
    %27 = vector.shape_cast %26 : vector<1x4x32xbf16> to vector<4x32xbf16>
    %cst_30 = arith.constant dense<0.000000e+00> : vector<112x32xf32>
    %28 = tpu.matmul %25, %27, %cst_30 {dimension_numbers = #tpu.dot_dimension_numbers<[1], [0], [0], [1], [0, 0, 1, 1], [], []>} : vector<112x4xbf16>, vector<4x32xbf16>, vector<112x32xf32> -> vector<112x32xf32>
    %29 = arith.addf %23, %28 : vector<112x32xf32>
    %c0_31 = arith.constant 0 : index
    %c5 = arith.constant 5 : index
    %c0_32 = arith.constant 0 : index
    %30 = vector.load %arg1[%c0_31, %c5, %c0_32] : memref<1x352x4xbf16, #tpu.memory_space<vmem>>, vector<1x112x4xbf16>
    %31 = vector.shape_cast %30 : vector<1x112x4xbf16> to vector<112x4xbf16>
    %c5_33 = arith.constant 5 : index
    %c0_34 = arith.constant 0 : index
    %c0_35 = arith.constant 0 : index
    %32 = vector.load %arg2[%c5_33, %c0_34, %c0_35] : memref<7x4x32xbf16, #tpu.memory_space<vmem>>, vector<1x4x32xbf16>
    %33 = vector.shape_cast %32 : vector<1x4x32xbf16> to vector<4x32xbf16>
    %cst_36 = arith.constant dense<0.000000e+00> : vector<112x32xf32>
    %34 = tpu.matmul %31, %33, %cst_36 {dimension_numbers = #tpu.dot_dimension_numbers<[1], [0], [0], [1], [0, 0, 1, 1], [], []>} : vector<112x4xbf16>, vector<4x32xbf16>, vector<112x32xf32> -> vector<112x32xf32>
    %35 = arith.addf %29, %34 : vector<112x32xf32>
    %c0_37 = arith.constant 0 : index
    %c6 = arith.constant 6 : index
    %c0_38 = arith.constant 0 : index
    %36 = vector.load %arg1[%c0_37, %c6, %c0_38] : memref<1x352x4xbf16, #tpu.memory_space<vmem>>, vector<1x112x4xbf16>
    %37 = vector.shape_cast %36 : vector<1x112x4xbf16> to vector<112x4xbf16>
    %c6_39 = arith.constant 6 : index
    %c0_40 = arith.constant 0 : index
    %c0_41 = arith.constant 0 : index
    %38 = vector.load %arg2[%c6_39, %c0_40, %c0_41] : memref<7x4x32xbf16, #tpu.memory_space<vmem>>, vector<1x4x32xbf16>
    %39 = vector.shape_cast %38 : vector<1x4x32xbf16> to vector<4x32xbf16>
    %cst_42 = arith.constant dense<0.000000e+00> : vector<112x32xf32>
    %40 = tpu.matmul %37, %39, %cst_42 {dimension_numbers = #tpu.dot_dimension_numbers<[1], [0], [0], [1], [0, 0, 1, 1], [], []>} : vector<112x4xbf16>, vector<4x32xbf16>, vector<112x32xf32> -> vector<112x32xf32>
    %41 = arith.addf %35, %40 : vector<112x32xf32>
    %42 = vector.broadcast %0 : vector<1x32xf32> to vector<112x32xf32>
    %43 = arith.addf %41, %42 : vector<112x32xf32>
    %cst_43 = arith.constant 0.000000e+00 : f32
    %44 = vector.broadcast %cst_43 : f32 to vector<112x32xf32>
    %45 = arith.maximumf %43, %44 : vector<112x32xf32>
    %c0_44 = arith.constant 0 : index
    %c0_45 = arith.constant 0 : index
    %46 = vector.load %arg11[%c0_44, %c0_45] : memref<112x32xf32, #tpu.memory_space<vmem>>, vector<112x32xf32>
    tpu.vector_store %arg11[%c0_44, %c0_45], %45 {strides = array<i32>} : memref<112x32xf32, #tpu.memory_space<vmem>>, vector<112x32xf32>,
    %c0_46 = arith.constant 0 : index
    %c0_47 = arith.constant 0 : index
    %47 = tpu.strided_load %arg11[%c0_46, %c0_47] {strides = array<i32: 7, 1>} : memref<112x32xf32, #tpu.memory_space<vmem>>, vector<16x32xf32>
    %c1_48 = arith.constant 1 : index
    %c0_49 = arith.constant 0 : index
    %48 = tpu.strided_load %arg11[%c1_48, %c0_49] {strides = array<i32: 7, 1>} : memref<112x32xf32, #tpu.memory_space<vmem>>, vector<16x32xf32>
    %49 = arith.maximumf %47, %48 : vector<16x32xf32>
    %c2_50 = arith.constant 2 : index
    %c0_51 = arith.constant 0 : index
    %50 = tpu.strided_load %arg11[%c2_50, %c0_51] {strides = array<i32: 7, 1>} : memref<112x32xf32, #tpu.memory_space<vmem>>, vector<16x32xf32>
    %51 = arith.maximumf %49, %50 : vector<16x32xf32>
    %c3_52 = arith.constant 3 : index
    %c0_53 = arith.constant 0 : index
    %52 = tpu.strided_load %arg11[%c3_52, %c0_53] {strides = array<i32: 7, 1>} : memref<112x32xf32, #tpu.memory_space<vmem>>, vector<16x32xf32>
    %53 = arith.maximumf %51, %52 : vector<16x32xf32>
    %c4_54 = arith.constant 4 : index
    %c0_55 = arith.constant 0 : index
    %54 = tpu.strided_load %arg11[%c4_54, %c0_55] {strides = array<i32: 7, 1>} : memref<112x32xf32, #tpu.memory_space<vmem>>, vector<16x32xf32>
    %55 = arith.maximumf %53, %54 : vector<16x32xf32>
    %c5_56 = arith.constant 5 : index
    %c0_57 = arith.constant 0 : index
    %56 = tpu.strided_load %arg11[%c5_56, %c0_57] {strides = array<i32: 7, 1>} : memref<112x32xf32, #tpu.memory_space<vmem>>, vector<16x32xf32>
    %57 = arith.maximumf %55, %56 : vector<16x32xf32>
    %c6_58 = arith.constant 6 : index
    %c0_59 = arith.constant 0 : index
    %58 = tpu.strided_load %arg11[%c6_58, %c0_59] {strides = array<i32: 7, 1>} : memref<112x32xf32, #tpu.memory_space<vmem>>, vector<16x32xf32>
    %59 = arith.maximumf %57, %58 : vector<16x32xf32>
    %c0_60 = arith.constant 0 : index
    %c112 = arith.constant 112 : index
    %c0_61 = arith.constant 0 : index
    %60 = vector.load %arg1[%c0_60, %c112, %c0_61] : memref<1x352x4xbf16, #tpu.memory_space<vmem>>, vector<1x112x4xbf16>
    %61 = vector.shape_cast %60 : vector<1x112x4xbf16> to vector<112x4xbf16>
    %c0_62 = arith.constant 0 : index
    %c0_63 = arith.constant 0 : index
    %c0_64 = arith.constant 0 : index
    %62 = vector.load %arg2[%c0_62, %c0_63, %c0_64] : memref<7x4x32xbf16, #tpu.memory_space<vmem>>, vector<1x4x32xbf16>
    %63 = vector.shape_cast %62 : vector<1x4x32xbf16> to vector<4x32xbf16>
    %cst_65 = arith.constant dense<0.000000e+00> : vector<112x32xf32>
    %64 = tpu.matmul %61, %63, %cst_65 {dimension_numbers = #tpu.dot_dimension_numbers<[1], [0], [0], [1], [0, 0, 1, 1], [], []>} : vector<112x4xbf16>, vector<4x32xbf16>, vector<112x32xf32> -> vector<112x32xf32>
    %c0_66 = arith.constant 0 : index
    %c113 = arith.constant 113 : index
    %c0_67 = arith.constant 0 : index
    %65 = vector.load %arg1[%c0_66, %c113, %c0_67] : memref<1x352x4xbf16, #tpu.memory_space<vmem>>, vector<1x112x4xbf16>
    %66 = vector.shape_cast %65 : vector<1x112x4xbf16> to vector<112x4xbf16>
    %c1_68 = arith.constant 1 : index
    %c0_69 = arith.constant 0 : index
    %c0_70 = arith.constant 0 : index
    %67 = vector.load %arg2[%c1_68, %c0_69, %c0_70] : memref<7x4x32xbf16, #tpu.memory_space<vmem>>, vector<1x4x32xbf16>
    %68 = vector.shape_cast %67 : vector<1x4x32xbf16> to vector<4x32xbf16>
    %cst_71 = arith.constant dense<0.000000e+00> : vector<112x32xf32>
    %69 = tpu.matmul %66, %68, %cst_71 {dimension_numbers = #tpu.dot_dimension_numbers<[1], [0], [0], [1], [0, 0, 1, 1], [], []>} : vector<112x4xbf16>, vector<4x32xbf16>, vector<112x32xf32> -> vector<112x32xf32>
    %70 = arith.addf %64, %69 : vector<112x32xf32>
    %c0_72 = arith.constant 0 : index
    %c114 = arith.constant 114 : index
    %c0_73 = arith.constant 0 : index
    %71 = vector.load %arg1[%c0_72, %c114, %c0_73] : memref<1x352x4xbf16, #tpu.memory_space<vmem>>, vector<1x112x4xbf16>
    %72 = vector.shape_cast %71 : vector<1x112x4xbf16> to vector<112x4xbf16>
    %c2_74 = arith.constant 2 : index
    %c0_75 = arith.constant 0 : index
    %c0_76 = arith.constant 0 : index
    %73 = vector.load %arg2[%c2_74, %c0_75, %c0_76] : memref<7x4x32xbf16, #tpu.memory_space<vmem>>, vector<1x4x32xbf16>
    %74 = vector.shape_cast %73 : vector<1x4x32xbf16> to vector<4x32xbf16>
    %cst_77 = arith.constant dense<0.000000e+00> : vector<112x32xf32>
    %75 = tpu.matmul %72, %74, %cst_77 {dimension_numbers = #tpu.dot_dimension_numbers<[1], [0], [0], [1], [0, 0, 1, 1], [], []>} : vector<112x4xbf16>, vector<4x32xbf16>, vector<112x32xf32> -> vector<112x32xf32>
    %76 = arith.addf %70, %75 : vector<112x32xf32>
    %c0_78 = arith.constant 0 : index
    %c115 = arith.constant 115 : index
    %c0_79 = arith.constant 0 : index
    %77 = vector.load %arg1[%c0_78, %c115, %c0_79] : memref<1x352x4xbf16, #tpu.memory_space<vmem>>, vector<1x112x4xbf16>
    %78 = vector.shape_cast %77 : vector<1x112x4xbf16> to vector<112x4xbf16>
    %c3_80 = arith.constant 3 : index
    %c0_81 = arith.constant 0 : index
    %c0_82 = arith.constant 0 : index
    %79 = vector.load %arg2[%c3_80, %c0_81, %c0_82] : memref<7x4x32xbf16, #tpu.memory_space<vmem>>, vector<1x4x32xbf16>
    %80 = vector.shape_cast %79 : vector<1x4x32xbf16> to vector<4x32xbf16>
    %cst_83 = arith.constant dense<0.000000e+00> : vector<112x32xf32>
    %81 = tpu.matmul %78, %80, %cst_83 {dimension_numbers = #tpu.dot_dimension_numbers<[1], [0], [0], [1], [0, 0, 1, 1], [], []>} : vector<112x4xbf16>, vector<4x32xbf16>, vector<112x32xf32> -> vector<112x32xf32>
    %82 = arith.addf %76, %81 : vector<112x32xf32>
    %c0_84 = arith.constant 0 : index
    %c116 = arith.constant 116 : index
    %c0_85 = arith.constant 0 : index
    %83 = vector.load %arg1[%c0_84, %c116, %c0_85] : memref<1x352x4xbf16, #tpu.memory_space<vmem>>, vector<1x112x4xbf16>
    %84 = vector.shape_cast %83 : vector<1x112x4xbf16> to vector<112x4xbf16>
    %c4_86 = arith.constant 4 : index
    %c0_87 = arith.constant 0 : index
    %c0_88 = arith.constant 0 : index
    %85 = vector.load %arg2[%c4_86, %c0_87, %c0_88] : memref<7x4x32xbf16, #tpu.memory_space<vmem>>, vector<1x4x32xbf16>
    %86 = vector.shape_cast %85 : vector<1x4x32xbf16> to vector<4x32xbf16>
    %cst_89 = arith.constant dense<0.000000e+00> : vector<112x32xf32>
    %87 = tpu.matmul %84, %86, %cst_89 {dimension_numbers = #tpu.dot_dimension_numbers<[1], [0], [0], [1], [0, 0, 1, 1], [], []>} : vector<112x4xbf16>, vector<4x32xbf16>, vector<112x32xf32> -> vector<112x32xf32>
    %88 = arith.addf %82, %87 : vector<112x32xf32>
    %c0_90 = arith.constant 0 : index
    %c117 = arith.constant 117 : index
    %c0_91 = arith.constant 0 : index
    %89 = vector.load %arg1[%c0_90, %c117, %c0_91] : memref<1x352x4xbf16, #tpu.memory_space<vmem>>, vector<1x112x4xbf16>
    %90 = vector.shape_cast %89 : vector<1x112x4xbf16> to vector<112x4xbf16>
    %c5_92 = arith.constant 5 : index
    %c0_93 = arith.constant 0 : index
    %c0_94 = arith.constant 0 : index
    %91 = vector.load %arg2[%c5_92, %c0_93, %c0_94] : memref<7x4x32xbf16, #tpu.memory_space<vmem>>, vector<1x4x32xbf16>
    %92 = vector.shape_cast %91 : vector<1x4x32xbf16> to vector<4x32xbf16>
    %cst_95 = arith.constant dense<0.000000e+00> : vector<112x32xf32>
    %93 = tpu.matmul %90, %92, %cst_95 {dimension_numbers = #tpu.dot_dimension_numbers<[1], [0], [0], [1], [0, 0, 1, 1], [], []>} : vector<112x4xbf16>, vector<4x32xbf16>, vector<112x32xf32> -> vector<112x32xf32>
    %94 = arith.addf %88, %93 : vector<112x32xf32>
    %c0_96 = arith.constant 0 : index
    %c118 = arith.constant 118 : index
    %c0_97 = arith.constant 0 : index
    %95 = vector.load %arg1[%c0_96, %c118, %c0_97] : memref<1x352x4xbf16, #tpu.memory_space<vmem>>, vector<1x112x4xbf16>
    %96 = vector.shape_cast %95 : vector<1x112x4xbf16> to vector<112x4xbf16>
    %c6_98 = arith.constant 6 : index
    %c0_99 = arith.constant 0 : index
    %c0_100 = arith.constant 0 : index
    %97 = vector.load %arg2[%c6_98, %c0_99, %c0_100] : memref<7x4x32xbf16, #tpu.memory_space<vmem>>, vector<1x4x32xbf16>
    %98 = vector.shape_cast %97 : vector<1x4x32xbf16> to vector<4x32xbf16>
    %cst_101 = arith.constant dense<0.000000e+00> : vector<112x32xf32>
    %99 = tpu.matmul %96, %98, %cst_101 {dimension_numbers = #tpu.dot_dimension_numbers<[1], [0], [0], [1], [0, 0, 1, 1], [], []>} : vector<112x4xbf16>, vector<4x32xbf16>, vector<112x32xf32> -> vector<112x32xf32>
    %100 = arith.addf %94, %99 : vector<112x32xf32>
    %101 = vector.broadcast %0 : vector<1x32xf32> to vector<112x32xf32>
    %102 = arith.addf %100, %101 : vector<112x32xf32>
    %cst_102 = arith.constant 0.000000e+00 : f32
    %103 = vector.broadcast %cst_102 : f32 to vector<112x32xf32>
    %104 = arith.maximumf %102, %103 : vector<112x32xf32>
    %c0_103 = arith.constant 0 : index
    %c0_104 = arith.constant 0 : index
    %105 = vector.load %arg11[%c0_103, %c0_104] : memref<112x32xf32, #tpu.memory_space<vmem>>, vector<112x32xf32>
    tpu.vector_store %arg11[%c0_103, %c0_104], %104 {strides = array<i32>} : memref<112x32xf32, #tpu.memory_space<vmem>>, vector<112x32xf32>,
    %c0_105 = arith.constant 0 : index
    %c0_106 = arith.constant 0 : index
    %106 = tpu.strided_load %arg11[%c0_105, %c0_106] {strides = array<i32: 7, 1>} : memref<112x32xf32, #tpu.memory_space<vmem>>, vector<16x32xf32>
    %c1_107 = arith.constant 1 : index
    %c0_108 = arith.constant 0 : index
    %107 = tpu.strided_load %arg11[%c1_107, %c0_108] {strides = array<i32: 7, 1>} : memref<112x32xf32, #tpu.memory_space<vmem>>, vector<16x32xf32>
    %108 = arith.maximumf %106, %107 : vector<16x32xf32>
    %c2_109 = arith.constant 2 : index
    %c0_110 = arith.constant 0 : index
    %109 = tpu.strided_load %arg11[%c2_109, %c0_110] {strides = array<i32: 7, 1>} : memref<112x32xf32, #tpu.memory_space<vmem>>, vector<16x32xf32>
    %110 = arith.maximumf %108, %109 : vector<16x32xf32>
    %c3_111 = arith.constant 3 : index
    %c0_112 = arith.constant 0 : index
    %111 = tpu.strided_load %arg11[%c3_111, %c0_112] {strides = array<i32: 7, 1>} : memref<112x32xf32, #tpu.memory_space<vmem>>, vector<16x32xf32>
    %112 = arith.maximumf %110, %111 : vector<16x32xf32>
    %c4_113 = arith.constant 4 : index
    %c0_114 = arith.constant 0 : index
    %113 = tpu.strided_load %arg11[%c4_113, %c0_114] {strides = array<i32: 7, 1>} : memref<112x32xf32, #tpu.memory_space<vmem>>, vector<16x32xf32>
    %114 = arith.maximumf %112, %113 : vector<16x32xf32>
    %c5_115 = arith.constant 5 : index
    %c0_116 = arith.constant 0 : index
    %115 = tpu.strided_load %arg11[%c5_115, %c0_116] {strides = array<i32: 7, 1>} : memref<112x32xf32, #tpu.memory_space<vmem>>, vector<16x32xf32>
    %116 = arith.maximumf %114, %115 : vector<16x32xf32>
    %c6_117 = arith.constant 6 : index
    %c0_118 = arith.constant 0 : index
    %117 = tpu.strided_load %arg11[%c6_117, %c0_118] {strides = array<i32: 7, 1>} : memref<112x32xf32, #tpu.memory_space<vmem>>, vector<16x32xf32>
    %118 = arith.maximumf %116, %117 : vector<16x32xf32>
    %c0_119 = arith.constant 0 : index
    %c224 = arith.constant 224 : index
    %c0_120 = arith.constant 0 : index
    %119 = vector.load %arg1[%c0_119, %c224, %c0_120] : memref<1x352x4xbf16, #tpu.memory_space<vmem>>, vector<1x112x4xbf16>
    %120 = vector.shape_cast %119 : vector<1x112x4xbf16> to vector<112x4xbf16>
    %c0_121 = arith.constant 0 : index
    %c0_122 = arith.constant 0 : index
    %c0_123 = arith.constant 0 : index
    %121 = vector.load %arg2[%c0_121, %c0_122, %c0_123] : memref<7x4x32xbf16, #tpu.memory_space<vmem>>, vector<1x4x32xbf16>
    %122 = vector.shape_cast %121 : vector<1x4x32xbf16> to vector<4x32xbf16>
    %cst_124 = arith.constant dense<0.000000e+00> : vector<112x32xf32>
    %123 = tpu.matmul %120, %122, %cst_124 {dimension_numbers = #tpu.dot_dimension_numbers<[1], [0], [0], [1], [0, 0, 1, 1], [], []>} : vector<112x4xbf16>, vector<4x32xbf16>, vector<112x32xf32> -> vector<112x32xf32>
    %c0_125 = arith.constant 0 : index
    %c225 = arith.constant 225 : index
    %c0_126 = arith.constant 0 : index
    %124 = vector.load %arg1[%c0_125, %c225, %c0_126] : memref<1x352x4xbf16, #tpu.memory_space<vmem>>, vector<1x112x4xbf16>
    %125 = vector.shape_cast %124 : vector<1x112x4xbf16> to vector<112x4xbf16>
    %c1_127 = arith.constant 1 : index
    %c0_128 = arith.constant 0 : index
    %c0_129 = arith.constant 0 : index
    %126 = vector.load %arg2[%c1_127, %c0_128, %c0_129] : memref<7x4x32xbf16, #tpu.memory_space<vmem>>, vector<1x4x32xbf16>
    %127 = vector.shape_cast %126 : vector<1x4x32xbf16> to vector<4x32xbf16>
    %cst_130 = arith.constant dense<0.000000e+00> : vector<112x32xf32>
    %128 = tpu.matmul %125, %127, %cst_130 {dimension_numbers = #tpu.dot_dimension_numbers<[1], [0], [0], [1], [0, 0, 1, 1], [], []>} : vector<112x4xbf16>, vector<4x32xbf16>, vector<112x32xf32> -> vector<112x32xf32>
    %129 = arith.addf %123, %128 : vector<112x32xf32>
    %c0_131 = arith.constant 0 : index
    %c226 = arith.constant 226 : index
    %c0_132 = arith.constant 0 : index
    %130 = vector.load %arg1[%c0_131, %c226, %c0_132] : memref<1x352x4xbf16, #tpu.memory_space<vmem>>, vector<1x112x4xbf16>
    %131 = vector.shape_cast %130 : vector<1x112x4xbf16> to vector<112x4xbf16>
    %c2_133 = arith.constant 2 : index
    %c0_134 = arith.constant 0 : index
    %c0_135 = arith.constant 0 : index
    %132 = vector.load %arg2[%c2_133, %c0_134, %c0_135] : memref<7x4x32xbf16, #tpu.memory_space<vmem>>, vector<1x4x32xbf16>
    %133 = vector.shape_cast %132 : vector<1x4x32xbf16> to vector<4x32xbf16>
    %cst_136 = arith.constant dense<0.000000e+00> : vector<112x32xf32>
    %134 = tpu.matmul %131, %133, %cst_136 {dimension_numbers = #tpu.dot_dimension_numbers<[1], [0], [0], [1], [0, 0, 1, 1], [], []>} : vector<112x4xbf16>, vector<4x32xbf16>, vector<112x32xf32> -> vector<112x32xf32>
    %135 = arith.addf %129, %134 : vector<112x32xf32>
    %c0_137 = arith.constant 0 : index
    %c227 = arith.constant 227 : index
    %c0_138 = arith.constant 0 : index
    %136 = vector.load %arg1[%c0_137, %c227, %c0_138] : memref<1x352x4xbf16, #tpu.memory_space<vmem>>, vector<1x112x4xbf16>
    %137 = vector.shape_cast %136 : vector<1x112x4xbf16> to vector<112x4xbf16>
    %c3_139 = arith.constant 3 : index
    %c0_140 = arith.constant 0 : index
    %c0_141 = arith.constant 0 : index
    %138 = vector.load %arg2[%c3_139, %c0_140, %c0_141] : memref<7x4x32xbf16, #tpu.memory_space<vmem>>, vector<1x4x32xbf16>
    %139 = vector.shape_cast %138 : vector<1x4x32xbf16> to vector<4x32xbf16>
    %cst_142 = arith.constant dense<0.000000e+00> : vector<112x32xf32>
    %140 = tpu.matmul %137, %139, %cst_142 {dimension_numbers = #tpu.dot_dimension_numbers<[1], [0], [0], [1], [0, 0, 1, 1], [], []>} : vector<112x4xbf16>, vector<4x32xbf16>, vector<112x32xf32> -> vector<112x32xf32>
    %141 = arith.addf %135, %140 : vector<112x32xf32>
    %c0_143 = arith.constant 0 : index
    %c228 = arith.constant 228 : index
    %c0_144 = arith.constant 0 : index
    %142 = vector.load %arg1[%c0_143, %c228, %c0_144] : memref<1x352x4xbf16, #tpu.memory_space<vmem>>, vector<1x112x4xbf16>
    %143 = vector.shape_cast %142 : vector<1x112x4xbf16> to vector<112x4xbf16>
    %c4_145 = arith.constant 4 : index
    %c0_146 = arith.constant 0 : index
    %c0_147 = arith.constant 0 : index
    %144 = vector.load %arg2[%c4_145, %c0_146, %c0_147] : memref<7x4x32xbf16, #tpu.memory_space<vmem>>, vector<1x4x32xbf16>
    %145 = vector.shape_cast %144 : vector<1x4x32xbf16> to vector<4x32xbf16>
    %cst_148 = arith.constant dense<0.000000e+00> : vector<112x32xf32>
    %146 = tpu.matmul %143, %145, %cst_148 {dimension_numbers = #tpu.dot_dimension_numbers<[1], [0], [0], [1], [0, 0, 1, 1], [], []>} : vector<112x4xbf16>, vector<4x32xbf16>, vector<112x32xf32> -> vector<112x32xf32>
    %147 = arith.addf %141, %146 : vector<112x32xf32>
    %c0_149 = arith.constant 0 : index
    %c229 = arith.constant 229 : index
    %c0_150 = arith.constant 0 : index
    %148 = vector.load %arg1[%c0_149, %c229, %c0_150] : memref<1x352x4xbf16, #tpu.memory_space<vmem>>, vector<1x112x4xbf16>
    %149 = vector.shape_cast %148 : vector<1x112x4xbf16> to vector<112x4xbf16>
    %c5_151 = arith.constant 5 : index
    %c0_152 = arith.constant 0 : index
    %c0_153 = arith.constant 0 : index
    %150 = vector.load %arg2[%c5_151, %c0_152, %c0_153] : memref<7x4x32xbf16, #tpu.memory_space<vmem>>, vector<1x4x32xbf16>
    %151 = vector.shape_cast %150 : vector<1x4x32xbf16> to vector<4x32xbf16>
    %cst_154 = arith.constant dense<0.000000e+00> : vector<112x32xf32>
    %152 = tpu.matmul %149, %151, %cst_154 {dimension_numbers = #tpu.dot_dimension_numbers<[1], [0], [0], [1], [0, 0, 1, 1], [], []>} : vector<112x4xbf16>, vector<4x32xbf16>, vector<112x32xf32> -> vector<112x32xf32>
    %153 = arith.addf %147, %152 : vector<112x32xf32>
    %c0_155 = arith.constant 0 : index
    %c230 = arith.constant 230 : index
    %c0_156 = arith.constant 0 : index
    %154 = vector.load %arg1[%c0_155, %c230, %c0_156] : memref<1x352x4xbf16, #tpu.memory_space<vmem>>, vector<1x112x4xbf16>
    %155 = vector.shape_cast %154 : vector<1x112x4xbf16> to vector<112x4xbf16>
    %c6_157 = arith.constant 6 : index
    %c0_158 = arith.constant 0 : index
    %c0_159 = arith.constant 0 : index
    %156 = vector.load %arg2[%c6_157, %c0_158, %c0_159] : memref<7x4x32xbf16, #tpu.memory_space<vmem>>, vector<1x4x32xbf16>
    %157 = vector.shape_cast %156 : vector<1x4x32xbf16> to vector<4x32xbf16>
    %cst_160 = arith.constant dense<0.000000e+00> : vector<112x32xf32>
    %158 = tpu.matmul %155, %157, %cst_160 {dimension_numbers = #tpu.dot_dimension_numbers<[1], [0], [0], [1], [0, 0, 1, 1], [], []>} : vector<112x4xbf16>, vector<4x32xbf16>, vector<112x32xf32> -> vector<112x32xf32>
    %159 = arith.addf %153, %158 : vector<112x32xf32>
    %160 = vector.broadcast %0 : vector<1x32xf32> to vector<112x32xf32>
    %161 = arith.addf %159, %160 : vector<112x32xf32>
    %cst_161 = arith.constant 0.000000e+00 : f32
    %162 = vector.broadcast %cst_161 : f32 to vector<112x32xf32>
    %163 = arith.maximumf %161, %162 : vector<112x32xf32>
    %c0_162 = arith.constant 0 : index
    %c0_163 = arith.constant 0 : index
    %164 = vector.load %arg11[%c0_162, %c0_163] : memref<112x32xf32, #tpu.memory_space<vmem>>, vector<112x32xf32>
    tpu.vector_store %arg11[%c0_162, %c0_163], %163 {strides = array<i32>} : memref<112x32xf32, #tpu.memory_space<vmem>>, vector<112x32xf32>,
    %c0_164 = arith.constant 0 : index
    %c0_165 = arith.constant 0 : index
    %165 = tpu.strided_load %arg11[%c0_164, %c0_165] {strides = array<i32: 7, 1>} : memref<112x32xf32, #tpu.memory_space<vmem>>, vector<16x32xf32>
    %c1_166 = arith.constant 1 : index
    %c0_167 = arith.constant 0 : index
    %166 = tpu.strided_load %arg11[%c1_166, %c0_167] {strides = array<i32: 7, 1>} : memref<112x32xf32, #tpu.memory_space<vmem>>, vector<16x32xf32>
    %167 = arith.maximumf %165, %166 : vector<16x32xf32>
    %c2_168 = arith.constant 2 : index
    %c0_169 = arith.constant 0 : index
    %168 = tpu.strided_load %arg11[%c2_168, %c0_169] {strides = array<i32: 7, 1>} : memref<112x32xf32, #tpu.memory_space<vmem>>, vector<16x32xf32>
    %169 = arith.maximumf %167, %168 : vector<16x32xf32>
    %c3_170 = arith.constant 3 : index
    %c0_171 = arith.constant 0 : index
    %170 = tpu.strided_load %arg11[%c3_170, %c0_171] {strides = array<i32: 7, 1>} : memref<112x32xf32, #tpu.memory_space<vmem>>, vector<16x32xf32>
    %171 = arith.maximumf %169, %170 : vector<16x32xf32>
    %c4_172 = arith.constant 4 : index
    %c0_173 = arith.constant 0 : index
    %172 = tpu.strided_load %arg11[%c4_172, %c0_173] {strides = array<i32: 7, 1>} : memref<112x32xf32, #tpu.memory_space<vmem>>, vector<16x32xf32>
    %173 = arith.maximumf %171, %172 : vector<16x32xf32>
    %c5_174 = arith.constant 5 : index
    %c0_175 = arith.constant 0 : index
    %174 = tpu.strided_load %arg11[%c5_174, %c0_175] {strides = array<i32: 7, 1>} : memref<112x32xf32, #tpu.memory_space<vmem>>, vector<16x32xf32>
    %175 = arith.maximumf %173, %174 : vector<16x32xf32>
    %c6_176 = arith.constant 6 : index
    %c0_177 = arith.constant 0 : index
    %176 = tpu.strided_load %arg11[%c6_176, %c0_177] {strides = array<i32: 7, 1>} : memref<112x32xf32, #tpu.memory_space<vmem>>, vector<16x32xf32>
    %177 = arith.maximumf %175, %176 : vector<16x32xf32>
    %c0_178 = arith.constant 0 : index
    %c336 = arith.constant 336 : index
    %c0_179 = arith.constant 0 : index
    %178 = vector.load %arg1[%c0_178, %c336, %c0_179] : memref<1x352x4xbf16, #tpu.memory_space<vmem>>, vector<1x7x4xbf16>
    %179 = vector.shape_cast %178 : vector<1x7x4xbf16> to vector<7x4xbf16>
    %c0_180 = arith.constant 0 : index
    %c0_181 = arith.constant 0 : index
    %c0_182 = arith.constant 0 : index
    %180 = vector.load %arg2[%c0_180, %c0_181, %c0_182] : memref<7x4x32xbf16, #tpu.memory_space<vmem>>, vector<1x4x32xbf16>
    %181 = vector.shape_cast %180 : vector<1x4x32xbf16> to vector<4x32xbf16>
    %cst_183 = arith.constant dense<0.000000e+00> : vector<7x32xf32>
    %182 = tpu.matmul %179, %181, %cst_183 {dimension_numbers = #tpu.dot_dimension_numbers<[1], [0], [0], [1], [0, 0, 1, 1], [], []>} : vector<7x4xbf16>, vector<4x32xbf16>, vector<7x32xf32> -> vector<7x32xf32>
    %c0_184 = arith.constant 0 : index
    %c337 = arith.constant 337 : index
    %c0_185 = arith.constant 0 : index
    %183 = vector.load %arg1[%c0_184, %c337, %c0_185] : memref<1x352x4xbf16, #tpu.memory_space<vmem>>, vector<1x7x4xbf16>
    %184 = vector.shape_cast %183 : vector<1x7x4xbf16> to vector<7x4xbf16>
    %c1_186 = arith.constant 1 : index
    %c0_187 = arith.constant 0 : index
    %c0_188 = arith.constant 0 : index
    %185 = vector.load %arg2[%c1_186, %c0_187, %c0_188] : memref<7x4x32xbf16, #tpu.memory_space<vmem>>, vector<1x4x32xbf16>
    %186 = vector.shape_cast %185 : vector<1x4x32xbf16> to vector<4x32xbf16>
    %cst_189 = arith.constant dense<0.000000e+00> : vector<7x32xf32>
    %187 = tpu.matmul %184, %186, %cst_189 {dimension_numbers = #tpu.dot_dimension_numbers<[1], [0], [0], [1], [0, 0, 1, 1], [], []>} : vector<7x4xbf16>, vector<4x32xbf16>, vector<7x32xf32> -> vector<7x32xf32>
    %188 = arith.addf %182, %187 : vector<7x32xf32>
    %c0_190 = arith.constant 0 : index
    %c338 = arith.constant 338 : index
    %c0_191 = arith.constant 0 : index
    %189 = vector.load %arg1[%c0_190, %c338, %c0_191] : memref<1x352x4xbf16, #tpu.memory_space<vmem>>, vector<1x7x4xbf16>
    %190 = vector.shape_cast %189 : vector<1x7x4xbf16> to vector<7x4xbf16>
    %c2_192 = arith.constant 2 : index
    %c0_193 = arith.constant 0 : index
    %c0_194 = arith.constant 0 : index
    %191 = vector.load %arg2[%c2_192, %c0_193, %c0_194] : memref<7x4x32xbf16, #tpu.memory_space<vmem>>, vector<1x4x32xbf16>
    %192 = vector.shape_cast %191 : vector<1x4x32xbf16> to vector<4x32xbf16>
    %cst_195 = arith.constant dense<0.000000e+00> : vector<7x32xf32>
    %193 = tpu.matmul %190, %192, %cst_195 {dimension_numbers = #tpu.dot_dimension_numbers<[1], [0], [0], [1], [0, 0, 1, 1], [], []>} : vector<7x4xbf16>, vector<4x32xbf16>, vector<7x32xf32> -> vector<7x32xf32>
    %194 = arith.addf %188, %193 : vector<7x32xf32>
    %c0_196 = arith.constant 0 : index
    %c339 = arith.constant 339 : index
    %c0_197 = arith.constant 0 : index
    %195 = vector.load %arg1[%c0_196, %c339, %c0_197] : memref<1x352x4xbf16, #tpu.memory_space<vmem>>, vector<1x7x4xbf16>
    %196 = vector.shape_cast %195 : vector<1x7x4xbf16> to vector<7x4xbf16>
    %c3_198 = arith.constant 3 : index
    %c0_199 = arith.constant 0 : index
    %c0_200 = arith.constant 0 : index
    %197 = vector.load %arg2[%c3_198, %c0_199, %c0_200] : memref<7x4x32xbf16, #tpu.memory_space<vmem>>, vector<1x4x32xbf16>
    %198 = vector.shape_cast %197 : vector<1x4x32xbf16> to vector<4x32xbf16>
    %cst_201 = arith.constant dense<0.000000e+00> : vector<7x32xf32>
    %199 = tpu.matmul %196, %198, %cst_201 {dimension_numbers = #tpu.dot_dimension_numbers<[1], [0], [0], [1], [0, 0, 1, 1], [], []>} : vector<7x4xbf16>, vector<4x32xbf16>, vector<7x32xf32> -> vector<7x32xf32>
    %200 = arith.addf %194, %199 : vector<7x32xf32>
    %c0_202 = arith.constant 0 : index
    %c340 = arith.constant 340 : index
    %c0_203 = arith.constant 0 : index
    %201 = vector.load %arg1[%c0_202, %c340, %c0_203] : memref<1x352x4xbf16, #tpu.memory_space<vmem>>, vector<1x7x4xbf16>
    %202 = vector.shape_cast %201 : vector<1x7x4xbf16> to vector<7x4xbf16>
    %c4_204 = arith.constant 4 : index
    %c0_205 = arith.constant 0 : index
    %c0_206 = arith.constant 0 : index
    %203 = vector.load %arg2[%c4_204, %c0_205, %c0_206] : memref<7x4x32xbf16, #tpu.memory_space<vmem>>, vector<1x4x32xbf16>
    %204 = vector.shape_cast %203 : vector<1x4x32xbf16> to vector<4x32xbf16>
    %cst_207 = arith.constant dense<0.000000e+00> : vector<7x32xf32>
    %205 = tpu.matmul %202, %204, %cst_207 {dimension_numbers = #tpu.dot_dimension_numbers<[1], [0], [0], [1], [0, 0, 1, 1], [], []>} : vector<7x4xbf16>, vector<4x32xbf16>, vector<7x32xf32> -> vector<7x32xf32>
    %206 = arith.addf %200, %205 : vector<7x32xf32>
    %c0_208 = arith.constant 0 : index
    %c341 = arith.constant 341 : index
    %c0_209 = arith.constant 0 : index
    %207 = vector.load %arg1[%c0_208, %c341, %c0_209] : memref<1x352x4xbf16, #tpu.memory_space<vmem>>, vector<1x7x4xbf16>
    %208 = vector.shape_cast %207 : vector<1x7x4xbf16> to vector<7x4xbf16>
    %c5_210 = arith.constant 5 : index
    %c0_211 = arith.constant 0 : index
    %c0_212 = arith.constant 0 : index
    %209 = vector.load %arg2[%c5_210, %c0_211, %c0_212] : memref<7x4x32xbf16, #tpu.memory_space<vmem>>, vector<1x4x32xbf16>
    %210 = vector.shape_cast %209 : vector<1x4x32xbf16> to vector<4x32xbf16>
    %cst_213 = arith.constant dense<0.000000e+00> : vector<7x32xf32>
    %211 = tpu.matmul %208, %210, %cst_213 {dimension_numbers = #tpu.dot_dimension_numbers<[1], [0], [0], [1], [0, 0, 1, 1], [], []>} : vector<7x4xbf16>, vector<4x32xbf16>, vector<7x32xf32> -> vector<7x32xf32>
    %212 = arith.addf %206, %211 : vector<7x32xf32>
    %c0_214 = arith.constant 0 : index
    %c342 = arith.constant 342 : index
    %c0_215 = arith.constant 0 : index
    %213 = vector.load %arg1[%c0_214, %c342, %c0_215] : memref<1x352x4xbf16, #tpu.memory_space<vmem>>, vector<1x7x4xbf16>
    %214 = vector.shape_cast %213 : vector<1x7x4xbf16> to vector<7x4xbf16>
    %c6_216 = arith.constant 6 : index
    %c0_217 = arith.constant 0 : index
    %c0_218 = arith.constant 0 : index
    %215 = vector.load %arg2[%c6_216, %c0_217, %c0_218] : memref<7x4x32xbf16, #tpu.memory_space<vmem>>, vector<1x4x32xbf16>
    %216 = vector.shape_cast %215 : vector<1x4x32xbf16> to vector<4x32xbf16>
    %cst_219 = arith.constant dense<0.000000e+00> : vector<7x32xf32>
    %217 = tpu.matmul %214, %216, %cst_219 {dimension_numbers = #tpu.dot_dimension_numbers<[1], [0], [0], [1], [0, 0, 1, 1], [], []>} : vector<7x4xbf16>, vector<4x32xbf16>, vector<7x32xf32> -> vector<7x32xf32>
    %218 = arith.addf %212, %217 : vector<7x32xf32>
    %219 = vector.broadcast %0 : vector<1x32xf32> to vector<7x32xf32>
    %220 = arith.addf %218, %219 : vector<7x32xf32>
    %cst_220 = arith.constant 0.000000e+00 : f32
    %221 = vector.broadcast %cst_220 : f32 to vector<7x32xf32>
    %222 = arith.maximumf %220, %221 : vector<7x32xf32>
    %cst_221 = arith.constant dense<0xFF800000> : vector<32xf32>
    %223 = vector.multi_reduction <maximumf>, %222, %cst_221 [0] : vector<7x32xf32> to vector<32xf32>
    %224 = vector.shape_cast %223 : vector<32xf32> to vector<1x32xf32>
    %225 = tpu.concatenate %59, %118, %177, %224 in 0 : vector<16x32xf32>, vector<16x32xf32>, vector<16x32xf32>, vector<1x32xf32> -> vector<49x32xf32>
    %cst_222 = arith.constant 0.000000e+00 : f32
    %226 = vector.broadcast %cst_222 : f32 to vector<3x32xf32>
    %227 = tpu.concatenate %226, %225, %226 in 0 : vector<3x32xf32>, vector<49x32xf32>, vector<3x32xf32> -> vector<55x32xf32>
    %c0_223 = arith.constant 0 : index
    %c0_224 = arith.constant 0 : index
    %228 = vector.load %arg5[%c0_223, %c0_224] : memref<1x32xf32, #tpu.memory_space<vmem>>, vector<1x32xf32>
    %229 = vector.extract_strided_slice %227 {offsets = [0, 0], sizes = [49, 32], strides = [1, 1]} : vector<55x32xf32> to vector<49x32xf32>
    %230 = arith.truncf %229 : vector<49x32xf32> to vector<49x32xbf16>
    %c0_225 = arith.constant 0 : index
    %c0_226 = arith.constant 0 : index
    %c0_227 = arith.constant 0 : index
    %231 = vector.load %arg4[%c0_225, %c0_226, %c0_227] : memref<7x32x32xbf16, #tpu.memory_space<vmem>>, vector<1x32x32xbf16>
    %232 = vector.shape_cast %231 : vector<1x32x32xbf16> to vector<32x32xbf16>
    %cst_228 = arith.constant dense<0.000000e+00> : vector<49x32xf32>
    %233 = tpu.matmul %230, %232, %cst_228 {dimension_numbers = #tpu.dot_dimension_numbers<[1], [0], [0], [1], [0, 0, 1, 1], [], []>} : vector<49x32xbf16>, vector<32x32xbf16>, vector<49x32xf32> -> vector<49x32xf32>
    %234 = vector.extract_strided_slice %227 {offsets = [1, 0], sizes = [49, 32], strides = [1, 1]} : vector<55x32xf32> to vector<49x32xf32>
    %235 = arith.truncf %234 : vector<49x32xf32> to vector<49x32xbf16>
    %c1_229 = arith.constant 1 : index
    %c0_230 = arith.constant 0 : index
    %c0_231 = arith.constant 0 : index
    %236 = vector.load %arg4[%c1_229, %c0_230, %c0_231] : memref<7x32x32xbf16, #tpu.memory_space<vmem>>, vector<1x32x32xbf16>
    %237 = vector.shape_cast %236 : vector<1x32x32xbf16> to vector<32x32xbf16>
    %cst_232 = arith.constant dense<0.000000e+00> : vector<49x32xf32>
    %238 = tpu.matmul %235, %237, %cst_232 {dimension_numbers = #tpu.dot_dimension_numbers<[1], [0], [0], [1], [0, 0, 1, 1], [], []>} : vector<49x32xbf16>, vector<32x32xbf16>, vector<49x32xf32> -> vector<49x32xf32>
    %239 = arith.addf %233, %238 : vector<49x32xf32>
    %240 = vector.extract_strided_slice %227 {offsets = [2, 0], sizes = [49, 32], strides = [1, 1]} : vector<55x32xf32> to vector<49x32xf32>
    %241 = arith.truncf %240 : vector<49x32xf32> to vector<49x32xbf16>
    %c2_233 = arith.constant 2 : index
    %c0_234 = arith.constant 0 : index
    %c0_235 = arith.constant 0 : index
    %242 = vector.load %arg4[%c2_233, %c0_234, %c0_235] : memref<7x32x32xbf16, #tpu.memory_space<vmem>>, vector<1x32x32xbf16>
    %243 = vector.shape_cast %242 : vector<1x32x32xbf16> to vector<32x32xbf16>
    %cst_236 = arith.constant dense<0.000000e+00> : vector<49x32xf32>
    %244 = tpu.matmul %241, %243, %cst_236 {dimension_numbers = #tpu.dot_dimension_numbers<[1], [0], [0], [1], [0, 0, 1, 1], [], []>} : vector<49x32xbf16>, vector<32x32xbf16>, vector<49x32xf32> -> vector<49x32xf32>
    %245 = arith.addf %239, %244 : vector<49x32xf32>
    %246 = vector.extract_strided_slice %227 {offsets = [3, 0], sizes = [49, 32], strides = [1, 1]} : vector<55x32xf32> to vector<49x32xf32>
    %247 = arith.truncf %246 : vector<49x32xf32> to vector<49x32xbf16>
    %c3_237 = arith.constant 3 : index
    %c0_238 = arith.constant 0 : index
    %c0_239 = arith.constant 0 : index
    %248 = vector.load %arg4[%c3_237, %c0_238, %c0_239] : memref<7x32x32xbf16, #tpu.memory_space<vmem>>, vector<1x32x32xbf16>
    %249 = vector.shape_cast %248 : vector<1x32x32xbf16> to vector<32x32xbf16>
    %cst_240 = arith.constant dense<0.000000e+00> : vector<49x32xf32>
    %250 = tpu.matmul %247, %249, %cst_240 {dimension_numbers = #tpu.dot_dimension_numbers<[1], [0], [0], [1], [0, 0, 1, 1], [], []>} : vector<49x32xbf16>, vector<32x32xbf16>, vector<49x32xf32> -> vector<49x32xf32>
    %251 = arith.addf %245, %250 : vector<49x32xf32>
    %252 = vector.extract_strided_slice %227 {offsets = [4, 0], sizes = [49, 32], strides = [1, 1]} : vector<55x32xf32> to vector<49x32xf32>
    %253 = arith.truncf %252 : vector<49x32xf32> to vector<49x32xbf16>
    %c4_241 = arith.constant 4 : index
    %c0_242 = arith.constant 0 : index
    %c0_243 = arith.constant 0 : index
    %254 = vector.load %arg4[%c4_241, %c0_242, %c0_243] : memref<7x32x32xbf16, #tpu.memory_space<vmem>>, vector<1x32x32xbf16>
    %255 = vector.shape_cast %254 : vector<1x32x32xbf16> to vector<32x32xbf16>
    %cst_244 = arith.constant dense<0.000000e+00> : vector<49x32xf32>
    %256 = tpu.matmul %253, %255, %cst_244 {dimension_numbers = #tpu.dot_dimension_numbers<[1], [0], [0], [1], [0, 0, 1, 1], [], []>} : vector<49x32xbf16>, vector<32x32xbf16>, vector<49x32xf32> -> vector<49x32xf32>
    %257 = arith.addf %251, %256 : vector<49x32xf32>
    %258 = vector.extract_strided_slice %227 {offsets = [5, 0], sizes = [49, 32], strides = [1, 1]} : vector<55x32xf32> to vector<49x32xf32>
    %259 = arith.truncf %258 : vector<49x32xf32> to vector<49x32xbf16>
    %c5_245 = arith.constant 5 : index
    %c0_246 = arith.constant 0 : index
    %c0_247 = arith.constant 0 : index
    %260 = vector.load %arg4[%c5_245, %c0_246, %c0_247] : memref<7x32x32xbf16, #tpu.memory_space<vmem>>, vector<1x32x32xbf16>
    %261 = vector.shape_cast %260 : vector<1x32x32xbf16> to vector<32x32xbf16>
    %cst_248 = arith.constant dense<0.000000e+00> : vector<49x32xf32>
    %262 = tpu.matmul %259, %261, %cst_248 {dimension_numbers = #tpu.dot_dimension_numbers<[1], [0], [0], [1], [0, 0, 1, 1], [], []>} : vector<49x32xbf16>, vector<32x32xbf16>, vector<49x32xf32> -> vector<49x32xf32>
    %263 = arith.addf %257, %262 : vector<49x32xf32>
    %264 = vector.extract_strided_slice %227 {offsets = [6, 0], sizes = [49, 32], strides = [1, 1]} : vector<55x32xf32> to vector<49x32xf32>
    %265 = arith.truncf %264 : vector<49x32xf32> to vector<49x32xbf16>
    %c6_249 = arith.constant 6 : index
    %c0_250 = arith.constant 0 : index
    %c0_251 = arith.constant 0 : index
    %266 = vector.load %arg4[%c6_249, %c0_250, %c0_251] : memref<7x32x32xbf16, #tpu.memory_space<vmem>>, vector<1x32x32xbf16>
    %267 = vector.shape_cast %266 : vector<1x32x32xbf16> to vector<32x32xbf16>
    %cst_252 = arith.constant dense<0.000000e+00> : vector<49x32xf32>
    %268 = tpu.matmul %265, %267, %cst_252 {dimension_numbers = #tpu.dot_dimension_numbers<[1], [0], [0], [1], [0, 0, 1, 1], [], []>} : vector<49x32xbf16>, vector<32x32xbf16>, vector<49x32xf32> -> vector<49x32xf32>
    %269 = arith.addf %263, %268 : vector<49x32xf32>
    %270 = vector.broadcast %228 : vector<1x32xf32> to vector<49x32xf32>
    %271 = arith.addf %269, %270 : vector<49x32xf32>
    %cst_253 = arith.constant 0.000000e+00 : f32
    %272 = vector.broadcast %cst_253 : f32 to vector<49x32xf32>
    %273 = arith.maximumf %271, %272 : vector<49x32xf32>
    %c0_254 = arith.constant 0 : index
    %c0_255 = arith.constant 0 : index
    %274 = vector.load %arg11[%c0_254, %c0_255] : memref<112x32xf32, #tpu.memory_space<vmem>>, vector<49x32xf32>
    tpu.vector_store %arg11[%c0_254, %c0_255], %273 {strides = array<i32>} : memref<112x32xf32, #tpu.memory_space<vmem>>, vector<49x32xf32>,
    %c0_256 = arith.constant 0 : index
    %c0_257 = arith.constant 0 : index
    %275 = tpu.strided_load %arg11[%c0_256, %c0_257] {strides = array<i32: 7, 1>} : memref<112x32xf32, #tpu.memory_space<vmem>>, vector<7x32xf32>
    %c1_258 = arith.constant 1 : index
    %c0_259 = arith.constant 0 : index
    %276 = tpu.strided_load %arg11[%c1_258, %c0_259] {strides = array<i32: 7, 1>} : memref<112x32xf32, #tpu.memory_space<vmem>>, vector<7x32xf32>
    %277 = arith.maximumf %275, %276 : vector<7x32xf32>
    %c2_260 = arith.constant 2 : index
    %c0_261 = arith.constant 0 : index
    %278 = tpu.strided_load %arg11[%c2_260, %c0_261] {strides = array<i32: 7, 1>} : memref<112x32xf32, #tpu.memory_space<vmem>>, vector<7x32xf32>
    %279 = arith.maximumf %277, %278 : vector<7x32xf32>
    %c3_262 = arith.constant 3 : index
    %c0_263 = arith.constant 0 : index
    %280 = tpu.strided_load %arg11[%c3_262, %c0_263] {strides = array<i32: 7, 1>} : memref<112x32xf32, #tpu.memory_space<vmem>>, vector<7x32xf32>
    %281 = arith.maximumf %279, %280 : vector<7x32xf32>
    %c4_264 = arith.constant 4 : index
    %c0_265 = arith.constant 0 : index
    %282 = tpu.strided_load %arg11[%c4_264, %c0_265] {strides = array<i32: 7, 1>} : memref<112x32xf32, #tpu.memory_space<vmem>>, vector<7x32xf32>
    %283 = arith.maximumf %281, %282 : vector<7x32xf32>
    %c5_266 = arith.constant 5 : index
    %c0_267 = arith.constant 0 : index
    %284 = tpu.strided_load %arg11[%c5_266, %c0_267] {strides = array<i32: 7, 1>} : memref<112x32xf32, #tpu.memory_space<vmem>>, vector<7x32xf32>
    %285 = arith.maximumf %283, %284 : vector<7x32xf32>
    %c6_268 = arith.constant 6 : index
    %c0_269 = arith.constant 0 : index
    %286 = tpu.strided_load %arg11[%c6_268, %c0_269] {strides = array<i32: 7, 1>} : memref<112x32xf32, #tpu.memory_space<vmem>>, vector<7x32xf32>
    %287 = arith.maximumf %285, %286 : vector<7x32xf32>
    %cst_270 = arith.constant 0.000000e+00 : f32
    %288 = vector.broadcast %cst_270 : f32 to vector<3x32xf32>
    %289 = tpu.concatenate %288, %287, %288 in 0 : vector<3x32xf32>, vector<7x32xf32>, vector<3x32xf32> -> vector<13x32xf32>
    %c0_271 = arith.constant 0 : index
    %c0_272 = arith.constant 0 : index
    %290 = vector.load %arg7[%c0_271, %c0_272] : memref<1x32xf32, #tpu.memory_space<vmem>>, vector<1x32xf32>
    %291 = vector.extract_strided_slice %289 {offsets = [0, 0], sizes = [7, 32], strides = [1, 1]} : vector<13x32xf32> to vector<7x32xf32>
    %292 = arith.truncf %291 : vector<7x32xf32> to vector<7x32xbf16>
    %c0_273 = arith.constant 0 : index
    %c0_274 = arith.constant 0 : index
    %c0_275 = arith.constant 0 : index
    %293 = vector.load %arg6[%c0_273, %c0_274, %c0_275] : memref<7x32x32xbf16, #tpu.memory_space<vmem>>, vector<1x32x32xbf16>
    %294 = vector.shape_cast %293 : vector<1x32x32xbf16> to vector<32x32xbf16>
    %cst_276 = arith.constant dense<0.000000e+00> : vector<7x32xf32>
    %295 = tpu.matmul %292, %294, %cst_276 {dimension_numbers = #tpu.dot_dimension_numbers<[1], [0], [0], [1], [0, 0, 1, 1], [], []>} : vector<7x32xbf16>, vector<32x32xbf16>, vector<7x32xf32> -> vector<7x32xf32>
    %296 = vector.extract_strided_slice %289 {offsets = [1, 0], sizes = [7, 32], strides = [1, 1]} : vector<13x32xf32> to vector<7x32xf32>
    %297 = arith.truncf %296 : vector<7x32xf32> to vector<7x32xbf16>
    %c1_277 = arith.constant 1 : index
    %c0_278 = arith.constant 0 : index
    %c0_279 = arith.constant 0 : index
    %298 = vector.load %arg6[%c1_277, %c0_278, %c0_279] : memref<7x32x32xbf16, #tpu.memory_space<vmem>>, vector<1x32x32xbf16>
    %299 = vector.shape_cast %298 : vector<1x32x32xbf16> to vector<32x32xbf16>
    %cst_280 = arith.constant dense<0.000000e+00> : vector<7x32xf32>
    %300 = tpu.matmul %297, %299, %cst_280 {dimension_numbers = #tpu.dot_dimension_numbers<[1], [0], [0], [1], [0, 0, 1, 1], [], []>} : vector<7x32xbf16>, vector<32x32xbf16>, vector<7x32xf32> -> vector<7x32xf32>
    %301 = arith.addf %295, %300 : vector<7x32xf32>
    %302 = vector.extract_strided_slice %289 {offsets = [2, 0], sizes = [7, 32], strides = [1, 1]} : vector<13x32xf32> to vector<7x32xf32>
    %303 = arith.truncf %302 : vector<7x32xf32> to vector<7x32xbf16>
    %c2_281 = arith.constant 2 : index
    %c0_282 = arith.constant 0 : index
    %c0_283 = arith.constant 0 : index
    %304 = vector.load %arg6[%c2_281, %c0_282, %c0_283] : memref<7x32x32xbf16, #tpu.memory_space<vmem>>, vector<1x32x32xbf16>
    %305 = vector.shape_cast %304 : vector<1x32x32xbf16> to vector<32x32xbf16>
    %cst_284 = arith.constant dense<0.000000e+00> : vector<7x32xf32>
    %306 = tpu.matmul %303, %305, %cst_284 {dimension_numbers = #tpu.dot_dimension_numbers<[1], [0], [0], [1], [0, 0, 1, 1], [], []>} : vector<7x32xbf16>, vector<32x32xbf16>, vector<7x32xf32> -> vector<7x32xf32>
    %307 = arith.addf %301, %306 : vector<7x32xf32>
    %308 = vector.extract_strided_slice %289 {offsets = [3, 0], sizes = [7, 32], strides = [1, 1]} : vector<13x32xf32> to vector<7x32xf32>
    %309 = arith.truncf %308 : vector<7x32xf32> to vector<7x32xbf16>
    %c3_285 = arith.constant 3 : index
    %c0_286 = arith.constant 0 : index
    %c0_287 = arith.constant 0 : index
    %310 = vector.load %arg6[%c3_285, %c0_286, %c0_287] : memref<7x32x32xbf16, #tpu.memory_space<vmem>>, vector<1x32x32xbf16>
    %311 = vector.shape_cast %310 : vector<1x32x32xbf16> to vector<32x32xbf16>
    %cst_288 = arith.constant dense<0.000000e+00> : vector<7x32xf32>
    %312 = tpu.matmul %309, %311, %cst_288 {dimension_numbers = #tpu.dot_dimension_numbers<[1], [0], [0], [1], [0, 0, 1, 1], [], []>} : vector<7x32xbf16>, vector<32x32xbf16>, vector<7x32xf32> -> vector<7x32xf32>
    %313 = arith.addf %307, %312 : vector<7x32xf32>
    %314 = vector.extract_strided_slice %289 {offsets = [4, 0], sizes = [7, 32], strides = [1, 1]} : vector<13x32xf32> to vector<7x32xf32>
    %315 = arith.truncf %314 : vector<7x32xf32> to vector<7x32xbf16>
    %c4_289 = arith.constant 4 : index
    %c0_290 = arith.constant 0 : index
    %c0_291 = arith.constant 0 : index
    %316 = vector.load %arg6[%c4_289, %c0_290, %c0_291] : memref<7x32x32xbf16, #tpu.memory_space<vmem>>, vector<1x32x32xbf16>
    %317 = vector.shape_cast %316 : vector<1x32x32xbf16> to vector<32x32xbf16>
    %cst_292 = arith.constant dense<0.000000e+00> : vector<7x32xf32>
    %318 = tpu.matmul %315, %317, %cst_292 {dimension_numbers = #tpu.dot_dimension_numbers<[1], [0], [0], [1], [0, 0, 1, 1], [], []>} : vector<7x32xbf16>, vector<32x32xbf16>, vector<7x32xf32> -> vector<7x32xf32>
    %319 = arith.addf %313, %318 : vector<7x32xf32>
    %320 = vector.extract_strided_slice %289 {offsets = [5, 0], sizes = [7, 32], strides = [1, 1]} : vector<13x32xf32> to vector<7x32xf32>
    %321 = arith.truncf %320 : vector<7x32xf32> to vector<7x32xbf16>
    %c5_293 = arith.constant 5 : index
    %c0_294 = arith.constant 0 : index
    %c0_295 = arith.constant 0 : index
    %322 = vector.load %arg6[%c5_293, %c0_294, %c0_295] : memref<7x32x32xbf16, #tpu.memory_space<vmem>>, vector<1x32x32xbf16>
    %323 = vector.shape_cast %322 : vector<1x32x32xbf16> to vector<32x32xbf16>
    %cst_296 = arith.constant dense<0.000000e+00> : vector<7x32xf32>
    %324 = tpu.matmul %321, %323, %cst_296 {dimension_numbers = #tpu.dot_dimension_numbers<[1], [0], [0], [1], [0, 0, 1, 1], [], []>} : vector<7x32xbf16>, vector<32x32xbf16>, vector<7x32xf32> -> vector<7x32xf32>
    %325 = arith.addf %319, %324 : vector<7x32xf32>
    %326 = vector.extract_strided_slice %289 {offsets = [6, 0], sizes = [7, 32], strides = [1, 1]} : vector<13x32xf32> to vector<7x32xf32>
    %327 = arith.truncf %326 : vector<7x32xf32> to vector<7x32xbf16>
    %c6_297 = arith.constant 6 : index
    %c0_298 = arith.constant 0 : index
    %c0_299 = arith.constant 0 : index
    %328 = vector.load %arg6[%c6_297, %c0_298, %c0_299] : memref<7x32x32xbf16, #tpu.memory_space<vmem>>, vector<1x32x32xbf16>
    %329 = vector.shape_cast %328 : vector<1x32x32xbf16> to vector<32x32xbf16>
    %cst_300 = arith.constant dense<0.000000e+00> : vector<7x32xf32>
    %330 = tpu.matmul %327, %329, %cst_300 {dimension_numbers = #tpu.dot_dimension_numbers<[1], [0], [0], [1], [0, 0, 1, 1], [], []>} : vector<7x32xbf16>, vector<32x32xbf16>, vector<7x32xf32> -> vector<7x32xf32>
    %331 = arith.addf %325, %330 : vector<7x32xf32>
    %332 = vector.broadcast %290 : vector<1x32xf32> to vector<7x32xf32>
    %333 = arith.addf %331, %332 : vector<7x32xf32>
    %cst_301 = arith.constant 0.000000e+00 : f32
    %334 = vector.broadcast %cst_301 : f32 to vector<7x32xf32>
    %335 = arith.maximumf %333, %334 : vector<7x32xf32>
    %cst_302 = arith.constant dense<0xFF800000> : vector<32xf32>
    %336 = vector.multi_reduction <maximumf>, %335, %cst_302 [0] : vector<7x32xf32> to vector<32xf32>
    %337 = vector.shape_cast %336 : vector<32xf32> to vector<1x32xf32>
    %cst_303 = arith.constant dense<0.000000e+00> : vector<32xf32>
    %338 = vector.multi_reduction <add>, %337, %cst_303 [0] : vector<1x32xf32> to vector<32xf32>
    %339 = vector.shape_cast %338 : vector<32xf32> to vector<1x32xf32>
    %cst_304 = arith.constant 1.000000e+00 : f32
    %340 = vector.broadcast %cst_304 : f32 to vector<1x32xf32>
    %341 = arith.divf %339, %340 : vector<1x32xf32>
    %c0_305 = arith.constant 0 : index
    %c0_306 = arith.constant 0 : index
    %342 = vector.load %arg8[%c0_305, %c0_306] : memref<32x128xf32, #tpu.memory_space<vmem>>, vector<32x128xf32>
    %cst_307 = arith.constant dense<0.000000e+00> : vector<1x128xf32>
    %343 = tpu.matmul %341, %342, %cst_307 {dimension_numbers = #tpu.dot_dimension_numbers<[1], [0], [0], [1], [0, 0, 1, 1], [], []>} : vector<1x32xf32>, vector<32x128xf32>, vector<1x128xf32> -> vector<1x128xf32>
    %c0_308 = arith.constant 0 : index
    %c0_309 = arith.constant 0 : index
    %344 = vector.load %arg9[%c0_308, %c0_309] : memref<1x128xf32, #tpu.memory_space<vmem>>, vector<1x128xf32>
    %345 = arith.addf %343, %344 : vector<1x128xf32>
    %c0_310 = arith.constant 0 : index
    %c0_311 = arith.constant 0 : index
    %c0_312 = arith.constant 0 : index
    %346 = vector.load %arg10[%c0_310, %c0_311, %c0_312] : memref<1x1x128xf32, #tpu.memory_space<vmem>>, vector<1x1x128xf32>
    %347 = vector.shape_cast %346 : vector<1x1x128xf32> to vector<1x128xf32>
    %348 = vector.shape_cast %345 : vector<1x128xf32> to vector<1x1x128xf32>
    tpu.vector_store %arg10[%c0_310, %c0_311, %c0_312], %348 {strides = array<i32>} : memref<1x1x128xf32, #tpu.memory_space<vmem>>, vector<1x1x128xf32>,
    return
  }
  func.func @transform_0(%arg0: i32) -> (i32, i32, i32) {
    %c0_i32 = arith.constant 0 : i32
    %c0_i32_0 = arith.constant 0 : i32
    %c0_i32_1 = arith.constant 0 : i32
    return %arg0, %c0_i32, %c0_i32_0 : i32, i32, i32
  }
  func.func @transform_1(%arg0: i32) -> (i32, i32, i32) {
    %c0_i32 = arith.constant 0 : i32
    %c0_i32_0 = arith.constant 0 : i32
    %c0_i32_1 = arith.constant 0 : i32
    %c0_i32_2 = arith.constant 0 : i32
    return %c0_i32, %c0_i32_0, %c0_i32_1 : i32, i32, i32
  }
  func.func @transform_2(%arg0: i32) -> (i32, i32) {
    %c0_i32 = arith.constant 0 : i32
    %c0_i32_0 = arith.constant 0 : i32
    %c0_i32_1 = arith.constant 0 : i32
    return %c0_i32, %c0_i32_0 : i32, i32
  }
  func.func @transform_3(%arg0: i32) -> (i32, i32, i32) {
    %c0_i32 = arith.constant 0 : i32
    %c0_i32_0 = arith.constant 0 : i32
    %c0_i32_1 = arith.constant 0 : i32
    %c0_i32_2 = arith.constant 0 : i32
    return %c0_i32, %c0_i32_0, %c0_i32_1 : i32, i32, i32
  }
  func.func @transform_4(%arg0: i32) -> (i32, i32) {
    %c0_i32 = arith.constant 0 : i32
    %c0_i32_0 = arith.constant 0 : i32
    %c0_i32_1 = arith.constant 0 : i32
    return %c0_i32, %c0_i32_0 : i32, i32
  }
  func.func @transform_5(%arg0: i32) -> (i32, i32, i32) {
    %c0_i32 = arith.constant 0 : i32
    %c0_i32_0 = arith.constant 0 : i32
    %c0_i32_1 = arith.constant 0 : i32
    %c0_i32_2 = arith.constant 0 : i32
    return %c0_i32, %c0_i32_0, %c0_i32_1 : i32, i32, i32
  }
  func.func @transform_6(%arg0: i32) -> (i32, i32) {
    %c0_i32 = arith.constant 0 : i32
    %c0_i32_0 = arith.constant 0 : i32
    %c0_i32_1 = arith.constant 0 : i32
    return %c0_i32, %c0_i32_0 : i32, i32
  }
  func.func @transform_7(%arg0: i32) -> (i32, i32) {
    %c0_i32 = arith.constant 0 : i32
    %c0_i32_0 = arith.constant 0 : i32
    %c0_i32_1 = arith.constant 0 : i32
    return %c0_i32, %c0_i32_0 : i32, i32
  }
  func.func @transform_8(%arg0: i32) -> (i32, i32) {
    %c0_i32 = arith.constant 0 : i32
    %c0_i32_0 = arith.constant 0 : i32
    %c0_i32_1 = arith.constant 0 : i32
    return %c0_i32, %c0_i32_0 : i32, i32
  }
  func.func @transform_9(%arg0: i32) -> (i32, i32, i32) {
    %c0_i32 = arith.constant 0 : i32
    %c0_i32_0 = arith.constant 0 : i32
    %c0_i32_1 = arith.constant 0 : i32
    return %arg0, %c0_i32, %c0_i32_0 : i32, i32, i32
  }
}

</mosaic_0001>

<llo_original>
// kernel: tpu_custom_call.1
$region0: #{tpu_custom_call.1}
  #allocation0 [shape = 'u32[]', space=smem, size = 0x4, offset = 0x4, fixed_abs, tag = 'smem constant byte address 0x4 - core index']
  #allocation1 [shape = 'u32[144,128]{1,0:T(1,128)}', space=vmem, size = 0x12000, scoped, tag = 'internal scratch']
  #allocation2 [shape = 'f32[112,32]{1,0:T(8,128)}', space=vmem, size = 0xe000, scoped, tag = 'scratch operand']
  %s0 = inlined_call_operand.vmem [shape: bf16[2,352,4], index: 0, kind: input, shape index: {}]
  %s1 = inlined_call_operand.vmem [shape: bf16[7,4,32], index: 1, kind: input, shape index: {}]
  %s2 = inlined_call_operand.vmem [shape: f32[1,32], index: 2, kind: input, shape index: {}]
  %s3 = inlined_call_operand.vmem [shape: bf16[7,32,32], index: 3, kind: input, shape index: {}]
  %s4 = inlined_call_operand.vmem [shape: f32[1,32], index: 4, kind: input, shape index: {}]
  %s5 = inlined_call_operand.vmem [shape: bf16[7,32,32], index: 5, kind: input, shape index: {}]
  %s6 = inlined_call_operand.vmem [shape: f32[1,32], index: 6, kind: input, shape index: {}]
  %s7 = inlined_call_operand.vmem [shape: f32[32,128], index: 7, kind: input, shape index: {}]
  %s8 = inlined_call_operand.vmem [shape: f32[1,128], index: 8, kind: input, shape index: {}]
  %s9 = inlined_call_operand.hbm [shape: f32[2,1,128], index: 9, kind: output, shape index: {}]
  %s10 = sld [smem:[#allocation0]]
  $region69: #{tpu_custom_call.1} parent=0
    _
  %s12 = ssub.s32 1, %s10
  %s13 = scalar_select 0, %s12, %s10
  $region1: #{tpu_custom_call.1} parent=0
    #allocation3 [shape = 'u8[1024]{0}', space=vmem, size = 0x400, scoped, tag = 'output window, operand 0']
    #allocation4 [shape = 's32[2]{0}', space=sflag, size = 0x8, scoped, tag = 'scoped memory for tpu_custom_call.1']
    %14 = vsyncpa [#allocation4], 0
    %s15 = scalar_lea.sflag [#allocation4], 1
    %16 = vsyncpa %s15, 0
    loop: start=0, step=1, limit=4
    $region2: #{tpu_custom_call.1} parent=1 // loop_pre_header
      _
    $region3: #{tpu_custom_call.1} parent=1 // loop_header
      %s18 = sphi 0, %s22
      %p19 = scmp.ge.s32.totalorder %s18, 4
      %s28 = sphi 0, %s30
      %s31 = sphi 0, %s28
      %s32 = sphi 0, %s31
      %s48 = sphi 0, %s32
      %s52 = sphi 0, %s52
      %s54 = sphi 0, %s52
      %s55 = sphi 0, %s54
      %s69 = sphi 0, %s55
      %s73 = sphi 0, %s73
      %s75 = sphi 0, %s73
      %s76 = sphi 0, %s75
      %s90 = sphi 0, %s76
      %s94 = sphi 0, %s94
      %s96 = sphi 0, %s94
      %s97 = sphi 0, %s96
      %s111 = sphi 0, %s97
      %s115 = sphi 0, %s115
      %s117 = sphi 0, %s115
      %s118 = sphi 0, %s117
      %s132 = sphi 0, %s118
      %s136 = sphi 0, %s136
      %s138 = sphi 0, %s136
      %s139 = sphi 0, %s138
      %s153 = sphi 0, %s139
      %s157 = sphi 0, %s157
      %s159 = sphi 0, %s157
      %s160 = sphi 0, %s159
      %s174 = sphi 0, %s160
      %s178 = sphi 0, %s178
      %s180 = sphi 0, %s178
      %s181 = sphi 0, %s180
      %s195 = sphi 0, %s181
      %s199 = sphi 0, %s199
      %s201 = sphi 0, %s199
      %s202 = sphi 0, %s201
      %s216 = sphi 0, %s202
      %s222 = sphi 0, %s224
      %s225 = sphi 0, %s222
      %s226 = sphi 0, %s225
      %s242 = sphi 0, %s226
    $region4: #{tpu_custom_call.1} parent=1 // loop_header_branch
      %21 = sbr.rel (%p19) target = $region8
    $region5: #{tpu_custom_call.1} parent=1 // loop_body
      %s23 = ssub.s32 %s18, 1
      %s24 = ssub.s32 %s18, 2
      %s25 = sadd.s32 %s18, 1
      %s26 = ssub.s32 %s18, %s25
      %p27 = scmp.eq.s32.totalorder %s26, 0
      %s29 = sadd.s32 %s28, 1
      %s30 = scalar_select %p27, %s28, %s29
      %p33 = pneg %p27
      %p34 = scmp.eq.s32.totalorder %s18, 1
      %p35 = por %p33, %p34
      %p36 = scmp.ne.s32.totalorder %s28, %s31
      %p37 = scmp.eq.s32.totalorder %s18, 0
      %p38 = por %p36, %p37
      %p39 = scmp.ne.s32.totalorder %s28, %s31
      %p40 = scmp.eq.s32.totalorder %s23, 1
      %p41 = por %p39, %p40
      %p42 = scmp.ne.s32.totalorder %s31, %s32
      %p43 = scmp.eq.s32.totalorder %s23, 0
      %p44 = por %p42, %p43
      %p45 = scmp.ne.s32.totalorder %s31, %s32
      %p46 = scmp.eq.s32.totalorder %s24, 1
      %p47 = por %p45, %p46
      %p49 = scmp.ne.s32.totalorder %s32, %s48
      %p50 = scmp.eq.s32.totalorder %s24, 0
      %p51 = por %p49, %p50
      %s53 = sadd.s32 %s52, 1
      %p56 = scmp.eq.s32.totalorder %s18, 1
      %p57 = scmp.ne.s32.totalorder %s52, %s54
      %p58 = scmp.eq.s32.totalorder %s18, 0
      %p59 = por %p57, %p58
      %p60 = scmp.ne.s32.totalorder %s52, %s54
      %p61 = scmp.eq.s32.totalorder %s23, 1
      %p62 = por %p60, %p61
      %p63 = scmp.ne.s32.totalorder %s54, %s55
      %p64 = scmp.eq.s32.totalorder %s23, 0
      %p65 = por %p63, %p64
      %p66 = scmp.ne.s32.totalorder %s54, %s55
      %p67 = scmp.eq.s32.totalorder %s24, 1
      %p68 = por %p66, %p67
      %p70 = scmp.ne.s32.totalorder %s55, %s69
      %p71 = scmp.eq.s32.totalorder %s24, 0
      %p72 = por %p70, %p71
      %s74 = sadd.s32 %s73, 1
      %p77 = scmp.eq.s32.totalorder %s18, 1
      %p78 = scmp.ne.s32.totalorder %s73, %s75
      %p79 = scmp.eq.s32.totalorder %s18, 0
      %p80 = por %p78, %p79
      %p81 = scmp.ne.s32.totalorder %s73, %s75
      %p82 = scmp.eq.s32.totalorder %s23, 1
      %p83 = por %p81, %p82
      %p84 = scmp.ne.s32.totalorder %s75, %s76
      %p85 = scmp.eq.s32.totalorder %s23, 0
      %p86 = por %p84, %p85
      %p87 = scmp.ne.s32.totalorder %s75, %s76
      %p88 = scmp.eq.s32.totalorder %s24, 1
      %p89 = por %p87, %p88
      %p91 = scmp.ne.s32.totalorder %s76, %s90
      %p92 = scmp.eq.s32.totalorder %s24, 0
      %p93 = por %p91, %p92
      %s95 = sadd.s32 %s94, 1
      %p98 = scmp.eq.s32.totalorder %s18, 1
      %p99 = scmp.ne.s32.totalorder %s94, %s96
      %p100 = scmp.eq.s32.totalorder %s18, 0
      %p101 = por %p99, %p100
      %p102 = scmp.ne.s32.totalorder %s94, %s96
      %p103 = scmp.eq.s32.totalorder %s23, 1
      %p104 = por %p102, %p103
      %p105 = scmp.ne.s32.totalorder %s96, %s97
      %p106 = scmp.eq.s32.totalorder %s23, 0
      %p107 = por %p105, %p106
      %p108 = scmp.ne.s32.totalorder %s96, %s97
      %p109 = scmp.eq.s32.totalorder %s24, 1
      %p110 = por %p108, %p109
      %p112 = scmp.ne.s32.totalorder %s97, %s111
      %p113 = scmp.eq.s32.totalorder %s24, 0
      %p114 = por %p112, %p113
      %s116 = sadd.s32 %s115, 1
      %p119 = scmp.eq.s32.totalorder %s18, 1
      %p120 = scmp.ne.s32.totalorder %s115, %s117
      %p121 = scmp.eq.s32.totalorder %s18, 0
      %p122 = por %p120, %p121
      %p123 = scmp.ne.s32.totalorder %s115, %s117
      %p124 = scmp.eq.s32.totalorder %s23, 1
      %p125 = por %p123, %p124
      %p126 = scmp.ne.s32.totalorder %s117, %s118
      %p127 = scmp.eq.s32.totalorder %s23, 0
      %p128 = por %p126, %p127
      %p129 = scmp.ne.s32.totalorder %s117, %s118
      %p130 = scmp.eq.s32.totalorder %s24, 1
      %p131 = por %p129, %p130
      %p133 = scmp.ne.s32.totalorder %s118, %s132
      %p134 = scmp.eq.s32.totalorder %s24, 0
      %p135 = por %p133, %p134
      %s137 = sadd.s32 %s136, 1
      %p140 = scmp.eq.s32.totalorder %s18, 1
      %p141 = scmp.ne.s32.totalorder %s136, %s138
      %p142 = scmp.eq.s32.totalorder %s18, 0
      %p143 = por %p141, %p142
      %p144 = scmp.ne.s32.totalorder %s136, %s138
      %p145 = scmp.eq.s32.totalorder %s23, 1
      %p146 = por %p144, %p145
      %p147 = scmp.ne.s32.totalorder %s138, %s139
      %p148 = scmp.eq.s32.totalorder %s23, 0
      %p149 = por %p147, %p148
      %p150 = scmp.ne.s32.totalorder %s138, %s139
      %p151 = scmp.eq.s32.totalorder %s24, 1
      %p152 = por %p150, %p151
      %p154 = scmp.ne.s32.totalorder %s139, %s153
      %p155 = scmp.eq.s32.totalorder %s24, 0
      %p156 = por %p154, %p155
      %s158 = sadd.s32 %s157, 1
      %p161 = scmp.eq.s32.totalorder %s18, 1
      %p162 = scmp.ne.s32.totalorder %s157, %s159
      %p163 = scmp.eq.s32.totalorder %s18, 0
      %p164 = por %p162, %p163
      %p165 = scmp.ne.s32.totalorder %s157, %s159
      %p166 = scmp.eq.s32.totalorder %s23, 1
      %p167 = por %p165, %p166
      %p168 = scmp.ne.s32.totalorder %s159, %s160
      %p169 = scmp.eq.s32.totalorder %s23, 0
      %p170 = por %p168, %p169
      %p171 = scmp.ne.s32.totalorder %s159, %s160
      %p172 = scmp.eq.s32.totalorder %s24, 1
      %p173 = por %p171, %p172
      %p175 = scmp.ne.s32.totalorder %s160, %s174
      %p176 = scmp.eq.s32.totalorder %s24, 0
      %p177 = por %p175, %p176
      %s179 = sadd.s32 %s178, 1
      %p182 = scmp.eq.s32.totalorder %s18, 1
      %p183 = scmp.ne.s32.totalorder %s178, %s180
      %p184 = scmp.eq.s32.totalorder %s18, 0
      %p185 = por %p183, %p184
      %p186 = scmp.ne.s32.totalorder %s178, %s180
      %p187 = scmp.eq.s32.totalorder %s23, 1
      %p188 = por %p186, %p187
      %p189 = scmp.ne.s32.totalorder %s180, %s181
      %p190 = scmp.eq.s32.totalorder %s23, 0
      %p191 = por %p189, %p190
      %p192 = scmp.ne.s32.totalorder %s180, %s181
      %p193 = scmp.eq.s32.totalorder %s24, 1
      %p194 = por %p192, %p193
      %p196 = scmp.ne.s32.totalorder %s181, %s195
      %p197 = scmp.eq.s32.totalorder %s24, 0
      %p198 = por %p196, %p197
      %s200 = sadd.s32 %s199, 1
      %p203 = scmp.eq.s32.totalorder %s18, 1
      %p204 = scmp.ne.s32.totalorder %s199, %s201
      %p205 = scmp.eq.s32.totalorder %s18, 0
      %p206 = por %p204, %p205
      %p207 = scmp.ne.s32.totalorder %s199, %s201
      %p208 = scmp.eq.s32.totalorder %s23, 1
      %p209 = por %p207, %p208
      %p210 = scmp.ne.s32.totalorder %s201, %s202
      %p211 = scmp.eq.s32.totalorder %s23, 0
      %p212 = por %p210, %p211
      %p213 = scmp.ne.s32.totalorder %s201, %s202
      %p214 = scmp.eq.s32.totalorder %s24, 1
      %p215 = por %p213, %p214
      %p217 = scmp.ne.s32.totalorder %s202, %s216
      %p218 = scmp.eq.s32.totalorder %s24, 0
      %p219 = por %p217, %p218
      %s220 = ssub.s32 %s18, %s25
      %p221 = scmp.eq.s32.totalorder %s220, 0
      %s223 = sadd.s32 %s222, 1
      %s224 = scalar_select %p221, %s222, %s223
      %p227 = pneg %p221
      %p228 = scmp.eq.s32.totalorder %s18, 1
      %p229 = por %p227, %p228
      %p230 = scmp.ne.s32.totalorder %s222, %s225
      %p231 = scmp.eq.s32.totalorder %s18, 0
      %p232 = por %p230, %p231
      %p233 = scmp.ne.s32.totalorder %s222, %s225
      %p234 = scmp.eq.s32.totalorder %s23, 1
      %p235 = por %p233, %p234
      %p236 = scmp.ne.s32.totalorder %s225, %s226
      %p237 = scmp.eq.s32.totalorder %s23, 0
      %p238 = por %p236, %p237
      %p239 = scmp.ne.s32.totalorder %s225, %s226
      %p240 = scmp.eq.s32.totalorder %s24, 1
      %p241 = por %p239, %p240
      %p243 = scmp.ne.s32.totalorder %s226, %s242
      %p244 = scmp.eq.s32.totalorder %s24, 0
      %p245 = por %p243, %p244
      %p246 = scmp.le.s32.totalorder 1, %s18
      %p247 = scmp.lt.s32.totalorder %s18, 3
      %p248 = pnand %p246, %p247
      %p249 = pneg %p248
      // Predicated region
      $region9: #{tpu_custom_call.1} parent=5 // pred_check
        _
      $region10: #{tpu_custom_call.1} parent=5 // pred_check_branch
        %251 = sbr.rel (%p248) target = $region12
      $region11: #{tpu_custom_call.1} parent=5 // pred_region
        %s252 = ssub.s32 %s18, 1
        // Predicated region
        $region13: #{tpu_custom_call.1} parent=11 // pred_check
          %p253 = pneg %p65
        $region14: #{tpu_custom_call.1} parent=11 // pred_check_branch
          %255 = sbr.rel (%p253) target = $region16
        $region15: #{tpu_custom_call.1} parent=11 // pred_region
          _
        $region16: #{tpu_custom_call.1} parent=11 // pred_fallthru
          _
        // Predicated region
        $region17: #{tpu_custom_call.1} parent=11 // pred_check
          %p256 = pneg %p86
        $region18: #{tpu_custom_call.1} parent=11 // pred_check_branch
          %258 = sbr.rel (%p256) target = $region20
        $region19: #{tpu_custom_call.1} parent=11 // pred_region
          _
        $region20: #{tpu_custom_call.1} parent=11 // pred_fallthru
          _
        // Predicated region
        $region21: #{tpu_custom_call.1} parent=11 // pred_check
          %p259 = pneg %p107
        $region22: #{tpu_custom_call.1} parent=11 // pred_check_branch
          %261 = sbr.rel (%p259) target = $region24
        $region23: #{tpu_custom_call.1} parent=11 // pred_region
          _
        $region24: #{tpu_custom_call.1} parent=11 // pred_fallthru
          _
        // Predicated region
        $region25: #{tpu_custom_call.1} parent=11 // pred_check
          %p262 = pneg %p128
        $region26: #{tpu_custom_call.1} parent=11 // pred_check_branch
          %264 = sbr.rel (%p262) target = $region28
        $region27: #{tpu_custom_call.1} parent=11 // pred_region
          _
        $region28: #{tpu_custom_call.1} parent=11 // pred_fallthru
          _
        // Predicated region
        $region29: #{tpu_custom_call.1} parent=11 // pred_check
          %p265 = pneg %p149
        $region30: #{tpu_custom_call.1} parent=11 // pred_check_branch
          %267 = sbr.rel (%p265) target = $region32
        $region31: #{tpu_custom_call.1} parent=11 // pred_region
          _
        $region32: #{tpu_custom_call.1} parent=11 // pred_fallthru
          _
        // Predicated region
        $region33: #{tpu_custom_call.1} parent=11 // pred_check
          %p268 = pneg %p170
        $region34: #{tpu_custom_call.1} parent=11 // pred_check_branch
          %270 = sbr.rel (%p268) target = $region36
        $region35: #{tpu_custom_call.1} parent=11 // pred_region
          _
        $region36: #{tpu_custom_call.1} parent=11 // pred_fallthru
          _
        // Predicated region
        $region37: #{tpu_custom_call.1} parent=11 // pred_check
          %p271 = pneg %p191
        $region38: #{tpu_custom_call.1} parent=11 // pred_check_branch
          %273 = sbr.rel (%p271) target = $region40
        $region39: #{tpu_custom_call.1} parent=11 // pred_region
          _
        $region40: #{tpu_custom_call.1} parent=11 // pred_fallthru
          _
        // Predicated region
        $region41: #{tpu_custom_call.1} parent=11 // pred_check
          %p274 = pneg %p212
        $region42: #{tpu_custom_call.1} parent=11 // pred_check_branch
          %276 = sbr.rel (%p274) target = $region44
        $region43: #{tpu_custom_call.1} parent=11 // pred_region
          _
        $region44: #{tpu_custom_call.1} parent=11 // pred_fallthru
          _
      $region12: #{tpu_custom_call.1} parent=5 // pred_fallthru
        _
      %p277 = scmp.lt.s32.totalorder %s18, 2
      // Predicated region
      $region45: #{tpu_custom_call.1} parent=5 // pred_check
        %p278 = pneg %p277
      $region46: #{tpu_custom_call.1} parent=5 // pred_check_branch
        %280 = sbr.rel (%p278) target = $region48
      $region47: #{tpu_custom_call.1} parent=5 // pred_region
        // Predicated region
        $region49: #{tpu_custom_call.1} parent=47 // pred_check
          %p281 = pneg %p38
        $region50: #{tpu_custom_call.1} parent=47 // pred_check_branch
          %283 = sbr.rel (%p281) target = $region52
        $region51: #{tpu_custom_call.1} parent=47 // pred_region
          %p284 = scmp.lt.s32.totalorder %s18, 1
          %s285 = scalar_select %p284, %s18, 1
          %s286 = smul.addr %s285, 44
          %s287 = smul.addr %s286, 4
          %s288 = scalar_lea.vmem %s0, %s287
        $region52: #{tpu_custom_call.1} parent=47 // pred_fallthru
          _
      $region48: #{tpu_custom_call.1} parent=5 // pred_fallthru
        _
      %p289 = scmp.le.s32.totalorder 1, %s18
      %p290 = scmp.lt.s32.totalorder %s18, 3
      %p291 = pnand %p289, %p290
      %p292 = pneg %p291
      // Predicated region
      $region53: #{tpu_custom_call.1} parent=5 // pred_check
        _
      $region54: #{tpu_custom_call.1} parent=5 // pred_check_branch
        %294 = sbr.rel (%p291) target = $region56
      $region55: #{tpu_custom_call.1} parent=5 // pred_region
        %s295 = ssub.s32 %s18, 1
        %p296 = scmp.lt.s32.totalorder %s23, 1
        %s297 = scalar_select %p296, %s23, 1
        %s298 = smul.addr %s297, 44
        %s299 = smul.addr %s298, 4
        %s300 = scalar_lea.vmem %s0, %s299
        %p301 = pneg %p44
        %p302 = pneg %p41
        %p303 = pneg %p65
        %p304 = pneg %p62
        %p305 = pneg %p86
        %p306 = pneg %p83
        %p307 = pneg %p107
        %p308 = pneg %p104
        %p309 = pneg %p128
        %p310 = pneg %p125
        %p311 = pneg %p149
        %p312 = pneg %p146
        %p313 = pneg %p170
        %p314 = pneg %p167
        %p315 = pneg %p191
        %p316 = pneg %p188
        %p317 = pneg %p212
        %p318 = pneg %p209
        %p319 = pneg %p238
        %p320 = pneg %p235
        %s321 = sand.u32 %s225, 1
        %s322 = scalar_lea.sflag [#allocation4], %s321
        %s323 = sand.u32 %s225, 1
        %s324 = scalar_lea.vmem [#allocation3], %s323
        %p325 = scmp.lt.s32.totalorder %s23, 1
        %s326 = scalar_select %p325, %s23, 1
        %s327 = smul.addr %s326, 44
        %s328 = smul.addr %s327, 4
        %s329 = scalar_lea.vmem %s0, %s328
        %v331 = vld [vmem:[%s2] sm:$0x1]
        %v332 = vld [vmem:[%s329] sm:$0xf]
        %v333 = vld [vmem:[%s329 + $0x4] sm:$0xf]
        %v334 = vld [vmem:[%s329 + $0x8] sm:$0xf]
        %v335 = vld [vmem:[%s329 + $0xc] sm:$0xf]
        %v336 = vld [vmem:[%s329 + $0x10] sm:$0xf]
        %v337 = vld [vmem:[%s329 + $0x14] sm:$0xf]
        %v338 = vld [vmem:[%s329 + $0x18] sm:$0xf]
        %v339 = vld [vmem:[%s329 + $0x1c] sm:$0xf]
        %v340 = vld [vmem:[%s329 + $0x20] sm:$0xf]
        %v341 = vld [vmem:[%s329 + $0x24] sm:$0xf]
        %v342 = vld [vmem:[%s329 + $0x28] sm:$0xf]
        %v343 = vld [vmem:[%s329 + $0x2c] sm:$0xf]
        %v344 = vld [vmem:[%s329 + $0x30] sm:$0xf]
        %v345 = vld [vmem:[%s329 + $0x34] sm:$0xf]
        %v346 = vld [vmem:[%s1] sm:$0x3]
        %v347 = vld [vmem:[%s329 + $0x38] sm:$0x1]
        %s348 = scalar_lea.vmem %s1, 2
        %v349 = vld [vmem:[%s348] sm:$0x3]
        %v365 = vunpack.c.l.b16 %v332
        %v366 = vunpack.c.l.b16 %v333
        %v367 = vunpack.c.l.b16 %v334
        %v368 = vunpack.c.l.b16 %v335
        %v369 = vunpack.c.l.b16 %v336
        %v370 = vunpack.c.l.b16 %v337
        %v371 = vunpack.c.l.b16 %v338
        %v372 = vunpack.c.l.b16 %v339
        %v373 = vunpack.c.l.b16 %v340
        %v374 = vunpack.c.l.b16 %v341
        %v375 = vunpack.c.l.b16 %v342
        %v376 = vunpack.c.l.b16 %v343
        %v377 = vunpack.c.l.b16 %v344
        %v378 = vunpack.c.l.b16 %v345
        %v379 = vunpack.c.l.b16 %v347
        %v380 = vpack.c.b16 %v366, %v365
        %v381 = vpack.c.b16 %v368, %v367
        %v382 = vpack.c.b16 %v370, %v369
        %v383 = vpack.c.b16 %v372, %v371
        %v384 = vpack.c.b16 %v374, %v373
        %v385 = vpack.c.b16 %v376, %v375
        %v386 = vpack.c.b16 %v378, %v377
        %v387 = vpack.c.b16 %v379, %v379
        %vm388 = vsmask.f32 7424
        %v390 = vshrl.u32 %v380, 16
        %v392 = vshll.u32 %v380, 16
        %v394 = vrot.slane %v392, 1
        %v395 = vor.u32 %v390, %v394
        %v397 = vshll.u32 %v381, 16
        %v399 = vrot.slane %v397, 1
        %v400 = vsel %vm388, %v395, %v399
        %v401 = vshrl.u32 %v381, 16
        %v403 = vor.u32 %v401, %v399
        %v405 = vshll.u32 %v382, 16
        %v407 = vrot.slane %v405, 1
        %v408 = vsel %vm388, %v403, %v407
        %v409 = vshrl.u32 %v382, 16
        %v411 = vor.u32 %v409, %v407
        %v413 = vshll.u32 %v383, 16
        %v415 = vrot.slane %v413, 1
        %v416 = vsel %vm388, %v411, %v415
        %v417 = vshrl.u32 %v383, 16
        %v419 = vor.u32 %v417, %v415
        %v421 = vshll.u32 %v384, 16
        %v423 = vrot.slane %v421, 1
        %v424 = vsel %vm388, %v419, %v423
        %v425 = vshrl.u32 %v384, 16
        %v427 = vor.u32 %v425, %v423
        %v429 = vshll.u32 %v385, 16
        %v431 = vrot.slane %v429, 1
        %v432 = vsel %vm388, %v427, %v431
        %v433 = vshrl.u32 %v385, 16
        %v435 = vor.u32 %v433, %v431
        %v437 = vshll.u32 %v386, 16
        %v439 = vrot.slane %v437, 1
        %v440 = vsel %vm388, %v435, %v439
        %v441 = vshrl.u32 %v386, 16
        %v443 = vor.u32 %v441, %v439
        %v445 = vshll.u32 %v387, 16
        %v447 = vrot.slane %v445, 1
        %v448 = vsel %vm388, %v443, %v447
        %vm449 = vcmask 31744
        %v451 = vsel %vm449, %v400, 0
        %v454 = vsel %vm449, %v408, 0
        %v457 = vsel %vm449, %v416, 0
        %v460 = vsel %vm449, %v424, 0
        %v463 = vsel %vm449, %v432, 0
        %v466 = vsel %vm449, %v440, 0
        %v469 = vsel %vm449, %v448, 0
        %vm471 = vcmask 1041408
        %v473 = vsel %vm471, %v349, 0
        %475 = vmatprep.subr.bf16.mxu0 0
        %476 = vmatpush1.bf16.msra.mxu0 %v473
        %477 = vmatprep.subr.bf16.mxu0 0
        %478 = vmatpush1.bf16.msra.mxu0 0
        %479 = vmatprep.subr.bf16.mxu0 0
        %480 = vmatpush1.bf16.msra.mxu0 0
        %481 = vmatprep.subr.bf16.mxu0 0
        %482 = vmatpush1.bf16.msra.mxu0 0
        %483 = vmatprep.subr.bf16.mxu0 0
        %484 = vmatpush1.bf16.msra.mxu0 0
        %485 = vmatprep.subr.bf16.mxu0 0
        %486 = vmatpush1.bf16.msra.mxu0 0
        %487 = vmatprep.subr.bf16.mxu0 0
        %488 = vmatpush1.bf16.msra.mxu0 0
        %489 = vmatprep.subr.bf16.mxu0 0
        %490 = vmatpush1.bf16.msra.mxu0 0
        %491 = vmatprep.subr.bf16.mxu0 0
        %492 = vmatpush1.bf16.msra.mxu0 0
        %493 = vmatprep.subr.bf16.mxu0 0
        %494 = vmatpush1.bf16.msra.mxu0 0
        %495 = vmatprep.subr.bf16.mxu0 0
        %496 = vmatpush1.bf16.msra.mxu0 0
        %497 = vmatprep.subr.bf16.mxu0 0
        %498 = vmatpush1.bf16.msra.mxu0 0
        %499 = vmatprep.subr.bf16.mxu0 0
        %500 = vmatpush1.bf16.msra.mxu0 0
        %501 = vmatprep.subr.bf16.mxu0 0
        %502 = vmatpush1.bf16.msra.mxu0 0
        %503 = vmatprep.subr.bf16.mxu0 0
        %504 = vmatpush1.bf16.msra.mxu0 0
        %505 = vmatprep.subr.bf16.mxu0 0
        %506 = vmatpush1.bf16.msra.mxu0 0
        %507 = vmatprep.mubr.bf16.mxu0 0
        %508 = vmatmul.mubr.bf16.gmra.mrb[0].mxu0 %v451
        %v509 = vpop.f32.mrb[0].mxu0
        %v510 = vadd.f32 0.0, %v509
        %v511 = vpop.f32.mrb[0].mxu0
        %v512 = vpop.f32.mrb[0].mxu0
        %v513 = vadd.f32 0.0, %v512
        %v514 = vpop.f32.mrb[0].mxu0
        %515 = vmatprep.mubr.bf16.mxu0 0
        %516 = vmatmul.mubr.bf16.gmra.mrb[0].mxu0 %v454
        %v517 = vpop.f32.mrb[0].mxu0
        %v518 = vadd.f32 0.0, %v517
        %v519 = vpop.f32.mrb[0].mxu0
        %v520 = vpop.f32.mrb[0].mxu0
        %v521 = vadd.f32 0.0, %v520
        %v522 = vpop.f32.mrb[0].mxu0
        %523 = vmatprep.mubr.bf16.mxu0 0
        %524 = vmatmul.mubr.bf16.gmra.mrb[0].mxu0 %v457
        %v525 = vpop.f32.mrb[0].mxu0
        %v526 = vadd.f32 0.0, %v525
        %v527 = vpop.f32.mrb[0].mxu0
        %v528 = vpop.f32.mrb[0].mxu0
        %v529 = vadd.f32 0.0, %v528
        %v530 = vpop.f32.mrb[0].mxu0
        %531 = vmatprep.mubr.bf16.mxu0 0
        %532 = vmatmul.mubr.bf16.gmra.mrb[0].mxu0 %v460
        %v533 = vpop.f32.mrb[0].mxu0
        %v534 = vadd.f32 0.0, %v533
        %v535 = vpop.f32.mrb[0].mxu0
        %v536 = vpop.f32.mrb[0].mxu0
        %v537 = vadd.f32 0.0, %v536
        %v538 = vpop.f32.mrb[0].mxu0
        %539 = vmatprep.mubr.bf16.mxu0 0
        %540 = vmatmul.mubr.bf16.gmra.mrb[0].mxu0 %v463
        %v541 = vpop.f32.mrb[0].mxu0
        %v542 = vadd.f32 0.0, %v541
        %v543 = vpop.f32.mrb[0].mxu0
        %v544 = vpop.f32.mrb[0].mxu0
        %v545 = vadd.f32 0.0, %v544
        %v546 = vpop.f32.mrb[0].mxu0
        %547 = vmatprep.mubr.bf16.mxu0 0
        %548 = vmatmul.mubr.bf16.gmra.mrb[0].mxu0 %v466
        %v549 = vpop.f32.mrb[0].mxu0
        %v550 = vadd.f32 0.0, %v549
        %v551 = vpop.f32.mrb[0].mxu0
        %v552 = vpop.f32.mrb[0].mxu0
        %v553 = vadd.f32 0.0, %v552
        %v554 = vpop.f32.mrb[0].mxu0
        %555 = vmatprep.mubr.bf16.mxu0 0
        %556 = vmatmul.mubr.bf16.gmra.mrb[0].mxu0 %v469
        %v557 = vpop.f32.mrb[0].mxu0
        %v558 = vadd.f32 0.0, %v557
        %v559 = vpop.f32.mrb[0].mxu0
        %v560 = vpop.f32.mrb[0].mxu0
        %v561 = vadd.f32 0.0, %v560
        %v562 = vpop.f32.mrb[0].mxu0
        %563 = vdwg.mxu0
        %v564 = vsel %vm449, %v380, 0
        %v566 = vsel %vm449, %v381, 0
        %v568 = vsel %vm449, %v382, 0
        %v570 = vsel %vm449, %v383, 0
        %v572 = vsel %vm449, %v384, 0
        %v574 = vsel %vm449, %v385, 0
        %v576 = vsel %vm449, %v386, 0
        %v579 = vsel %vm471, %v346, 0
        %581 = vmatprep.subr.bf16.mxu0 0
        %582 = vmatpush1.bf16.msra.mxu0 %v579
        %583 = vmatprep.subr.bf16.mxu0 0
        %584 = vmatpush1.bf16.msra.mxu0 0
        %585 = vmatprep.subr.bf16.mxu0 0
        %586 = vmatpush1.bf16.msra.mxu0 0
        %587 = vmatprep.subr.bf16.mxu0 0
        %588 = vmatpush1.bf16.msra.mxu0 0
        %589 = vmatprep.subr.bf16.mxu0 0
        %590 = vmatpush1.bf16.msra.mxu0 0
        %591 = vmatprep.subr.bf16.mxu0 0
        %592 = vmatpush1.bf16.msra.mxu0 0
        %593 = vmatprep.subr.bf16.mxu0 0
        %594 = vmatpush1.bf16.msra.mxu0 0
        %595 = vmatprep.subr.bf16.mxu0 0
        %596 = vmatpush1.bf16.msra.mxu0 0
        %597 = vmatprep.subr.bf16.mxu0 0
        %598 = vmatpush1.bf16.msra.mxu0 0
        %599 = vmatprep.subr.bf16.mxu0 0
        %600 = vmatpush1.bf16.msra.mxu0 0
        %601 = vmatprep.subr.bf16.mxu0 0
        %602 = vmatpush1.bf16.msra.mxu0 0
        %603 = vmatprep.subr.bf16.mxu0 0
        %604 = vmatpush1.bf16.msra.mxu0 0
        %605 = vmatprep.subr.bf16.mxu0 0
        %606 = vmatpush1.bf16.msra.mxu0 0
        %607 = vmatprep.subr.bf16.mxu0 0
        %608 = vmatpush1.bf16.msra.mxu0 0
        %609 = vmatprep.subr.bf16.mxu0 0
        %610 = vmatpush1.bf16.msra.mxu0 0
        %611 = vmatprep.subr.bf16.mxu0 0
        %612 = vmatpush1.bf16.msra.mxu0 0
        %613 = vmatprep.mubr.bf16.mxu0 0
        %614 = vmatmul.mubr.bf16.gmra.mrb[0].mxu0 %v564
        %v615 = vpop.f32.mrb[0].mxu0
        %v616 = vadd.f32 %v510, %v615
        %v617 = vpop.f32.mrb[0].mxu0
        %v618 = vpop.f32.mrb[0].mxu0
        %v619 = vadd.f32 %v513, %v618
        %v620 = vpop.f32.mrb[0].mxu0
        %621 = vmatprep.mubr.bf16.mxu0 0
        %622 = vmatmul.mubr.bf16.gmra.mrb[0].mxu0 %v566
        %v623 = vpop.f32.mrb[0].mxu0
        %v624 = vadd.f32 %v518, %v623
        %v625 = vpop.f32.mrb[0].mxu0
        %v626 = vpop.f32.mrb[0].mxu0
        %v627 = vadd.f32 %v521, %v626
        %v628 = vpop.f32.mrb[0].mxu0
        %629 = vmatprep.mubr.bf16.mxu0 0
        %630 = vmatmul.mubr.bf16.gmra.mrb[0].mxu0 %v568
        %v631 = vpop.f32.mrb[0].mxu0
        %v632 = vadd.f32 %v526, %v631
        %v633 = vpop.f32.mrb[0].mxu0
        %v634 = vpop.f32.mrb[0].mxu0
        %v635 = vadd.f32 %v529, %v634
        %v636 = vpop.f32.mrb[0].mxu0
        %637 = vmatprep.mubr.bf16.mxu0 0
        %638 = vmatmul.mubr.bf16.gmra.mrb[0].mxu0 %v570
        %v639 = vpop.f32.mrb[0].mxu0
        %v640 = vadd.f32 %v534, %v639
        %v641 = vpop.f32.mrb[0].mxu0
        %v642 = vpop.f32.mrb[0].mxu0
        %v643 = vadd.f32 %v537, %v642
        %v644 = vpop.f32.mrb[0].mxu0
        %645 = vmatprep.mubr.bf16.mxu0 0
        %646 = vmatmul.mubr.bf16.gmra.mrb[0].mxu0 %v572
        %v647 = vpop.f32.mrb[0].mxu0
        %v648 = vadd.f32 %v542, %v647
        %v649 = vpop.f32.mrb[0].mxu0
        %v650 = vpop.f32.mrb[0].mxu0
        %v651 = vadd.f32 %v545, %v650
        %v652 = vpop.f32.mrb[0].mxu0
        %653 = vmatprep.mubr.bf16.mxu0 0
        %654 = vmatmul.mubr.bf16.gmra.mrb[0].mxu0 %v574
        %v655 = vpop.f32.mrb[0].mxu0
        %v656 = vadd.f32 %v550, %v655
        %v657 = vpop.f32.mrb[0].mxu0
        %v658 = vpop.f32.mrb[0].mxu0
        %v659 = vadd.f32 %v553, %v658
        %v660 = vpop.f32.mrb[0].mxu0
        %661 = vmatprep.mubr.bf16.mxu0 0
        %662 = vmatmul.mubr.bf16.gmra.mrb[0].mxu0 %v576
        %v663 = vpop.f32.mrb[0].mxu0
        %v664 = vadd.f32 %v558, %v663
        %v665 = vpop.f32.mrb[0].mxu0
        %v666 = vpop.f32.mrb[0].mxu0
        %v667 = vadd.f32 %v561, %v666
        %v668 = vpop.f32.mrb[0].mxu0
        %669 = vdwg.mxu0
        %v670 = vld [vmem:[%s329] sm:$0xe]
        %s671 = scalar_lea.vmem %s1, 4
        %v672 = vld [vmem:[%s671] sm:$0x3]
        %v674 = vunpack.c.l.b16 %v670
        %v675 = vpack.c.b16 %v366, %v674
        %vm676 = vcmask 1046528
        %v677 = vrot.slane %v675, 1
        %v678 = vrot.slane %v381, 1
        %v679 = vsel %vm676, %v677, %v678
        %v680 = vrot.slane %v382, 1
        %v681 = vsel %vm676, %v678, %v680
        %v682 = vrot.slane %v383, 1
        %v683 = vsel %vm676, %v680, %v682
        %v684 = vrot.slane %v384, 1
        %v685 = vsel %vm676, %v682, %v684
        %v686 = vrot.slane %v385, 1
        %v687 = vsel %vm676, %v684, %v686
        %v688 = vrot.slane %v386, 1
        %v689 = vsel %vm676, %v686, %v688
        %v690 = vrot.slane %v387, 1
        %v691 = vsel %vm676, %v688, %v690
        %v693 = vsel %vm449, %v679, 0
        %v696 = vsel %vm449, %v681, 0
        %v699 = vsel %vm449, %v683, 0
        %v702 = vsel %vm449, %v685, 0
        %v705 = vsel %vm449, %v687, 0
        %v708 = vsel %vm449, %v689, 0
        %v711 = vsel %vm449, %v691, 0
        %v714 = vsel %vm471, %v672, 0
        %716 = vmatprep.subr.bf16.mxu0 0
        %717 = vmatpush1.bf16.msra.mxu0 %v714
        %718 = vmatprep.subr.bf16.mxu0 0
        %719 = vmatpush1.bf16.msra.mxu0 0
        %720 = vmatprep.subr.bf16.mxu0 0
        %721 = vmatpush1.bf16.msra.mxu0 0
        %722 = vmatprep.subr.bf16.mxu0 0
        %723 = vmatpush1.bf16.msra.mxu0 0
        %724 = vmatprep.subr.bf16.mxu0 0
        %725 = vmatpush1.bf16.msra.mxu0 0
        %726 = vmatprep.subr.bf16.mxu0 0
        %727 = vmatpush1.bf16.msra.mxu0 0
        %728 = vmatprep.subr.bf16.mxu0 0
        %729 = vmatpush1.bf16.msra.mxu0 0
        %730 = vmatprep.subr.bf16.mxu0 0
        %731 = vmatpush1.bf16.msra.mxu0 0
        %732 = vmatprep.subr.bf16.mxu0 0
        %733 = vmatpush1.bf16.msra.mxu0 0
        %734 = vmatprep.subr.bf16.mxu0 0
        %735 = vmatpush1.bf16.msra.mxu0 0
        %736 = vmatprep.subr.bf16.mxu0 0
        %737 = vmatpush1.bf16.msra.mxu0 0
        %738 = vmatprep.subr.bf16.mxu0 0
        %739 = vmatpush1.bf16.msra.mxu0 0
        %740 = vmatprep.subr.bf16.mxu0 0
        %741 = vmatpush1.bf16.msra.mxu0 0
        %742 = vmatprep.subr.bf16.mxu0 0
        %743 = vmatpush1.bf16.msra.mxu0 0
        %744 = vmatprep.subr.bf16.mxu0 0
        %745 = vmatpush1.bf16.msra.mxu0 0
        %746 = vmatprep.subr.bf16.mxu0 0
        %747 = vmatpush1.bf16.msra.mxu0 0
        %748 = vmatprep.mubr.bf16.mxu0 0
        %749 = vmatmul.mubr.bf16.gmra.mrb[0].mxu0 %v693
        %v750 = vpop.f32.mrb[0].mxu0
        %v751 = vadd.f32 0.0, %v750
        %v752 = vpop.f32.mrb[0].mxu0
        %v753 = vpop.f32.mrb[0].mxu0
        %v754 = vadd.f32 0.0, %v753
        %v755 = vpop.f32.mrb[0].mxu0
        %756 = vmatprep.mubr.bf16.mxu0 0
        %757 = vmatmul.mubr.bf16.gmra.mrb[0].mxu0 %v696
        %v758 = vpop.f32.mrb[0].mxu0
        %v759 = vadd.f32 0.0, %v758
        %v760 = vpop.f32.mrb[0].mxu0
        %v761 = vpop.f32.mrb[0].mxu0
        %v762 = vadd.f32 0.0, %v761
        %v763 = vpop.f32.mrb[0].mxu0
        %764 = vmatprep.mubr.bf16.mxu0 0
        %765 = vmatmul.mubr.bf16.gmra.mrb[0].mxu0 %v699
        %v766 = vpop.f32.mrb[0].mxu0
        %v767 = vadd.f32 0.0, %v766
        %v768 = vpop.f32.mrb[0].mxu0
        %v769 = vpop.f32.mrb[0].mxu0
        %v770 = vadd.f32 0.0, %v769
        %v771 = vpop.f32.mrb[0].mxu0
        %772 = vmatprep.mubr.bf16.mxu0 0
        %773 = vmatmul.mubr.bf16.gmra.mrb[0].mxu0 %v702
        %v774 = vpop.f32.mrb[0].mxu0
        %v775 = vadd.f32 0.0, %v774
        %v776 = vpop.f32.mrb[0].mxu0
        %v777 = vpop.f32.mrb[0].mxu0
        %v778 = vadd.f32 0.0, %v777
        %v779 = vpop.f32.mrb[0].mxu0
        %780 = vmatprep.mubr.bf16.mxu0 0
        %781 = vmatmul.mubr.bf16.gmra.mrb[0].mxu0 %v705
        %v782 = vpop.f32.mrb[0].mxu0
        %v783 = vadd.f32 0.0, %v782
        %v784 = vpop.f32.mrb[0].mxu0
        %v785 = vpop.f32.mrb[0].mxu0
        %v786 = vadd.f32 0.0, %v785
        %v787 = vpop.f32.mrb[0].mxu0
        %788 = vmatprep.mubr.bf16.mxu0 0
        %789 = vmatmul.mubr.bf16.gmra.mrb[0].mxu0 %v708
        %v790 = vpop.f32.mrb[0].mxu0
        %v791 = vadd.f32 0.0, %v790
        %v792 = vpop.f32.mrb[0].mxu0
        %v793 = vpop.f32.mrb[0].mxu0
        %v794 = vadd.f32 0.0, %v793
        %v795 = vpop.f32.mrb[0].mxu0
        %796 = vmatprep.mubr.bf16.mxu0 0
        %797 = vmatmul.mubr.bf16.gmra.mrb[0].mxu0 %v711
        %v798 = vpop.f32.mrb[0].mxu0
        %v799 = vadd.f32 0.0, %v798
        %v800 = vpop.f32.mrb[0].mxu0
        %v801 = vpop.f32.mrb[0].mxu0
        %v802 = vadd.f32 0.0, %v801
        %v803 = vpop.f32.mrb[0].mxu0
        %804 = vdwg.mxu0
        %v805 = vadd.f32 %v616, %v751
        %v806 = vadd.f32 %v619, %v754
        %v807 = vadd.f32 %v624, %v759
        %v808 = vadd.f32 %v627, %v762
        %v809 = vadd.f32 %v632, %v767
        %v810 = vadd.f32 %v635, %v770
        %v811 = vadd.f32 %v640, %v775
        %v812 = vadd.f32 %v643, %v778
        %v813 = vadd.f32 %v648, %v783
        %v814 = vadd.f32 %v651, %v786
        %v815 = vadd.f32 %v656, %v791
        %v816 = vadd.f32 %v659, %v794
        %v817 = vadd.f32 %v664, %v799
        %v818 = vadd.f32 %v667, %v802
        %v819 = vld [vmem:[%s329 + $0x38] sm:$0x3]
        %s820 = scalar_lea.vmem %s1, 6
        %v821 = vld [vmem:[%s820] sm:$0x3]
        %v823 = vunpack.c.l.b16 %v819
        %v824 = vpack.c.b16 %v823, %v823
        %vm825 = vsmask.f32 6400
        %v827 = vshrl.u32 %v675, 16
        %v829 = vrot.slane %v827, 1
        %v830 = vshll.u32 %v675, 16
        %v832 = vrot.slane %v830, 2
        %v833 = vor.u32 %v829, %v832
        %v834 = vrot.slane %v401, 1
        %v835 = vrot.slane %v397, 2
        %v836 = vor.u32 %v834, %v835
        %v837 = vsel %vm825, %v833, %v836
        %v838 = vrot.slane %v409, 1
        %v839 = vrot.slane %v405, 2
        %v840 = vor.u32 %v838, %v839
        %v841 = vsel %vm825, %v836, %v840
        %v842 = vrot.slane %v417, 1
        %v843 = vrot.slane %v413, 2
        %v844 = vor.u32 %v842, %v843
        %v845 = vsel %vm825, %v840, %v844
        %v846 = vrot.slane %v425, 1
        %v847 = vrot.slane %v421, 2
        %v848 = vor.u32 %v846, %v847
        %v849 = vsel %vm825, %v844, %v848
        %v850 = vrot.slane %v433, 1
        %v851 = vrot.slane %v429, 2
        %v852 = vor.u32 %v850, %v851
        %v853 = vsel %vm825, %v848, %v852
        %v854 = vrot.slane %v441, 1
        %v855 = vrot.slane %v437, 2
        %v856 = vor.u32 %v854, %v855
        %v857 = vsel %vm825, %v852, %v856
        %v859 = vshrl.u32 %v824, 16
        %v861 = vrot.slane %v859, 1
        %v862 = vshll.u32 %v824, 16
        %v864 = vrot.slane %v862, 2
        %v865 = vor.u32 %v861, %v864
        %v866 = vsel %vm825, %v856, %v865
        %v868 = vsel %vm449, %v837, 0
        %v871 = vsel %vm449, %v841, 0
        %v874 = vsel %vm449, %v845, 0
        %v877 = vsel %vm449, %v849, 0
        %v880 = vsel %vm449, %v853, 0
        %v883 = vsel %vm449, %v857, 0
        %v886 = vsel %vm449, %v866, 0
        %v889 = vsel %vm471, %v821, 0
        %891 = vmatprep.subr.bf16.mxu0 0
        %892 = vmatpush1.bf16.msra.mxu0 %v889
        %893 = vmatprep.subr.bf16.mxu0 0
        %894 = vmatpush1.bf16.msra.mxu0 0
        %895 = vmatprep.subr.bf16.mxu0 0
        %896 = vmatpush1.bf16.msra.mxu0 0
        %897 = vmatprep.subr.bf16.mxu0 0
        %898 = vmatpush1.bf16.msra.mxu0 0
        %899 = vmatprep.subr.bf16.mxu0 0
        %900 = vmatpush1.bf16.msra.mxu0 0
        %901 = vmatprep.subr.bf16.mxu0 0
        %902 = vmatpush1.bf16.msra.mxu0 0
        %903 = vmatprep.subr.bf16.mxu0 0
        %904 = vmatpush1.bf16.msra.mxu0 0
        %905 = vmatprep.subr.bf16.mxu0 0
        %906 = vmatpush1.bf16.msra.mxu0 0
        %907 = vmatprep.subr.bf16.mxu0 0
        %908 = vmatpush1.bf16.msra.mxu0 0
        %909 = vmatprep.subr.bf16.mxu0 0
        %910 = vmatpush1.bf16.msra.mxu0 0
        %911 = vmatprep.subr.bf16.mxu0 0
        %912 = vmatpush1.bf16.msra.mxu0 0
        %913 = vmatprep.subr.bf16.mxu0 0
        %914 = vmatpush1.bf16.msra.mxu0 0
        %915 = vmatprep.subr.bf16.mxu0 0
        %916 = vmatpush1.bf16.msra.mxu0 0
        %917 = vmatprep.subr.bf16.mxu0 0
        %918 = vmatpush1.bf16.msra.mxu0 0
        %919 = vmatprep.subr.bf16.mxu0 0
        %920 = vmatpush1.bf16.msra.mxu0 0
        %921 = vmatprep.subr.bf16.mxu0 0
        %922 = vmatpush1.bf16.msra.mxu0 0
        %923 = vmatprep.mubr.bf16.mxu0 0
        %924 = vmatmul.mubr.bf16.gmra.mrb[0].mxu0 %v868
        %v925 = vpop.f32.mrb[0].mxu0
        %v926 = vadd.f32 0.0, %v925
        %v927 = vpop.f32.mrb[0].mxu0
        %v928 = vpop.f32.mrb[0].mxu0
        %v929 = vadd.f32 0.0, %v928
        %v930 = vpop.f32.mrb[0].mxu0
        %931 = vmatprep.mubr.bf16.mxu0 0
        %932 = vmatmul.mubr.bf16.gmra.mrb[0].mxu0 %v871
        %v933 = vpop.f32.mrb[0].mxu0
        %v934 = vadd.f32 0.0, %v933
        %v935 = vpop.f32.mrb[0].mxu0
        %v936 = vpop.f32.mrb[0].mxu0
        %v937 = vadd.f32 0.0, %v936
        %v938 = vpop.f32.mrb[0].mxu0
        %939 = vmatprep.mubr.bf16.mxu0 0
        %940 = vmatmul.mubr.bf16.gmra.mrb[0].mxu0 %v874
        %v941 = vpop.f32.mrb[0].mxu0
        %v942 = vadd.f32 0.0, %v941
        %v943 = vpop.f32.mrb[0].mxu0
        %v944 = vpop.f32.mrb[0].mxu0
        %v945 = vadd.f32 0.0, %v944
        %v946 = vpop.f32.mrb[0].mxu0
        %947 = vmatprep.mubr.bf16.mxu0 0
        %948 = vmatmul.mubr.bf16.gmra.mrb[0].mxu0 %v877
        %v949 = vpop.f32.mrb[0].mxu0
        %v950 = vadd.f32 0.0, %v949
        %v951 = vpop.f32.mrb[0].mxu0
        %v952 = vpop.f32.mrb[0].mxu0
        %v953 = vadd.f32 0.0, %v952
        %v954 = vpop.f32.mrb[0].mxu0
        %955 = vmatprep.mubr.bf16.mxu0 0
        %956 = vmatmul.mubr.bf16.gmra.mrb[0].mxu0 %v880
        %v957 = vpop.f32.mrb[0].mxu0
        %v958 = vadd.f32 0.0, %v957
        %v959 = vpop.f32.mrb[0].mxu0
        %v960 = vpop.f32.mrb[0].mxu0
        %v961 = vadd.f32 0.0, %v960
        %v962 = vpop.f32.mrb[0].mxu0
        %963 = vmatprep.mubr.bf16.mxu0 0
        %964 = vmatmul.mubr.bf16.gmra.mrb[0].mxu0 %v883
        %v965 = vpop.f32.mrb[0].mxu0
        %v966 = vadd.f32 0.0, %v965
        %v967 = vpop.f32.mrb[0].mxu0
        %v968 = vpop.f32.mrb[0].mxu0
        %v969 = vadd.f32 0.0, %v968
        %v970 = vpop.f32.mrb[0].mxu0
        %971 = vmatprep.mubr.bf16.mxu0 0
        %972 = vmatmul.mubr.bf16.gmra.mrb[0].mxu0 %v886
        %v973 = vpop.f32.mrb[0].mxu0
        %v974 = vadd.f32 0.0, %v973
        %v975 = vpop.f32.mrb[0].mxu0
        %v976 = vpop.f32.mrb[0].mxu0
        %v977 = vadd.f32 0.0, %v976
        %v978 = vpop.f32.mrb[0].mxu0
        %979 = vdwg.mxu0
        %v980 = vadd.f32 %v805, %v926
        %v981 = vadd.f32 %v806, %v929
        %v982 = vadd.f32 %v807, %v934
        %v983 = vadd.f32 %v808, %v937
        %v984 = vadd.f32 %v809, %v942
        %v985 = vadd.f32 %v810, %v945
        %v986 = vadd.f32 %v811, %v950
        %v987 = vadd.f32 %v812, %v953
        %v988 = vadd.f32 %v813, %v958
        %v989 = vadd.f32 %v814, %v961
        %v990 = vadd.f32 %v815, %v966
        %v991 = vadd.f32 %v816, %v969
        %v992 = vadd.f32 %v817, %v974
        %v993 = vadd.f32 %v818, %v977
        %v994 = vld [vmem:[%s329] sm:$0xc]
        %s995 = scalar_lea.vmem %s1, 8
        %v996 = vld [vmem:[%s995] sm:$0x3]
        %v998 = vunpack.c.l.b16 %v994
        %v999 = vpack.c.b16 %v366, %v998
        %vm1000 = vcmask 1045504
        %v1001 = vrot.slane %v999, 2
        %v1002 = vrot.slane %v381, 2
        %v1003 = vsel %vm1000, %v1001, %v1002
        %v1004 = vrot.slane %v382, 2
        %v1005 = vsel %vm1000, %v1002, %v1004
        %v1006 = vrot.slane %v383, 2
        %v1007 = vsel %vm1000, %v1004, %v1006
        %v1008 = vrot.slane %v384, 2
        %v1009 = vsel %vm1000, %v1006, %v1008
        %v1010 = vrot.slane %v385, 2
        %v1011 = vsel %vm1000, %v1008, %v1010
        %v1012 = vrot.slane %v386, 2
        %v1013 = vsel %vm1000, %v1010, %v1012
        %v1014 = vrot.slane %v824, 2
        %v1015 = vsel %vm1000, %v1012, %v1014
        %v1017 = vsel %vm449, %v1003, 0
        %v1020 = vsel %vm449, %v1005, 0
        %v1023 = vsel %vm449, %v1007, 0
        %v1026 = vsel %vm449, %v1009, 0
        %v1029 = vsel %vm449, %v1011, 0
        %v1032 = vsel %vm449, %v1013, 0
        %v1035 = vsel %vm449, %v1015, 0
        %v1038 = vsel %vm471, %v996, 0
        %1040 = vmatprep.subr.bf16.mxu0 0
        %1041 = vmatpush1.bf16.msra.mxu0 %v1038
        %1042 = vmatprep.subr.bf16.mxu0 0
        %1043 = vmatpush1.bf16.msra.mxu0 0
        %1044 = vmatprep.subr.bf16.mxu0 0
        %1045 = vmatpush1.bf16.msra.mxu0 0
        %1046 = vmatprep.subr.bf16.mxu0 0
        %1047 = vmatpush1.bf16.msra.mxu0 0
        %1048 = vmatprep.subr.bf16.mxu0 0
        %1049 = vmatpush1.bf16.msra.mxu0 0
        %1050 = vmatprep.subr.bf16.mxu0 0
        %1051 = vmatpush1.bf16.msra.mxu0 0
        %1052 = vmatprep.subr.bf16.mxu0 0
        %1053 = vmatpush1.bf16.msra.mxu0 0
        %1054 = vmatprep.subr.bf16.mxu0 0
        %1055 = vmatpush1.bf16.msra.mxu0 0
        %1056 = vmatprep.subr.bf16.mxu0 0
        %1057 = vmatpush1.bf16.msra.mxu0 0
        %1058 = vmatprep.subr.bf16.mxu0 0
        %1059 = vmatpush1.bf16.msra.mxu0 0
        %1060 = vmatprep.subr.bf16.mxu0 0
        %1061 = vmatpush1.bf16.msra.mxu0 0
        %1062 = vmatprep.subr.bf16.mxu0 0
        %1063 = vmatpush1.bf16.msra.mxu0 0
        %1064 = vmatprep.subr.bf16.mxu0 0
        %1065 = vmatpush1.bf16.msra.mxu0 0
        %1066 = vmatprep.subr.bf16.mxu0 0
        %1067 = vmatpush1.bf16.msra.mxu0 0
        %1068 = vmatprep.subr.bf16.mxu0 0
        %1069 = vmatpush1.bf16.msra.mxu0 0
        %1070 = vmatprep.subr.bf16.mxu0 0
        %1071 = vmatpush1.bf16.msra.mxu0 0
        %1072 = vmatprep.mubr.bf16.mxu0 0
        %1073 = vmatmul.mubr.bf16.gmra.mrb[0].mxu0 %v1017
        %v1074 = vpop.f32.mrb[0].mxu0
        %v1075 = vadd.f32 0.0, %v1074
        %v1076 = vpop.f32.mrb[0].mxu0
        %v1077 = vpop.f32.mrb[0].mxu0
        %v1078 = vadd.f32 0.0, %v1077
        %v1079 = vpop.f32.mrb[0].mxu0
        %1080 = vmatprep.mubr.bf16.mxu0 0
        %1081 = vmatmul.mubr.bf16.gmra.mrb[0].mxu0 %v1020
        %v1082 = vpop.f32.mrb[0].mxu0
        %v1083 = vadd.f32 0.0, %v1082
        %v1084 = vpop.f32.mrb[0].mxu0
        %v1085 = vpop.f32.mrb[0].mxu0
        %v1086 = vadd.f32 0.0, %v1085
        %v1087 = vpop.f32.mrb[0].mxu0
        %1088 = vmatprep.mubr.bf16.mxu0 0
        %1089 = vmatmul.mubr.bf16.gmra.mrb[0].mxu0 %v1023
        %v1090 = vpop.f32.mrb[0].mxu0
        %v1091 = vadd.f32 0.0, %v1090
        %v1092 = vpop.f32.mrb[0].mxu0
        %v1093 = vpop.f32.mrb[0].mxu0
        %v1094 = vadd.f32 0.0, %v1093
        %v1095 = vpop.f32.mrb[0].mxu0
        %1096 = vmatprep.mubr.bf16.mxu0 0
        %1097 = vmatmul.mubr.bf16.gmra.mrb[0].mxu0 %v1026
        %v1098 = vpop.f32.mrb[0].mxu0
        %v1099 = vadd.f32 0.0, %v1098
        %v1100 = vpop.f32.mrb[0].mxu0
        %v1101 = vpop.f32.mrb[0].mxu0
        %v1102 = vadd.f32 0.0, %v1101
        %v1103 = vpop.f32.mrb[0].mxu0
        %1104 = vmatprep.mubr.bf16.mxu0 0
        %1105 = vmatmul.mubr.bf16.gmra.mrb[0].mxu0 %v1029
        %v1106 = vpop.f32.mrb[0].mxu0
        %v1107 = vadd.f32 0.0, %v1106
        %v1108 = vpop.f32.mrb[0].mxu0
        %v1109 = vpop.f32.mrb[0].mxu0
        %v1110 = vadd.f32 0.0, %v1109
        %v1111 = vpop.f32.mrb[0].mxu0
        %1112 = vmatprep.mubr.bf16.mxu0 0
        %1113 = vmatmul.mubr.bf16.gmra.mrb[0].mxu0 %v1032
        %v1114 = vpop.f32.mrb[0].mxu0
        %v1115 = vadd.f32 0.0, %v1114
        %v1116 = vpop.f32.mrb[0].mxu0
        %v1117 = vpop.f32.mrb[0].mxu0
        %v1118 = vadd.f32 0.0, %v1117
        %v1119 = vpop.f32.mrb[0].mxu0
        %1120 = vmatprep.mubr.bf16.mxu0 0
        %1121 = vmatmul.mubr.bf16.gmra.mrb[0].mxu0 %v1035
        %v1122 = vpop.f32.mrb[0].mxu0
        %v1123 = vadd.f32 0.0, %v1122
        %v1124 = vpop.f32.mrb[0].mxu0
        %v1125 = vpop.f32.mrb[0].mxu0
        %v1126 = vadd.f32 0.0, %v1125
        %v1127 = vpop.f32.mrb[0].mxu0
        %1128 = vdwg.mxu0
        %v1129 = vadd.f32 %v980, %v1075
        %v1130 = vadd.f32 %v981, %v1078
        %v1131 = vadd.f32 %v982, %v1083
        %v1132 = vadd.f32 %v983, %v1086
        %v1133 = vadd.f32 %v984, %v1091
        %v1134 = vadd.f32 %v985, %v1094
        %v1135 = vadd.f32 %v986, %v1099
        %v1136 = vadd.f32 %v987, %v1102
        %v1137 = vadd.f32 %v988, %v1107
        %v1138 = vadd.f32 %v989, %v1110
        %v1139 = vadd.f32 %v990, %v1115
        %v1140 = vadd.f32 %v991, %v1118
        %v1141 = vadd.f32 %v992, %v1123
        %v1142 = vadd.f32 %v993, %v1126
        %v1143 = vld [vmem:[%s329 + $0x38] sm:$0x7]
        %s1144 = scalar_lea.vmem %s1, 10
        %v1145 = vld [vmem:[%s1144] sm:$0x3]
        %v1147 = vunpack.c.l.b16 %v1143
        %v1148 = vpack.c.b16 %v1147, %v1147
        %vm1149 = vsmask.f32 5376
        %v1151 = vshrl.u32 %v999, 16
        %v1153 = vrot.slane %v1151, 2
        %v1154 = vshll.u32 %v999, 16
        %v1156 = vrot.slane %v1154, 3
        %v1157 = vor.u32 %v1153, %v1156
        %v1158 = vrot.slane %v401, 2
        %v1159 = vrot.slane %v397, 3
        %v1160 = vor.u32 %v1158, %v1159
        %v1161 = vsel %vm1149, %v1157, %v1160
        %v1162 = vrot.slane %v409, 2
        %v1163 = vrot.slane %v405, 3
        %v1164 = vor.u32 %v1162, %v1163
        %v1165 = vsel %vm1149, %v1160, %v1164
        %v1166 = vrot.slane %v417, 2
        %v1167 = vrot.slane %v413, 3
        %v1168 = vor.u32 %v1166, %v1167
        %v1169 = vsel %vm1149, %v1164, %v1168
        %v1170 = vrot.slane %v425, 2
        %v1171 = vrot.slane %v421, 3
        %v1172 = vor.u32 %v1170, %v1171
        %v1173 = vsel %vm1149, %v1168, %v1172
        %v1174 = vrot.slane %v433, 2
        %v1175 = vrot.slane %v429, 3
        %v1176 = vor.u32 %v1174, %v1175
        %v1177 = vsel %vm1149, %v1172, %v1176
        %v1178 = vrot.slane %v441, 2
        %v1179 = vrot.slane %v437, 3
        %v1180 = vor.u32 %v1178, %v1179
        %v1181 = vsel %vm1149, %v1176, %v1180
        %v1183 = vshrl.u32 %v1148, 16
        %v1185 = vrot.slane %v1183, 2
        %v1186 = vshll.u32 %v1148, 16
        %v1188 = vrot.slane %v1186, 3
        %v1189 = vor.u32 %v1185, %v1188
        %v1190 = vsel %vm1149, %v1180, %v1189
        %v1192 = vsel %vm449, %v1161, 0
        %v1195 = vsel %vm449, %v1165, 0
        %v1198 = vsel %vm449, %v1169, 0
        %v1201 = vsel %vm449, %v1173, 0
        %v1204 = vsel %vm449, %v1177, 0
        %v1207 = vsel %vm449, %v1181, 0
        %v1210 = vsel %vm449, %v1190, 0
        %v1213 = vsel %vm471, %v1145, 0
        %1215 = vmatprep.subr.bf16.mxu0 0
        %1216 = vmatpush1.bf16.msra.mxu0 %v1213
        %1217 = vmatprep.subr.bf16.mxu0 0
        %1218 = vmatpush1.bf16.msra.mxu0 0
        %1219 = vmatprep.subr.bf16.mxu0 0
        %1220 = vmatpush1.bf16.msra.mxu0 0
        %1221 = vmatprep.subr.bf16.mxu0 0
        %1222 = vmatpush1.bf16.msra.mxu0 0
        %1223 = vmatprep.subr.bf16.mxu0 0
        %1224 = vmatpush1.bf16.msra.mxu0 0
        %1225 = vmatprep.subr.bf16.mxu0 0
        %1226 = vmatpush1.bf16.msra.mxu0 0
        %1227 = vmatprep.subr.bf16.mxu0 0
        %1228 = vmatpush1.bf16.msra.mxu0 0
        %1229 = vmatprep.subr.bf16.mxu0 0
        %1230 = vmatpush1.bf16.msra.mxu0 0
        %1231 = vmatprep.subr.bf16.mxu0 0
        %1232 = vmatpush1.bf16.msra.mxu0 0
        %1233 = vmatprep.subr.bf16.mxu0 0
        %1234 = vmatpush1.bf16.msra.mxu0 0
        %1235 = vmatprep.subr.bf16.mxu0 0
        %1236 = vmatpush1.bf16.msra.mxu0 0
        %1237 = vmatprep.subr.bf16.mxu0 0
        %1238 = vmatpush1.bf16.msra.mxu0 0
        %1239 = vmatprep.subr.bf16.mxu0 0
        %1240 = vmatpush1.bf16.msra.mxu0 0
        %1241 = vmatprep.subr.bf16.mxu0 0
        %1242 = vmatpush1.bf16.msra.mxu0 0
        %1243 = vmatprep.subr.bf16.mxu0 0
        %1244 = vmatpush1.bf16.msra.mxu0 0
        %1245 = vmatprep.subr.bf16.mxu0 0
        %1246 = vmatpush1.bf16.msra.mxu0 0
        %1247 = vmatprep.mubr.bf16.mxu0 0
        %1248 = vmatmul.mubr.bf16.gmra.mrb[0].mxu0 %v1192
        %v1249 = vpop.f32.mrb[0].mxu0
        %v1250 = vadd.f32 0.0, %v1249
        %v1251 = vpop.f32.mrb[0].mxu0
        %v1252 = vpop.f32.mrb[0].mxu0
        %v1253 = vadd.f32 0.0, %v1252
        %v1254 = vpop.f32.mrb[0].mxu0
        %1255 = vmatprep.mubr.bf16.mxu0 0
        %1256 = vmatmul.mubr.bf16.gmra.mrb[0].mxu0 %v1195
        %v1257 = vpop.f32.mrb[0].mxu0
        %v1258 = vadd.f32 0.0, %v1257
        %v1259 = vpop.f32.mrb[0].mxu0
        %v1260 = vpop.f32.mrb[0].mxu0
        %v1261 = vadd.f32 0.0, %v1260
        %v1262 = vpop.f32.mrb[0].mxu0
        %1263 = vmatprep.mubr.bf16.mxu0 0
        %1264 = vmatmul.mubr.bf16.gmra.mrb[0].mxu0 %v1198
        %v1265 = vpop.f32.mrb[0].mxu0
        %v1266 = vadd.f32 0.0, %v1265
        %v1267 = vpop.f32.mrb[0].mxu0
        %v1268 = vpop.f32.mrb[0].mxu0
        %v1269 = vadd.f32 0.0, %v1268
        %v1270 = vpop.f32.mrb[0].mxu0
        %1271 = vmatprep.mubr.bf16.mxu0 0
        %1272 = vmatmul.mubr.bf16.gmra.mrb[0].mxu0 %v1201
        %v1273 = vpop.f32.mrb[0].mxu0
        %v1274 = vadd.f32 0.0, %v1273
        %v1275 = vpop.f32.mrb[0].mxu0
        %v1276 = vpop.f32.mrb[0].mxu0
        %v1277 = vadd.f32 0.0, %v1276
        %v1278 = vpop.f32.mrb[0].mxu0
        %1279 = vmatprep.mubr.bf16.mxu0 0
        %1280 = vmatmul.mubr.bf16.gmra.mrb[0].mxu0 %v1204
        %v1281 = vpop.f32.mrb[0].mxu0
        %v1282 = vadd.f32 0.0, %v1281
        %v1283 = vpop.f32.mrb[0].mxu0
        %v1284 = vpop.f32.mrb[0].mxu0
        %v1285 = vadd.f32 0.0, %v1284
        %v1286 = vpop.f32.mrb[0].mxu0
        %1287 = vmatprep.mubr.bf16.mxu0 0
        %1288 = vmatmul.mubr.bf16.gmra.mrb[0].mxu0 %v1207
        %v1289 = vpop.f32.mrb[0].mxu0
        %v1290 = vadd.f32 0.0, %v1289
        %v1291 = vpop.f32.mrb[0].mxu0
        %v1292 = vpop.f32.mrb[0].mxu0
        %v1293 = vadd.f32 0.0, %v1292
        %v1294 = vpop.f32.mrb[0].mxu0
        %1295 = vmatprep.mubr.bf16.mxu0 0
        %1296 = vmatmul.mubr.bf16.gmra.mrb[0].mxu0 %v1210
        %v1297 = vpop.f32.mrb[0].mxu0
        %v1298 = vadd.f32 0.0, %v1297
        %v1299 = vpop.f32.mrb[0].mxu0
        %v1300 = vpop.f32.mrb[0].mxu0
        %v1301 = vadd.f32 0.0, %v1300
        %v1302 = vpop.f32.mrb[0].mxu0
        %1303 = vdwg.mxu0
        %v1304 = vadd.f32 %v1129, %v1250
        %v1305 = vadd.f32 %v1130, %v1253
        %v1306 = vadd.f32 %v1131, %v1258
        %v1307 = vadd.f32 %v1132, %v1261
        %v1308 = vadd.f32 %v1133, %v1266
        %v1309 = vadd.f32 %v1134, %v1269
        %v1310 = vadd.f32 %v1135, %v1274
        %v1311 = vadd.f32 %v1136, %v1277
        %v1312 = vadd.f32 %v1137, %v1282
        %v1313 = vadd.f32 %v1138, %v1285
        %v1314 = vadd.f32 %v1139, %v1290
        %v1315 = vadd.f32 %v1140, %v1293
        %v1316 = vadd.f32 %v1141, %v1298
        %v1317 = vadd.f32 %v1142, %v1301
        %v1318 = vld [vmem:[%s329] sm:$0x8]
        %s1319 = scalar_lea.vmem %s1, 12
        %v1320 = vld [vmem:[%s1319] sm:$0x3]
        %v1322 = vunpack.c.l.b16 %v1318
        %v1323 = vpack.c.b16 %v366, %v1322
        %vm1324 = vcmask 1044480
        %v1325 = vrot.slane %v1323, 3
        %v1326 = vrot.slane %v381, 3
        %v1327 = vsel %vm1324, %v1325, %v1326
        %v1328 = vrot.slane %v382, 3
        %v1329 = vsel %vm1324, %v1326, %v1328
        %v1330 = vrot.slane %v383, 3
        %v1331 = vsel %vm1324, %v1328, %v1330
        %v1332 = vrot.slane %v384, 3
        %v1333 = vsel %vm1324, %v1330, %v1332
        %v1334 = vrot.slane %v385, 3
        %v1335 = vsel %vm1324, %v1332, %v1334
        %v1336 = vrot.slane %v386, 3
        %v1337 = vsel %vm1324, %v1334, %v1336
        %v1338 = vrot.slane %v1148, 3
        %v1339 = vsel %vm1324, %v1336, %v1338
        %v1341 = vsel %vm449, %v1327, 0
        %v1344 = vsel %vm449, %v1329, 0
        %v1347 = vsel %vm449, %v1331, 0
        %v1350 = vsel %vm449, %v1333, 0
        %v1353 = vsel %vm449, %v1335, 0
        %v1356 = vsel %vm449, %v1337, 0
        %v1359 = vsel %vm449, %v1339, 0
        %v1362 = vsel %vm471, %v1320, 0
        %1364 = vmatprep.subr.bf16.mxu0 0
        %1365 = vmatpush1.bf16.msra.mxu0 %v1362
        %1366 = vmatprep.subr.bf16.mxu0 0
        %1367 = vmatpush1.bf16.msra.mxu0 0
        %1368 = vmatprep.subr.bf16.mxu0 0
        %1369 = vmatpush1.bf16.msra.mxu0 0
        %1370 = vmatprep.subr.bf16.mxu0 0
        %1371 = vmatpush1.bf16.msra.mxu0 0
        %1372 = vmatprep.subr.bf16.mxu0 0
        %1373 = vmatpush1.bf16.msra.mxu0 0
        %1374 = vmatprep.subr.bf16.mxu0 0
        %1375 = vmatpush1.bf16.msra.mxu0 0
        %1376 = vmatprep.subr.bf16.mxu0 0
        %1377 = vmatpush1.bf16.msra.mxu0 0
        %1378 = vmatprep.subr.bf16.mxu0 0
        %1379 = vmatpush1.bf16.msra.mxu0 0
        %1380 = vmatprep.subr.bf16.mxu0 0
        %1381 = vmatpush1.bf16.msra.mxu0 0
        %1382 = vmatprep.subr.bf16.mxu0 0
        %1383 = vmatpush1.bf16.msra.mxu0 0
        %1384 = vmatprep.subr.bf16.mxu0 0
        %1385 = vmatpush1.bf16.msra.mxu0 0
        %1386 = vmatprep.subr.bf16.mxu0 0
        %1387 = vmatpush1.bf16.msra.mxu0 0
        %1388 = vmatprep.subr.bf16.mxu0 0
        %1389 = vmatpush1.bf16.msra.mxu0 0
        %1390 = vmatprep.subr.bf16.mxu0 0
        %1391 = vmatpush1.bf16.msra.mxu0 0
        %1392 = vmatprep.subr.bf16.mxu0 0
        %1393 = vmatpush1.bf16.msra.mxu0 0
        %1394 = vmatprep.subr.bf16.mxu0 0
        %1395 = vmatpush1.bf16.msra.mxu0 0
        %1396 = vmatprep.mubr.bf16.mxu0 0
        %1397 = vmatmul.mubr.bf16.gmra.mrb[0].mxu0 %v1341
        %v1398 = vpop.f32.mrb[0].mxu0
        %v1399 = vadd.f32 0.0, %v1398
        %v1400 = vpop.f32.mrb[0].mxu0
        %v1401 = vpop.f32.mrb[0].mxu0
        %v1402 = vadd.f32 0.0, %v1401
        %v1403 = vpop.f32.mrb[0].mxu0
        %1404 = vmatprep.mubr.bf16.mxu0 0
        %1405 = vmatmul.mubr.bf16.gmra.mrb[0].mxu0 %v1344
        %v1406 = vpop.f32.mrb[0].mxu0
        %v1407 = vadd.f32 0.0, %v1406
        %v1408 = vpop.f32.mrb[0].mxu0
        %v1409 = vpop.f32.mrb[0].mxu0
        %v1410 = vadd.f32 0.0, %v1409
        %v1411 = vpop.f32.mrb[0].mxu0
        %1412 = vmatprep.mubr.bf16.mxu0 0
        %1413 = vmatmul.mubr.bf16.gmra.mrb[0].mxu0 %v1347
        %v1414 = vpop.f32.mrb[0].mxu0
        %v1415 = vadd.f32 0.0, %v1414
        %v1416 = vpop.f32.mrb[0].mxu0
        %v1417 = vpop.f32.mrb[0].mxu0
        %v1418 = vadd.f32 0.0, %v1417
        %v1419 = vpop.f32.mrb[0].mxu0
        %1420 = vmatprep.mubr.bf16.mxu0 0
        %1421 = vmatmul.mubr.bf16.gmra.mrb[0].mxu0 %v1350
        %v1422 = vpop.f32.mrb[0].mxu0
        %v1423 = vadd.f32 0.0, %v1422
        %v1424 = vpop.f32.mrb[0].mxu0
        %v1425 = vpop.f32.mrb[0].mxu0
        %v1426 = vadd.f32 0.0, %v1425
        %v1427 = vpop.f32.mrb[0].mxu0
        %1428 = vmatprep.mubr.bf16.mxu0 0
        %1429 = vmatmul.mubr.bf16.gmra.mrb[0].mxu0 %v1353
        %v1430 = vpop.f32.mrb[0].mxu0
        %v1431 = vadd.f32 0.0, %v1430
        %v1432 = vpop.f32.mrb[0].mxu0
        %v1433 = vpop.f32.mrb[0].mxu0
        %v1434 = vadd.f32 0.0, %v1433
        %v1435 = vpop.f32.mrb[0].mxu0
        %1436 = vmatprep.mubr.bf16.mxu0 0
        %1437 = vmatmul.mubr.bf16.gmra.mrb[0].mxu0 %v1356
        %v1438 = vpop.f32.mrb[0].mxu0
        %v1439 = vadd.f32 0.0, %v1438
        %v1440 = vpop.f32.mrb[0].mxu0
        %v1441 = vpop.f32.mrb[0].mxu0
        %v1442 = vadd.f32 0.0, %v1441
        %v1443 = vpop.f32.mrb[0].mxu0
        %1444 = vmatprep.mubr.bf16.mxu0 0
        %1445 = vmatmul.mubr.bf16.gmra.mrb[0].mxu0 %v1359
        %v1446 = vpop.f32.mrb[0].mxu0
        %v1447 = vadd.f32 0.0, %v1446
        %v1448 = vpop.f32.mrb[0].mxu0
        %v1449 = vpop.f32.mrb[0].mxu0
        %v1450 = vadd.f32 0.0, %v1449
        %v1451 = vpop.f32.mrb[0].mxu0
        %1452 = vdwg.mxu0
        %v1453 = vadd.f32 %v1304, %v1399
        %v1454 = vadd.f32 %v1305, %v1402
        %v1455 = vadd.f32 %v1306, %v1407
        %v1456 = vadd.f32 %v1307, %v1410
        %v1457 = vadd.f32 %v1308, %v1415
        %v1458 = vadd.f32 %v1309, %v1418
        %v1459 = vadd.f32 %v1310, %v1423
        %v1460 = vadd.f32 %v1311, %v1426
        %v1461 = vadd.f32 %v1312, %v1431
        %v1462 = vadd.f32 %v1313, %v1434
        %v1463 = vadd.f32 %v1314, %v1439
        %v1464 = vadd.f32 %v1315, %v1442
        %v1465 = vadd.f32 %v1316, %v1447
        %v1466 = vadd.f32 %v1317, %v1450
        %v1468 = vlaneseq
        %v1469 = vshrl.u32 %v1468, 7
        %v1470 = vsub.s32 0, %v1469
        %v1471 = vrot.slane %v331, %v1470
        %v1473 = vadd.f32 %v1453, %v1471
        %v1474 = vadd.f32 %v1454, %v1471
        %v1475 = vadd.f32 %v1455, %v1471
        %v1476 = vadd.f32 %v1456, %v1471
        %v1477 = vadd.f32 %v1457, %v1471
        %v1478 = vadd.f32 %v1458, %v1471
        %v1479 = vadd.f32 %v1459, %v1471
        %v1480 = vadd.f32 %v1460, %v1471
        %v1481 = vadd.f32 %v1461, %v1471
        %v1482 = vadd.f32 %v1462, %v1471
        %v1483 = vadd.f32 %v1463, %v1471
        %v1484 = vadd.f32 %v1464, %v1471
        %v1485 = vadd.f32 %v1465, %v1471
        %v1486 = vadd.f32 %v1466, %v1471
        %v1487 = vmax.f32 %v1473, 0.0
        %v1488 = vmax.f32 %v1474, 0.0
        %v1489 = vmax.f32 %v1475, 0.0
        %v1490 = vmax.f32 %v1476, 0.0
        %v1491 = vmax.f32 %v1477, 0.0
        %v1492 = vmax.f32 %v1478, 0.0
        %v1493 = vmax.f32 %v1479, 0.0
        %v1494 = vmax.f32 %v1480, 0.0
        %v1495 = vmax.f32 %v1481, 0.0
        %v1496 = vmax.f32 %v1482, 0.0
        %v1497 = vmax.f32 %v1483, 0.0
        %v1498 = vmax.f32 %v1484, 0.0
        %v1499 = vmax.f32 %v1485, 0.0
        %v1500 = vmax.f32 %v1486, 0.0
        %vm1501 = vcmask 261120
        %1502 = vst.msk [vmem:[#allocation2] sm:$0xff] %vm1501, %v1487
        %1503 = vst.msk [vmem:[#allocation2 + $0x8] sm:$0xff] %vm1501, %v1488
        %1504 = vst.msk [vmem:[#allocation2 + $0x10] sm:$0xff] %vm1501, %v1489
        %1505 = vst.msk [vmem:[#allocation2 + $0x18] sm:$0xff] %vm1501, %v1490
        %1506 = vst.msk [vmem:[#allocation2 + $0x20] sm:$0xff] %vm1501, %v1491
        %1507 = vst.msk [vmem:[#allocation2 + $0x28] sm:$0xff] %vm1501, %v1492
        %1508 = vst.msk [vmem:[#allocation2 + $0x30] sm:$0xff] %vm1501, %v1493
        %1509 = vst.msk [vmem:[#allocation2 + $0x38] sm:$0xff] %vm1501, %v1494
        %1510 = vst.msk [vmem:[#allocation2 + $0x40] sm:$0xff] %vm1501, %v1495
        %1511 = vst.msk [vmem:[#allocation2 + $0x48] sm:$0xff] %vm1501, %v1496
        %1512 = vst.msk [vmem:[#allocation2 + $0x50] sm:$0xff] %vm1501, %v1497
        %1513 = vst.msk [vmem:[#allocation2 + $0x58] sm:$0xff] %vm1501, %v1498
        %1514 = vst.msk [vmem:[#allocation2 + $0x60] sm:$0xff] %vm1501, %v1499
        %1515 = vst.msk [vmem:[#allocation2 + $0x68] sm:$0xff] %vm1501, %v1500
        %v1516 = vld [vmem:[#allocation2] ss:$7 sm:$0xff]
        %s1517 = scalar_lea.vmem [#allocation2], 56
        %v1518 = vld [vmem:[%s1517] ss:$7 sm:$0xff]
        %s1519 = scalar_lea.vmem [#allocation2], 1
        %v1520 = vld [vmem:[%s1519] ss:$7 sm:$0xff]
        %s1521 = scalar_lea.vmem [#allocation2], 57
        %v1522 = vld [vmem:[%s1521] ss:$7 sm:$0xff]
        %v1523 = vmax.f32 %v1516, %v1520
        %v1524 = vmax.f32 %v1518, %v1522
        %s1525 = scalar_lea.vmem [#allocation2], 2
        %v1526 = vld [vmem:[%s1525] ss:$7 sm:$0xff]
        %s1527 = scalar_lea.vmem [#allocation2], 58
        %v1528 = vld [vmem:[%s1527] ss:$7 sm:$0xff]
        %v1529 = vmax.f32 %v1523, %v1526
        %v1530 = vmax.f32 %v1524, %v1528
        %s1531 = scalar_lea.vmem [#allocation2], 3
        %v1532 = vld [vmem:[%s1531] ss:$7 sm:$0xff]
        %s1533 = scalar_lea.vmem [#allocation2], 59
        %v1534 = vld [vmem:[%s1533] ss:$7 sm:$0xff]
        %v1535 = vmax.f32 %v1529, %v1532
        %v1536 = vmax.f32 %v1530, %v1534
        %s1537 = scalar_lea.vmem [#allocation2], 4
        %v1538 = vld [vmem:[%s1537] ss:$7 sm:$0xff]
        %s1539 = scalar_lea.vmem [#allocation2], 60
        %v1540 = vld [vmem:[%s1539] ss:$7 sm:$0xff]
        %v1541 = vmax.f32 %v1535, %v1538
        %v1542 = vmax.f32 %v1536, %v1540
        %s1543 = scalar_lea.vmem [#allocation2], 5
        %v1544 = vld [vmem:[%s1543] ss:$7 sm:$0xff]
        %s1545 = scalar_lea.vmem [#allocation2], 61
        %v1546 = vld [vmem:[%s1545] ss:$7 sm:$0xff]
        %v1547 = vmax.f32 %v1541, %v1544
        %v1548 = vmax.f32 %v1542, %v1546
        %s1549 = scalar_lea.vmem [#allocation2], 6
        %v1550 = vld [vmem:[%s1549] ss:$7 sm:$0xff]
        %s1551 = scalar_lea.vmem [#allocation2], 62
        %v1552 = vld [vmem:[%s1551] ss:$7 sm:$0xff]
        %v1553 = vmax.f32 %v1547, %v1550
        %v1554 = vmax.f32 %v1548, %v1552
        %v1555 = vld [vmem:[%s329 + $0x38] sm:$0xf]
        %v1556 = vld [vmem:[%s329 + $0x3c] sm:$0xf]
        %v1557 = vld [vmem:[%s329 + $0x40] sm:$0xf]
        %v1558 = vld [vmem:[%s329 + $0x44] sm:$0xf]
        %v1559 = vld [vmem:[%s329 + $0x48] sm:$0xf]
        %v1560 = vld [vmem:[%s329 + $0x4c] sm:$0xf]
        %v1561 = vld [vmem:[%s329 + $0x50] sm:$0xf]
        %v1562 = vld [vmem:[%s329 + $0x54] sm:$0xf]
        %v1563 = vld [vmem:[%s329 + $0x58] sm:$0xf]
        %v1564 = vld [vmem:[%s329 + $0x5c] sm:$0xf]
        %v1565 = vld [vmem:[%s329 + $0x60] sm:$0xf]
        %v1566 = vld [vmem:[%s329 + $0x64] sm:$0xf]
        %v1567 = vld [vmem:[%s329 + $0x68] sm:$0xf]
        %v1568 = vld [vmem:[%s329 + $0x6c] sm:$0xf]
        %v1569 = vld [vmem:[%s1] sm:$0x3]
        %v1570 = vld [vmem:[%s329 + $0x70] sm:$0x1]
        %v1571 = vld [vmem:[%s348] sm:$0x3]
        %v1587 = vunpack.c.l.b16 %v1555
        %v1588 = vunpack.c.l.b16 %v1556
        %v1589 = vunpack.c.l.b16 %v1557
        %v1590 = vunpack.c.l.b16 %v1558
        %v1591 = vunpack.c.l.b16 %v1559
        %v1592 = vunpack.c.l.b16 %v1560
        %v1593 = vunpack.c.l.b16 %v1561
        %v1594 = vunpack.c.l.b16 %v1562
        %v1595 = vunpack.c.l.b16 %v1563
        %v1596 = vunpack.c.l.b16 %v1564
        %v1597 = vunpack.c.l.b16 %v1565
        %v1598 = vunpack.c.l.b16 %v1566
        %v1599 = vunpack.c.l.b16 %v1567
        %v1600 = vunpack.c.l.b16 %v1568
        %v1601 = vunpack.c.l.b16 %v1570
        %v1602 = vpack.c.b16 %v1588, %v1587
        %v1603 = vpack.c.b16 %v1590, %v1589
        %v1604 = vpack.c.b16 %v1592, %v1591
        %v1605 = vpack.c.b16 %v1594, %v1593
        %v1606 = vpack.c.b16 %v1596, %v1595
        %v1607 = vpack.c.b16 %v1598, %v1597
        %v1608 = vpack.c.b16 %v1600, %v1599
        %v1609 = vpack.c.b16 %v1601, %v1601
        %v1611 = vshrl.u32 %v1602, 16
        %v1613 = vshll.u32 %v1602, 16
        %v1615 = vrot.slane %v1613, 1
        %v1616 = vor.u32 %v1611, %v1615
        %v1618 = vshll.u32 %v1603, 16
        %v1620 = vrot.slane %v1618, 1
        %v1621 = vsel %vm388, %v1616, %v1620
        %v1622 = vshrl.u32 %v1603, 16
        %v1624 = vor.u32 %v1622, %v1620
        %v1626 = vshll.u32 %v1604, 16
        %v1628 = vrot.slane %v1626, 1
        %v1629 = vsel %vm388, %v1624, %v1628
        %v1630 = vshrl.u32 %v1604, 16
        %v1632 = vor.u32 %v1630, %v1628
        %v1634 = vshll.u32 %v1605, 16
        %v1636 = vrot.slane %v1634, 1
        %v1637 = vsel %vm388, %v1632, %v1636
        %v1638 = vshrl.u32 %v1605, 16
        %v1640 = vor.u32 %v1638, %v1636
        %v1642 = vshll.u32 %v1606, 16
        %v1644 = vrot.slane %v1642, 1
        %v1645 = vsel %vm388, %v1640, %v1644
        %v1646 = vshrl.u32 %v1606, 16
        %v1648 = vor.u32 %v1646, %v1644
        %v1650 = vshll.u32 %v1607, 16
        %v1652 = vrot.slane %v1650, 1
        %v1653 = vsel %vm388, %v1648, %v1652
        %v1654 = vshrl.u32 %v1607, 16
        %v1656 = vor.u32 %v1654, %v1652
        %v1658 = vshll.u32 %v1608, 16
        %v1660 = vrot.slane %v1658, 1
        %v1661 = vsel %vm388, %v1656, %v1660
        %v1662 = vshrl.u32 %v1608, 16
        %v1664 = vor.u32 %v1662, %v1660
        %v1666 = vshll.u32 %v1609, 16
        %v1668 = vrot.slane %v1666, 1
        %v1669 = vsel %vm388, %v1664, %v1668
        %v1671 = vsel %vm449, %v1621, 0
        %v1674 = vsel %vm449, %v1629, 0
        %v1677 = vsel %vm449, %v1637, 0
        %v1680 = vsel %vm449, %v1645, 0
        %v1683 = vsel %vm449, %v1653, 0
        %v1686 = vsel %vm449, %v1661, 0
        %v1689 = vsel %vm449, %v1669, 0
        %v1692 = vsel %vm471, %v1571, 0
        %1694 = vmatprep.subr.bf16.mxu0 0
        %1695 = vmatpush1.bf16.msra.mxu0 %v1692
        %1696 = vmatprep.subr.bf16.mxu0 0
        %1697 = vmatpush1.bf16.msra.mxu0 0
        %1698 = vmatprep.subr.bf16.mxu0 0
        %1699 = vmatpush1.bf16.msra.mxu0 0
        %1700 = vmatprep.subr.bf16.mxu0 0
        %1701 = vmatpush1.bf16.msra.mxu0 0
        %1702 = vmatprep.subr.bf16.mxu0 0
        %1703 = vmatpush1.bf16.msra.mxu0 0
        %1704 = vmatprep.subr.bf16.mxu0 0
        %1705 = vmatpush1.bf16.msra.mxu0 0
        %1706 = vmatprep.subr.bf16.mxu0 0
        %1707 = vmatpush1.bf16.msra.mxu0 0
        %1708 = vmatprep.subr.bf16.mxu0 0
        %1709 = vmatpush1.bf16.msra.mxu0 0
        %1710 = vmatprep.subr.bf16.mxu0 0
        %1711 = vmatpush1.bf16.msra.mxu0 0
        %1712 = vmatprep.subr.bf16.mxu0 0
        %1713 = vmatpush1.bf16.msra.mxu0 0
        %1714 = vmatprep.subr.bf16.mxu0 0
        %1715 = vmatpush1.bf16.msra.mxu0 0
        %1716 = vmatprep.subr.bf16.mxu0 0
        %1717 = vmatpush1.bf16.msra.mxu0 0
        %1718 = vmatprep.subr.bf16.mxu0 0
        %1719 = vmatpush1.bf16.msra.mxu0 0
        %1720 = vmatprep.subr.bf16.mxu0 0
        %1721 = vmatpush1.bf16.msra.mxu0 0
        %1722 = vmatprep.subr.bf16.mxu0 0
        %1723 = vmatpush1.bf16.msra.mxu0 0
        %1724 = vmatprep.subr.bf16.mxu0 0
        %1725 = vmatpush1.bf16.msra.mxu0 0
        %1726 = vmatprep.mubr.bf16.mxu0 0
        %1727 = vmatmul.mubr.bf16.gmra.mrb[0].mxu0 %v1671
        %v1728 = vpop.f32.mrb[0].mxu0
        %v1729 = vadd.f32 0.0, %v1728
        %v1730 = vpop.f32.mrb[0].mxu0
        %v1731 = vpop.f32.mrb[0].mxu0
        %v1732 = vadd.f32 0.0, %v1731
        %v1733 = vpop.f32.mrb[0].mxu0
        %1734 = vmatprep.mubr.bf16.mxu0 0
        %1735 = vmatmul.mubr.bf16.gmra.mrb[0].mxu0 %v1674
        %v1736 = vpop.f32.mrb[0].mxu0
        %v1737 = vadd.f32 0.0, %v1736
        %v1738 = vpop.f32.mrb[0].mxu0
        %v1739 = vpop.f32.mrb[0].mxu0
        %v1740 = vadd.f32 0.0, %v1739
        %v1741 = vpop.f32.mrb[0].mxu0
        %1742 = vmatprep.mubr.bf16.mxu0 0
        %1743 = vmatmul.mubr.bf16.gmra.mrb[0].mxu0 %v1677
        %v1744 = vpop.f32.mrb[0].mxu0
        %v1745 = vadd.f32 0.0, %v1744
        %v1746 = vpop.f32.mrb[0].mxu0
        %v1747 = vpop.f32.mrb[0].mxu0
        %v1748 = vadd.f32 0.0, %v1747
        %v1749 = vpop.f32.mrb[0].mxu0
        %1750 = vmatprep.mubr.bf16.mxu0 0
        %1751 = vmatmul.mubr.bf16.gmra.mrb[0].mxu0 %v1680
        %v1752 = vpop.f32.mrb[0].mxu0
        %v1753 = vadd.f32 0.0, %v1752
        %v1754 = vpop.f32.mrb[0].mxu0
        %v1755 = vpop.f32.mrb[0].mxu0
        %v1756 = vadd.f32 0.0, %v1755
        %v1757 = vpop.f32.mrb[0].mxu0
        %1758 = vmatprep.mubr.bf16.mxu0 0
        %1759 = vmatmul.mubr.bf16.gmra.mrb[0].mxu0 %v1683
        %v1760 = vpop.f32.mrb[0].mxu0
        %v1761 = vadd.f32 0.0, %v1760
        %v1762 = vpop.f32.mrb[0].mxu0
        %v1763 = vpop.f32.mrb[0].mxu0
        %v1764 = vadd.f32 0.0, %v1763
        %v1765 = vpop.f32.mrb[0].mxu0
        %1766 = vmatprep.mubr.bf16.mxu0 0
        %1767 = vmatmul.mubr.bf16.gmra.mrb[0].mxu0 %v1686
        %v1768 = vpop.f32.mrb[0].mxu0
        %v1769 = vadd.f32 0.0, %v1768
        %v1770 = vpop.f32.mrb[0].mxu0
        %v1771 = vpop.f32.mrb[0].mxu0
        %v1772 = vadd.f32 0.0, %v1771
        %v1773 = vpop.f32.mrb[0].mxu0
        %1774 = vmatprep.mubr.bf16.mxu0 0
        %1775 = vmatmul.mubr.bf16.gmra.mrb[0].mxu0 %v1689
        %v1776 = vpop.f32.mrb[0].mxu0
        %v1777 = vadd.f32 0.0, %v1776
        %v1778 = vpop.f32.mrb[0].mxu0
        %v1779 = vpop.f32.mrb[0].mxu0
        %v1780 = vadd.f32 0.0, %v1779
        %v1781 = vpop.f32.mrb[0].mxu0
        %1782 = vdwg.mxu0
        %v1783 = vsel %vm449, %v1602, 0
        %v1785 = vsel %vm449, %v1603, 0
        %v1787 = vsel %vm449, %v1604, 0
        %v1789 = vsel %vm449, %v1605, 0
        %v1791 = vsel %vm449, %v1606, 0
        %v1793 = vsel %vm449, %v1607, 0
        %v1795 = vsel %vm449, %v1608, 0
        %v1798 = vsel %vm471, %v1569, 0
        %1800 = vmatprep.subr.bf16.mxu0 0
        %1801 = vmatpush1.bf16.msra.mxu0 %v1798
        %1802 = vmatprep.subr.bf16.mxu0 0
        %1803 = vmatpush1.bf16.msra.mxu0 0
        %1804 = vmatprep.subr.bf16.mxu0 0
        %1805 = vmatpush1.bf16.msra.mxu0 0
        %1806 = vmatprep.subr.bf16.mxu0 0
        %1807 = vmatpush1.bf16.msra.mxu0 0
        %1808 = vmatprep.subr.bf16.mxu0 0
        %1809 = vmatpush1.bf16.msra.mxu0 0
        %1810 = vmatprep.subr.bf16.mxu0 0
        %1811 = vmatpush1.bf16.msra.mxu0 0
        %1812 = vmatprep.subr.bf16.mxu0 0
        %1813 = vmatpush1.bf16.msra.mxu0 0
        %1814 = vmatprep.subr.bf16.mxu0 0
        %1815 = vmatpush1.bf16.msra.mxu0 0
        %1816 = vmatprep.subr.bf16.mxu0 0
        %1817 = vmatpush1.bf16.msra.mxu0 0
        %1818 = vmatprep.subr.bf16.mxu0 0
        %1819 = vmatpush1.bf16.msra.mxu0 0
        %1820 = vmatprep.subr.bf16.mxu0 0
        %1821 = vmatpush1.bf16.msra.mxu0 0
        %1822 = vmatprep.subr.bf16.mxu0 0
        %1823 = vmatpush1.bf16.msra.mxu0 0
        %1824 = vmatprep.subr.bf16.mxu0 0
        %1825 = vmatpush1.bf16.msra.mxu0 0
        %1826 = vmatprep.subr.bf16.mxu0 0
        %1827 = vmatpush1.bf16.msra.mxu0 0
        %1828 = vmatprep.subr.bf16.mxu0 0
        %1829 = vmatpush1.bf16.msra.mxu0 0
        %1830 = vmatprep.subr.bf16.mxu0 0
        %1831 = vmatpush1.bf16.msra.mxu0 0
        %1832 = vmatprep.mubr.bf16.mxu0 0
        %1833 = vmatmul.mubr.bf16.gmra.mrb[0].mxu0 %v1783
        %v1834 = vpop.f32.mrb[0].mxu0
        %v1835 = vadd.f32 %v1729, %v1834
        %v1836 = vpop.f32.mrb[0].mxu0
        %v1837 = vpop.f32.mrb[0].mxu0
        %v1838 = vadd.f32 %v1732, %v1837
        %v1839 = vpop.f32.mrb[0].mxu0
        %1840 = vmatprep.mubr.bf16.mxu0 0
        %1841 = vmatmul.mubr.bf16.gmra.mrb[0].mxu0 %v1785
        %v1842 = vpop.f32.mrb[0].mxu0
        %v1843 = vadd.f32 %v1737, %v1842
        %v1844 = vpop.f32.mrb[0].mxu0
        %v1845 = vpop.f32.mrb[0].mxu0
        %v1846 = vadd.f32 %v1740, %v1845
        %v1847 = vpop.f32.mrb[0].mxu0
        %1848 = vmatprep.mubr.bf16.mxu0 0
        %1849 = vmatmul.mubr.bf16.gmra.mrb[0].mxu0 %v1787
        %v1850 = vpop.f32.mrb[0].mxu0
        %v1851 = vadd.f32 %v1745, %v1850
        %v1852 = vpop.f32.mrb[0].mxu0
        %v1853 = vpop.f32.mrb[0].mxu0
        %v1854 = vadd.f32 %v1748, %v1853
        %v1855 = vpop.f32.mrb[0].mxu0
        %1856 = vmatprep.mubr.bf16.mxu0 0
        %1857 = vmatmul.mubr.bf16.gmra.mrb[0].mxu0 %v1789
        %v1858 = vpop.f32.mrb[0].mxu0
        %v1859 = vadd.f32 %v1753, %v1858
        %v1860 = vpop.f32.mrb[0].mxu0
        %v1861 = vpop.f32.mrb[0].mxu0
        %v1862 = vadd.f32 %v1756, %v1861
        %v1863 = vpop.f32.mrb[0].mxu0
        %1864 = vmatprep.mubr.bf16.mxu0 0
        %1865 = vmatmul.mubr.bf16.gmra.mrb[0].mxu0 %v1791
        %v1866 = vpop.f32.mrb[0].mxu0
        %v1867 = vadd.f32 %v1761, %v1866
        %v1868 = vpop.f32.mrb[0].mxu0
        %v1869 = vpop.f32.mrb[0].mxu0
        %v1870 = vadd.f32 %v1764, %v1869
        %v1871 = vpop.f32.mrb[0].mxu0
        %1872 = vmatprep.mubr.bf16.mxu0 0
        %1873 = vmatmul.mubr.bf16.gmra.mrb[0].mxu0 %v1793
        %v1874 = vpop.f32.mrb[0].mxu0
        %v1875 = vadd.f32 %v1769, %v1874
        %v1876 = vpop.f32.mrb[0].mxu0
        %v1877 = vpop.f32.mrb[0].mxu0
        %v1878 = vadd.f32 %v1772, %v1877
        %v1879 = vpop.f32.mrb[0].mxu0
        %1880 = vmatprep.mubr.bf16.mxu0 0
        %1881 = vmatmul.mubr.bf16.gmra.mrb[0].mxu0 %v1795
        %v1882 = vpop.f32.mrb[0].mxu0
        %v1883 = vadd.f32 %v1777, %v1882
        %v1884 = vpop.f32.mrb[0].mxu0
        %v1885 = vpop.f32.mrb[0].mxu0
        %v1886 = vadd.f32 %v1780, %v1885
        %v1887 = vpop.f32.mrb[0].mxu0
        %1888 = vdwg.mxu0
        %v1889 = vld [vmem:[%s329 + $0x38] sm:$0xe]
        %v1890 = vld [vmem:[%s671] sm:$0x3]
        %v1892 = vunpack.c.l.b16 %v1889
        %v1893 = vpack.c.b16 %v1588, %v1892
        %v1894 = vrot.slane %v1893, 1
        %v1895 = vrot.slane %v1603, 1
        %v1896 = vsel %vm676, %v1894, %v1895
        %v1897 = vrot.slane %v1604, 1
        %v1898 = vsel %vm676, %v1895, %v1897
        %v1899 = vrot.slane %v1605, 1
        %v1900 = vsel %vm676, %v1897, %v1899
        %v1901 = vrot.slane %v1606, 1
        %v1902 = vsel %vm676, %v1899, %v1901
        %v1903 = vrot.slane %v1607, 1
        %v1904 = vsel %vm676, %v1901, %v1903
        %v1905 = vrot.slane %v1608, 1
        %v1906 = vsel %vm676, %v1903, %v1905
        %v1907 = vrot.slane %v1609, 1
        %v1908 = vsel %vm676, %v1905, %v1907
        %v1910 = vsel %vm449, %v1896, 0
        %v1913 = vsel %vm449, %v1898, 0
        %v1916 = vsel %vm449, %v1900, 0
        %v1919 = vsel %vm449, %v1902, 0
        %v1922 = vsel %vm449, %v1904, 0
        %v1925 = vsel %vm449, %v1906, 0
        %v1928 = vsel %vm449, %v1908, 0
        %v1931 = vsel %vm471, %v1890, 0
        %1933 = vmatprep.subr.bf16.mxu0 0
        %1934 = vmatpush1.bf16.msra.mxu0 %v1931
        %1935 = vmatprep.subr.bf16.mxu0 0
        %1936 = vmatpush1.bf16.msra.mxu0 0
        %1937 = vmatprep.subr.bf16.mxu0 0
        %1938 = vmatpush1.bf16.msra.mxu0 0
        %1939 = vmatprep.subr.bf16.mxu0 0
        %1940 = vmatpush1.bf16.msra.mxu0 0
        %1941 = vmatprep.subr.bf16.mxu0 0
        %1942 = vmatpush1.bf16.msra.mxu0 0
        %1943 = vmatprep.subr.bf16.mxu0 0
        %1944 = vmatpush1.bf16.msra.mxu0 0
        %1945 = vmatprep.subr.bf16.mxu0 0
        %1946 = vmatpush1.bf16.msra.mxu0 0
        %1947 = vmatprep.subr.bf16.mxu0 0
        %1948 = vmatpush1.bf16.msra.mxu0 0
        %1949 = vmatprep.subr.bf16.mxu0 0
        %1950 = vmatpush1.bf16.msra.mxu0 0
        %1951 = vmatprep.subr.bf16.mxu0 0
        %1952 = vmatpush1.bf16.msra.mxu0 0
        %1953 = vmatprep.subr.bf16.mxu0 0
        %1954 = vmatpush1.bf16.msra.mxu0 0
        %1955 = vmatprep.subr.bf16.mxu0 0
        %1956 = vmatpush1.bf16.msra.mxu0 0
        %1957 = vmatprep.subr.bf16.mxu0 0
        %1958 = vmatpush1.bf16.msra.mxu0 0
        %1959 = vmatprep.subr.bf16.mxu0 0
        %1960 = vmatpush1.bf16.msra.mxu0 0
        %1961 = vmatprep.subr.bf16.mxu0 0
        %1962 = vmatpush1.bf16.msra.mxu0 0
        %1963 = vmatprep.subr.bf16.mxu0 0
        %1964 = vmatpush1.bf16.msra.mxu0 0
        %1965 = vmatprep.mubr.bf16.mxu0 0
        %1966 = vmatmul.mubr.bf16.gmra.mrb[0].mxu0 %v1910
        %v1967 = vpop.f32.mrb[0].mxu0
        %v1968 = vadd.f32 0.0, %v1967
        %v1969 = vpop.f32.mrb[0].mxu0
        %v1970 = vpop.f32.mrb[0].mxu0
        %v1971 = vadd.f32 0.0, %v1970
        %v1972 = vpop.f32.mrb[0].mxu0
        %1973 = vmatprep.mubr.bf16.mxu0 0
        %1974 = vmatmul.mubr.bf16.gmra.mrb[0].mxu0 %v1913
        %v1975 = vpop.f32.mrb[0].mxu0
        %v1976 = vadd.f32 0.0, %v1975
        %v1977 = vpop.f32.mrb[0].mxu0
        %v1978 = vpop.f32.mrb[0].mxu0
        %v1979 = vadd.f32 0.0, %v1978
        %v1980 = vpop.f32.mrb[0].mxu0
        %1981 = vmatprep.mubr.bf16.mxu0 0
        %1982 = vmatmul.mubr.bf16.gmra.mrb[0].mxu0 %v1916
        %v1983 = vpop.f32.mrb[0].mxu0
        %v1984 = vadd.f32 0.0, %v1983
        %v1985 = vpop.f32.mrb[0].mxu0
        %v1986 = vpop.f32.mrb[0].mxu0
        %v1987 = vadd.f32 0.0, %v1986
        %v1988 = vpop.f32.mrb[0].mxu0
        %1989 = vmatprep.mubr.bf16.mxu0 0
        %1990 = vmatmul.mubr.bf16.gmra.mrb[0].mxu0 %v1919
        %v1991 = vpop.f32.mrb[0].mxu0
        %v1992 = vadd.f32 0.0, %v1991
        %v1993 = vpop.f32.mrb[0].mxu0
        %v1994 = vpop.f32.mrb[0].mxu0
        %v1995 = vadd.f32 0.0, %v1994
        %v1996 = vpop.f32.mrb[0].mxu0
        %1997 = vmatprep.mubr.bf16.mxu0 0
        %1998 = vmatmul.mubr.bf16.gmra.mrb[0].mxu0 %v1922
        %v1999 = vpop.f32.mrb[0].mxu0
        %v2000 = vadd.f32 0.0, %v1999
        %v2001 = vpop.f32.mrb[0].mxu0
        %v2002 = vpop.f32.mrb[0].mxu0
        %v2003 = vadd.f32 0.0, %v2002
        %v2004 = vpop.f32.mrb[0].mxu0
        %2005 = vmatprep.mubr.bf16.mxu0 0
        %2006 = vmatmul.mubr.bf16.gmra.mrb[0].mxu0 %v1925
        %v2007 = vpop.f32.mrb[0].mxu0
        %v2008 = vadd.f32 0.0, %v2007
        %v2009 = vpop.f32.mrb[0].mxu0
        %v2010 = vpop.f32.mrb[0].mxu0
        %v2011 = vadd.f32 0.0, %v2010
        %v2012 = vpop.f32.mrb[0].mxu0
        %2013 = vmatprep.mubr.bf16.mxu0 0
        %2014 = vmatmul.mubr.bf16.gmra.mrb[0].mxu0 %v1928
        %v2015 = vpop.f32.mrb[0].mxu0
        %v2016 = vadd.f32 0.0, %v2015
        %v2017 = vpop.f32.mrb[0].mxu0
        %v2018 = vpop.f32.mrb[0].mxu0
        %v2019 = vadd.f32 0.0, %v2018
        %v2020 = vpop.f32.mrb[0].mxu0
        %2021 = vdwg.mxu0
        %v2022 = vadd.f32 %v1835, %v1968
        %v2023 = vadd.f32 %v1838, %v1971
        %v2024 = vadd.f32 %v1843, %v1976
        %v2025 = vadd.f32 %v1846, %v1979
        %v2026 = vadd.f32 %v1851, %v1984
        %v2027 = vadd.f32 %v1854, %v1987
        %v2028 = vadd.f32 %v1859, %v1992
        %v2029 = vadd.f32 %v1862, %v1995
        %v2030 = vadd.f32 %v1867, %v2000
        %v2031 = vadd.f32 %v1870, %v2003
        %v2032 = vadd.f32 %v1875, %v2008
        %v2033 = vadd.f32 %v1878, %v2011
        %v2034 = vadd.f32 %v1883, %v2016
        %v2035 = vadd.f32 %v1886, %v2019
        %v2036 = vld [vmem:[%s329 + $0x70] sm:$0x3]
        %v2037 = vld [vmem:[%s820] sm:$0x3]
        %v2039 = vunpack.c.l.b16 %v2036
        %v2040 = vpack.c.b16 %v2039, %v2039
        %v2042 = vshrl.u32 %v1893, 16
        %v2044 = vrot.slane %v2042, 1
        %v2045 = vshll.u32 %v1893, 16
        %v2047 = vrot.slane %v2045, 2
        %v2048 = vor.u32 %v2044, %v2047
        %v2049 = vrot.slane %v1622, 1
        %v2050 = vrot.slane %v1618, 2
        %v2051 = vor.u32 %v2049, %v2050
        %v2052 = vsel %vm825, %v2048, %v2051
        %v2053 = vrot.slane %v1630, 1
        %v2054 = vrot.slane %v1626, 2
        %v2055 = vor.u32 %v2053, %v2054
        %v2056 = vsel %vm825, %v2051, %v2055
        %v2057 = vrot.slane %v1638, 1
        %v2058 = vrot.slane %v1634, 2
        %v2059 = vor.u32 %v2057, %v2058
        %v2060 = vsel %vm825, %v2055, %v2059
        %v2061 = vrot.slane %v1646, 1
        %v2062 = vrot.slane %v1642, 2
        %v2063 = vor.u32 %v2061, %v2062
        %v2064 = vsel %vm825, %v2059, %v2063
        %v2065 = vrot.slane %v1654, 1
        %v2066 = vrot.slane %v1650, 2
        %v2067 = vor.u32 %v2065, %v2066
        %v2068 = vsel %vm825, %v2063, %v2067
        %v2069 = vrot.slane %v1662, 1
        %v2070 = vrot.slane %v1658, 2
        %v2071 = vor.u32 %v2069, %v2070
        %v2072 = vsel %vm825, %v2067, %v2071
        %v2074 = vshrl.u32 %v2040, 16
        %v2076 = vrot.slane %v2074, 1
        %v2077 = vshll.u32 %v2040, 16
        %v2079 = vrot.slane %v2077, 2
        %v2080 = vor.u32 %v2076, %v2079
        %v2081 = vsel %vm825, %v2071, %v2080
        %v2083 = vsel %vm449, %v2052, 0
        %v2086 = vsel %vm449, %v2056, 0
        %v2089 = vsel %vm449, %v2060, 0
        %v2092 = vsel %vm449, %v2064, 0
        %v2095 = vsel %vm449, %v2068, 0
        %v2098 = vsel %vm449, %v2072, 0
        %v2101 = vsel %vm449, %v2081, 0
        %v2104 = vsel %vm471, %v2037, 0
        %2106 = vmatprep.subr.bf16.mxu0 0
        %2107 = vmatpush1.bf16.msra.mxu0 %v2104
        %2108 = vmatprep.subr.bf16.mxu0 0
        %2109 = vmatpush1.bf16.msra.mxu0 0
        %2110 = vmatprep.subr.bf16.mxu0 0
        %2111 = vmatpush1.bf16.msra.mxu0 0
        %2112 = vmatprep.subr.bf16.mxu0 0
        %2113 = vmatpush1.bf16.msra.mxu0 0
        %2114 = vmatprep.subr.bf16.mxu0 0
        %2115 = vmatpush1.bf16.msra.mxu0 0
        %2116 = vmatprep.subr.bf16.mxu0 0
        %2117 = vmatpush1.bf16.msra.mxu0 0
        %2118 = vmatprep.subr.bf16.mxu0 0
        %2119 = vmatpush1.bf16.msra.mxu0 0
        %2120 = vmatprep.subr.bf16.mxu0 0
        %2121 = vmatpush1.bf16.msra.mxu0 0
        %2122 = vmatprep.subr.bf16.mxu0 0
        %2123 = vmatpush1.bf16.msra.mxu0 0
        %2124 = vmatprep.subr.bf16.mxu0 0
        %2125 = vmatpush1.bf16.msra.mxu0 0
        %2126 = vmatprep.subr.bf16.mxu0 0
        %2127 = vmatpush1.bf16.msra.mxu0 0
        %2128 = vmatprep.subr.bf16.mxu0 0
        %2129 = vmatpush1.bf16.msra.mxu0 0
        %2130 = vmatprep.subr.bf16.mxu0 0
        %2131 = vmatpush1.bf16.msra.mxu0 0
        %2132 = vmatprep.subr.bf16.mxu0 0
        %2133 = vmatpush1.bf16.msra.mxu0 0
        %2134 = vmatprep.subr.bf16.mxu0 0
        %2135 = vmatpush1.bf16.msra.mxu0 0
        %2136 = vmatprep.subr.bf16.mxu0 0
        %2137 = vmatpush1.bf16.msra.mxu0 0
        %2138 = vmatprep.mubr.bf16.mxu0 0
        %2139 = vmatmul.mubr.bf16.gmra.mrb[0].mxu0 %v2083
        %v2140 = vpop.f32.mrb[0].mxu0
        %v2141 = vadd.f32 0.0, %v2140
        %v2142 = vpop.f32.mrb[0].mxu0
        %v2143 = vpop.f32.mrb[0].mxu0
        %v2144 = vadd.f32 0.0, %v2143
        %v2145 = vpop.f32.mrb[0].mxu0
        %2146 = vmatprep.mubr.bf16.mxu0 0
        %2147 = vmatmul.mubr.bf16.gmra.mrb[0].mxu0 %v2086
        %v2148 = vpop.f32.mrb[0].mxu0
        %v2149 = vadd.f32 0.0, %v2148
        %v2150 = vpop.f32.mrb[0].mxu0
        %v2151 = vpop.f32.mrb[0].mxu0
        %v2152 = vadd.f32 0.0, %v2151
        %v2153 = vpop.f32.mrb[0].mxu0
        %2154 = vmatprep.mubr.bf16.mxu0 0
        %2155 = vmatmul.mubr.bf16.gmra.mrb[0].mxu0 %v2089
        %v2156 = vpop.f32.mrb[0].mxu0
        %v2157 = vadd.f32 0.0, %v2156
        %v2158 = vpop.f32.mrb[0].mxu0
        %v2159 = vpop.f32.mrb[0].mxu0
        %v2160 = vadd.f32 0.0, %v2159
        %v2161 = vpop.f32.mrb[0].mxu0
        %2162 = vmatprep.mubr.bf16.mxu0 0
        %2163 = vmatmul.mubr.bf16.gmra.mrb[0].mxu0 %v2092
        %v2164 = vpop.f32.mrb[0].mxu0
        %v2165 = vadd.f32 0.0, %v2164
        %v2166 = vpop.f32.mrb[0].mxu0
        %v2167 = vpop.f32.mrb[0].mxu0
        %v2168 = vadd.f32 0.0, %v2167
        %v2169 = vpop.f32.mrb[0].mxu0
        %2170 = vmatprep.mubr.bf16.mxu0 0
        %2171 = vmatmul.mubr.bf16.gmra.mrb[0].mxu0 %v2095
        %v2172 = vpop.f32.mrb[0].mxu0
        %v2173 = vadd.f32 0.0, %v2172
        %v2174 = vpop.f32.mrb[0].mxu0
        %v2175 = vpop.f32.mrb[0].mxu0
        %v2176 = vadd.f32 0.0, %v2175
        %v2177 = vpop.f32.mrb[0].mxu0
        %2178 = vmatprep.mubr.bf16.mxu0 0
        %2179 = vmatmul.mubr.bf16.gmra.mrb[0].mxu0 %v2098
        %v2180 = vpop.f32.mrb[0].mxu0
        %v2181 = vadd.f32 0.0, %v2180
        %v2182 = vpop.f32.mrb[0].mxu0
        %v2183 = vpop.f32.mrb[0].mxu0
        %v2184 = vadd.f32 0.0, %v2183
        %v2185 = vpop.f32.mrb[0].mxu0
        %2186 = vmatprep.mubr.bf16.mxu0 0
        %2187 = vmatmul.mubr.bf16.gmra.mrb[0].mxu0 %v2101
        %v2188 = vpop.f32.mrb[0].mxu0
        %v2189 = vadd.f32 0.0, %v2188
        %v2190 = vpop.f32.mrb[0].mxu0
        %v2191 = vpop.f32.mrb[0].mxu0
        %v2192 = vadd.f32 0.0, %v2191
        %v2193 = vpop.f32.mrb[0].mxu0
        %2194 = vdwg.mxu0
        %v2195 = vadd.f32 %v2022, %v2141
        %v2196 = vadd.f32 %v2023, %v2144
        %v2197 = vadd.f32 %v2024, %v2149
        %v2198 = vadd.f32 %v2025, %v2152
        %v2199 = vadd.f32 %v2026, %v2157
        %v2200 = vadd.f32 %v2027, %v2160
        %v2201 = vadd.f32 %v2028, %v2165
        %v2202 = vadd.f32 %v2029, %v2168
        %v2203 = vadd.f32 %v2030, %v2173
        %v2204 = vadd.f32 %v2031, %v2176
        %v2205 = vadd.f32 %v2032, %v2181
        %v2206 = vadd.f32 %v2033, %v2184
        %v2207 = vadd.f32 %v2034, %v2189
        %v2208 = vadd.f32 %v2035, %v2192
        %v2209 = vld [vmem:[%s329 + $0x38] sm:$0xc]
        %v2210 = vld [vmem:[%s995] sm:$0x3]
        %v2212 = vunpack.c.l.b16 %v2209
        %v2213 = vpack.c.b16 %v1588, %v2212
        %v2214 = vrot.slane %v2213, 2
        %v2215 = vrot.slane %v1603, 2
        %v2216 = vsel %vm1000, %v2214, %v2215
        %v2217 = vrot.slane %v1604, 2
        %v2218 = vsel %vm1000, %v2215, %v2217
        %v2219 = vrot.slane %v1605, 2
        %v2220 = vsel %vm1000, %v2217, %v2219
        %v2221 = vrot.slane %v1606, 2
        %v2222 = vsel %vm1000, %v2219, %v2221
        %v2223 = vrot.slane %v1607, 2
        %v2224 = vsel %vm1000, %v2221, %v2223
        %v2225 = vrot.slane %v1608, 2
        %v2226 = vsel %vm1000, %v2223, %v2225
        %v2227 = vrot.slane %v2040, 2
        %v2228 = vsel %vm1000, %v2225, %v2227
        %v2230 = vsel %vm449, %v2216, 0
        %v2233 = vsel %vm449, %v2218, 0
        %v2236 = vsel %vm449, %v2220, 0
        %v2239 = vsel %vm449, %v2222, 0
        %v2242 = vsel %vm449, %v2224, 0
        %v2245 = vsel %vm449, %v2226, 0
        %v2248 = vsel %vm449, %v2228, 0
        %v2251 = vsel %vm471, %v2210, 0
        %2253 = vmatprep.subr.bf16.mxu0 0
        %2254 = vmatpush1.bf16.msra.mxu0 %v2251
        %2255 = vmatprep.subr.bf16.mxu0 0
        %2256 = vmatpush1.bf16.msra.mxu0 0
        %2257 = vmatprep.subr.bf16.mxu0 0
        %2258 = vmatpush1.bf16.msra.mxu0 0
        %2259 = vmatprep.subr.bf16.mxu0 0
        %2260 = vmatpush1.bf16.msra.mxu0 0
        %2261 = vmatprep.subr.bf16.mxu0 0
        %2262 = vmatpush1.bf16.msra.mxu0 0
        %2263 = vmatprep.subr.bf16.mxu0 0
        %2264 = vmatpush1.bf16.msra.mxu0 0
        %2265 = vmatprep.subr.bf16.mxu0 0
        %2266 = vmatpush1.bf16.msra.mxu0 0
        %2267 = vmatprep.subr.bf16.mxu0 0
        %2268 = vmatpush1.bf16.msra.mxu0 0
        %2269 = vmatprep.subr.bf16.mxu0 0
        %2270 = vmatpush1.bf16.msra.mxu0 0
        %2271 = vmatprep.subr.bf16.mxu0 0
        %2272 = vmatpush1.bf16.msra.mxu0 0
        %2273 = vmatprep.subr.bf16.mxu0 0
        %2274 = vmatpush1.bf16.msra.mxu0 0
        %2275 = vmatprep.subr.bf16.mxu0 0
        %2276 = vmatpush1.bf16.msra.mxu0 0
        %2277 = vmatprep.subr.bf16.mxu0 0
        %2278 = vmatpush1.bf16.msra.mxu0 0
        %2279 = vmatprep.subr.bf16.mxu0 0
        %2280 = vmatpush1.bf16.msra.mxu0 0
        %2281 = vmatprep.subr.bf16.mxu0 0
        %2282 = vmatpush1.bf16.msra.mxu0 0
        %2283 = vmatprep.subr.bf16.mxu0 0
        %2284 = vmatpush1.bf16.msra.mxu0 0
        %2285 = vmatprep.mubr.bf16.mxu0 0
        %2286 = vmatmul.mubr.bf16.gmra.mrb[0].mxu0 %v2230
        %v2287 = vpop.f32.mrb[0].mxu0
        %v2288 = vadd.f32 0.0, %v2287
        %v2289 = vpop.f32.mrb[0].mxu0
        %v2290 = vpop.f32.mrb[0].mxu0
        %v2291 = vadd.f32 0.0, %v2290
        %v2292 = vpop.f32.mrb[0].mxu0
        %2293 = vmatprep.mubr.bf16.mxu0 0
        %2294 = vmatmul.mubr.bf16.gmra.mrb[0].mxu0 %v2233
        %v2295 = vpop.f32.mrb[0].mxu0
        %v2296 = vadd.f32 0.0, %v2295
        %v2297 = vpop.f32.mrb[0].mxu0
        %v2298 = vpop.f32.mrb[0].mxu0
        %v2299 = vadd.f32 0.0, %v2298
        %v2300 = vpop.f32.mrb[0].mxu0
        %2301 = vmatprep.mubr.bf16.mxu0 0
        %2302 = vmatmul.mubr.bf16.gmra.mrb[0].mxu0 %v2236
        %v2303 = vpop.f32.mrb[0].mxu0
        %v2304 = vadd.f32 0.0, %v2303
        %v2305 = vpop.f32.mrb[0].mxu0
        %v2306 = vpop.f32.mrb[0].mxu0
        %v2307 = vadd.f32 0.0, %v2306
        %v2308 = vpop.f32.mrb[0].mxu0
        %2309 = vmatprep.mubr.bf16.mxu0 0
        %2310 = vmatmul.mubr.bf16.gmra.mrb[0].mxu0 %v2239
        %v2311 = vpop.f32.mrb[0].mxu0
        %v2312 = vadd.f32 0.0, %v2311
        %v2313 = vpop.f32.mrb[0].mxu0
        %v2314 = vpop.f32.mrb[0].mxu0
        %v2315 = vadd.f32 0.0, %v2314
        %v2316 = vpop.f32.mrb[0].mxu0
        %2317 = vmatprep.mubr.bf16.mxu0 0
        %2318 = vmatmul.mubr.bf16.gmra.mrb[0].mxu0 %v2242
        %v2319 = vpop.f32.mrb[0].mxu0
        %v2320 = vadd.f32 0.0, %v2319
        %v2321 = vpop.f32.mrb[0].mxu0
        %v2322 = vpop.f32.mrb[0].mxu0
        %v2323 = vadd.f32 0.0, %v2322
        %v2324 = vpop.f32.mrb[0].mxu0
        %2325 = vmatprep.mubr.bf16.mxu0 0
        %2326 = vmatmul.mubr.bf16.gmra.mrb[0].mxu0 %v2245
        %v2327 = vpop.f32.mrb[0].mxu0
        %v2328 = vadd.f32 0.0, %v2327
        %v2329 = vpop.f32.mrb[0].mxu0
        %v2330 = vpop.f32.mrb[0].mxu0
        %v2331 = vadd.f32 0.0, %v2330
        %v2332 = vpop.f32.mrb[0].mxu0
        %2333 = vmatprep.mubr.bf16.mxu0 0
        %2334 = vmatmul.mubr.bf16.gmra.mrb[0].mxu0 %v2248
        %v2335 = vpop.f32.mrb[0].mxu0
        %v2336 = vadd.f32 0.0, %v2335
        %v2337 = vpop.f32.mrb[0].mxu0
        %v2338 = vpop.f32.mrb[0].mxu0
        %v2339 = vadd.f32 0.0, %v2338
        %v2340 = vpop.f32.mrb[0].mxu0
        %2341 = vdwg.mxu0
        %v2342 = vadd.f32 %v2195, %v2288
        %v2343 = vadd.f32 %v2196, %v2291
        %v2344 = vadd.f32 %v2197, %v2296
        %v2345 = vadd.f32 %v2198, %v2299
        %v2346 = vadd.f32 %v2199, %v2304
        %v2347 = vadd.f32 %v2200, %v2307
        %v2348 = vadd.f32 %v2201, %v2312
        %v2349 = vadd.f32 %v2202, %v2315
        %v2350 = vadd.f32 %v2203, %v2320
        %v2351 = vadd.f32 %v2204, %v2323
        %v2352 = vadd.f32 %v2205, %v2328
        %v2353 = vadd.f32 %v2206, %v2331
        %v2354 = vadd.f32 %v2207, %v2336
        %v2355 = vadd.f32 %v2208, %v2339
        %v2356 = vld [vmem:[%s329 + $0x70] sm:$0x7]
        %v2357 = vld [vmem:[%s1144] sm:$0x3]
        %v2359 = vunpack.c.l.b16 %v2356
        %v2360 = vpack.c.b16 %v2359, %v2359
        %v2362 = vshrl.u32 %v2213, 16
        %v2364 = vrot.slane %v2362, 2
        %v2365 = vshll.u32 %v2213, 16
        %v2367 = vrot.slane %v2365, 3
        %v2368 = vor.u32 %v2364, %v2367
        %v2369 = vrot.slane %v1622, 2
        %v2370 = vrot.slane %v1618, 3
        %v2371 = vor.u32 %v2369, %v2370
        %v2372 = vsel %vm1149, %v2368, %v2371
        %v2373 = vrot.slane %v1630, 2
        %v2374 = vrot.slane %v1626, 3
        %v2375 = vor.u32 %v2373, %v2374
        %v2376 = vsel %vm1149, %v2371, %v2375
        %v2377 = vrot.slane %v1638, 2
        %v2378 = vrot.slane %v1634, 3
        %v2379 = vor.u32 %v2377, %v2378
        %v2380 = vsel %vm1149, %v2375, %v2379
        %v2381 = vrot.slane %v1646, 2
        %v2382 = vrot.slane %v1642, 3
        %v2383 = vor.u32 %v2381, %v2382
        %v2384 = vsel %vm1149, %v2379, %v2383
        %v2385 = vrot.slane %v1654, 2
        %v2386 = vrot.slane %v1650, 3
        %v2387 = vor.u32 %v2385, %v2386
        %v2388 = vsel %vm1149, %v2383, %v2387
        %v2389 = vrot.slane %v1662, 2
        %v2390 = vrot.slane %v1658, 3
        %v2391 = vor.u32 %v2389, %v2390
        %v2392 = vsel %vm1149, %v2387, %v2391
        %v2394 = vshrl.u32 %v2360, 16
        %v2396 = vrot.slane %v2394, 2
        %v2397 = vshll.u32 %v2360, 16
        %v2399 = vrot.slane %v2397, 3
        %v2400 = vor.u32 %v2396, %v2399
        %v2401 = vsel %vm1149, %v2391, %v2400
        %v2403 = vsel %vm449, %v2372, 0
        %v2406 = vsel %vm449, %v2376, 0
        %v2409 = vsel %vm449, %v2380, 0
        %v2412 = vsel %vm449, %v2384, 0
        %v2415 = vsel %vm449, %v2388, 0
        %v2418 = vsel %vm449, %v2392, 0
        %v2421 = vsel %vm449, %v2401, 0
        %v2424 = vsel %vm471, %v2357, 0
        %2426 = vmatprep.subr.bf16.mxu0 0
        %2427 = vmatpush1.bf16.msra.mxu0 %v2424
        %2428 = vmatprep.subr.bf16.mxu0 0
        %2429 = vmatpush1.bf16.msra.mxu0 0
        %2430 = vmatprep.subr.bf16.mxu0 0
        %2431 = vmatpush1.bf16.msra.mxu0 0
        %2432 = vmatprep.subr.bf16.mxu0 0
        %2433 = vmatpush1.bf16.msra.mxu0 0
        %2434 = vmatprep.subr.bf16.mxu0 0
        %2435 = vmatpush1.bf16.msra.mxu0 0
        %2436 = vmatprep.subr.bf16.mxu0 0
        %2437 = vmatpush1.bf16.msra.mxu0 0
        %2438 = vmatprep.subr.bf16.mxu0 0
        %2439 = vmatpush1.bf16.msra.mxu0 0
        %2440 = vmatprep.subr.bf16.mxu0 0
        %2441 = vmatpush1.bf16.msra.mxu0 0
        %2442 = vmatprep.subr.bf16.mxu0 0
        %2443 = vmatpush1.bf16.msra.mxu0 0
        %2444 = vmatprep.subr.bf16.mxu0 0
        %2445 = vmatpush1.bf16.msra.mxu0 0
        %2446 = vmatprep.subr.bf16.mxu0 0
        %2447 = vmatpush1.bf16.msra.mxu0 0
        %2448 = vmatprep.subr.bf16.mxu0 0
        %2449 = vmatpush1.bf16.msra.mxu0 0
        %2450 = vmatprep.subr.bf16.mxu0 0
        %2451 = vmatpush1.bf16.msra.mxu0 0
        %2452 = vmatprep.subr.bf16.mxu0 0
        %2453 = vmatpush1.bf16.msra.mxu0 0
        %2454 = vmatprep.subr.bf16.mxu0 0
        %2455 = vmatpush1.bf16.msra.mxu0 0
        %2456 = vmatprep.subr.bf16.mxu0 0
        %2457 = vmatpush1.bf16.msra.mxu0 0
        %2458 = vmatprep.mubr.bf16.mxu0 0
        %2459 = vmatmul.mubr.bf16.gmra.mrb[0].mxu0 %v2403
        %v2460 = vpop.f32.mrb[0].mxu0
        %v2461 = vadd.f32 0.0, %v2460
        %v2462 = vpop.f32.mrb[0].mxu0
        %v2463 = vpop.f32.mrb[0].mxu0
        %v2464 = vadd.f32 0.0, %v2463
        %v2465 = vpop.f32.mrb[0].mxu0
        %2466 = vmatprep.mubr.bf16.mxu0 0
        %2467 = vmatmul.mubr.bf16.gmra.mrb[0].mxu0 %v2406
        %v2468 = vpop.f32.mrb[0].mxu0
        %v2469 = vadd.f32 0.0, %v2468
        %v2470 = vpop.f32.mrb[0].mxu0
        %v2471 = vpop.f32.mrb[0].mxu0
        %v2472 = vadd.f32 0.0, %v2471
        %v2473 = vpop.f32.mrb[0].mxu0
        %2474 = vmatprep.mubr.bf16.mxu0 0
        %2475 = vmatmul.mubr.bf16.gmra.mrb[0].mxu0 %v2409
        %v2476 = vpop.f32.mrb[0].mxu0
        %v2477 = vadd.f32 0.0, %v2476
        %v2478 = vpop.f32.mrb[0].mxu0
        %v2479 = vpop.f32.mrb[0].mxu0
        %v2480 = vadd.f32 0.0, %v2479
        %v2481 = vpop.f32.mrb[0].mxu0
        %2482 = vmatprep.mubr.bf16.mxu0 0
        %2483 = vmatmul.mubr.bf16.gmra.mrb[0].mxu0 %v2412
        %v2484 = vpop.f32.mrb[0].mxu0
        %v2485 = vadd.f32 0.0, %v2484
        %v2486 = vpop.f32.mrb[0].mxu0
        %v2487 = vpop.f32.mrb[0].mxu0
        %v2488 = vadd.f32 0.0, %v2487
        %v2489 = vpop.f32.mrb[0].mxu0
        %2490 = vmatprep.mubr.bf16.mxu0 0
        %2491 = vmatmul.mubr.bf16.gmra.mrb[0].mxu0 %v2415
        %v2492 = vpop.f32.mrb[0].mxu0
        %v2493 = vadd.f32 0.0, %v2492
        %v2494 = vpop.f32.mrb[0].mxu0
        %v2495 = vpop.f32.mrb[0].mxu0
        %v2496 = vadd.f32 0.0, %v2495
        %v2497 = vpop.f32.mrb[0].mxu0
        %2498 = vmatprep.mubr.bf16.mxu0 0
        %2499 = vmatmul.mubr.bf16.gmra.mrb[0].mxu0 %v2418
        %v2500 = vpop.f32.mrb[0].mxu0
        %v2501 = vadd.f32 0.0, %v2500
        %v2502 = vpop.f32.mrb[0].mxu0
        %v2503 = vpop.f32.mrb[0].mxu0
        %v2504 = vadd.f32 0.0, %v2503
        %v2505 = vpop.f32.mrb[0].mxu0
        %2506 = vmatprep.mubr.bf16.mxu0 0
        %2507 = vmatmul.mubr.bf16.gmra.mrb[0].mxu0 %v2421
        %v2508 = vpop.f32.mrb[0].mxu0
        %v2509 = vadd.f32 0.0, %v2508
        %v2510 = vpop.f32.mrb[0].mxu0
        %v2511 = vpop.f32.mrb[0].mxu0
        %v2512 = vadd.f32 0.0, %v2511
        %v2513 = vpop.f32.mrb[0].mxu0
        %2514 = vdwg.mxu0
        %v2515 = vadd.f32 %v2342, %v2461
        %v2516 = vadd.f32 %v2343, %v2464
        %v2517 = vadd.f32 %v2344, %v2469
        %v2518 = vadd.f32 %v2345, %v2472
        %v2519 = vadd.f32 %v2346, %v2477
        %v2520 = vadd.f32 %v2347, %v2480
        %v2521 = vadd.f32 %v2348, %v2485
        %v2522 = vadd.f32 %v2349, %v2488
        %v2523 = vadd.f32 %v2350, %v2493
        %v2524 = vadd.f32 %v2351, %v2496
        %v2525 = vadd.f32 %v2352, %v2501
        %v2526 = vadd.f32 %v2353, %v2504
        %v2527 = vadd.f32 %v2354, %v2509
        %v2528 = vadd.f32 %v2355, %v2512
        %v2529 = vld [vmem:[%s329 + $0x38] sm:$0x8]
        %v2530 = vld [vmem:[%s1319] sm:$0x3]
        %v2532 = vunpack.c.l.b16 %v2529
        %v2533 = vpack.c.b16 %v1588, %v2532
        %v2534 = vrot.slane %v2533, 3
        %v2535 = vrot.slane %v1603, 3
        %v2536 = vsel %vm1324, %v2534, %v2535
        %v2537 = vrot.slane %v1604, 3
        %v2538 = vsel %vm1324, %v2535, %v2537
        %v2539 = vrot.slane %v1605, 3
        %v2540 = vsel %vm1324, %v2537, %v2539
        %v2541 = vrot.slane %v1606, 3
        %v2542 = vsel %vm1324, %v2539, %v2541
        %v2543 = vrot.slane %v1607, 3
        %v2544 = vsel %vm1324, %v2541, %v2543
        %v2545 = vrot.slane %v1608, 3
        %v2546 = vsel %vm1324, %v2543, %v2545
        %v2547 = vrot.slane %v2360, 3
        %v2548 = vsel %vm1324, %v2545, %v2547
        %v2550 = vsel %vm449, %v2536, 0
        %v2553 = vsel %vm449, %v2538, 0
        %v2556 = vsel %vm449, %v2540, 0
        %v2559 = vsel %vm449, %v2542, 0
        %v2562 = vsel %vm449, %v2544, 0
        %v2565 = vsel %vm449, %v2546, 0
        %v2568 = vsel %vm449, %v2548, 0
        %v2571 = vsel %vm471, %v2530, 0
        %2573 = vmatprep.subr.bf16.mxu0 0
        %2574 = vmatpush1.bf16.msra.mxu0 %v2571
        %2575 = vmatprep.subr.bf16.mxu0 0
        %2576 = vmatpush1.bf16.msra.mxu0 0
        %2577 = vmatprep.subr.bf16.mxu0 0
        %2578 = vmatpush1.bf16.msra.mxu0 0
        %2579 = vmatprep.subr.bf16.mxu0 0
        %2580 = vmatpush1.bf16.msra.mxu0 0
        %2581 = vmatprep.subr.bf16.mxu0 0
        %2582 = vmatpush1.bf16.msra.mxu0 0
        %2583 = vmatprep.subr.bf16.mxu0 0
        %2584 = vmatpush1.bf16.msra.mxu0 0
        %2585 = vmatprep.subr.bf16.mxu0 0
        %2586 = vmatpush1.bf16.msra.mxu0 0
        %2587 = vmatprep.subr.bf16.mxu0 0
        %2588 = vmatpush1.bf16.msra.mxu0 0
        %2589 = vmatprep.subr.bf16.mxu0 0
        %2590 = vmatpush1.bf16.msra.mxu0 0
        %2591 = vmatprep.subr.bf16.mxu0 0
        %2592 = vmatpush1.bf16.msra.mxu0 0
        %2593 = vmatprep.subr.bf16.mxu0 0
        %2594 = vmatpush1.bf16.msra.mxu0 0
        %2595 = vmatprep.subr.bf16.mxu0 0
        %2596 = vmatpush1.bf16.msra.mxu0 0
        %2597 = vmatprep.subr.bf16.mxu0 0
        %2598 = vmatpush1.bf16.msra.mxu0 0
        %2599 = vmatprep.subr.bf16.mxu0 0
        %2600 = vmatpush1.bf16.msra.mxu0 0
        %2601 = vmatprep.subr.bf16.mxu0 0
        %2602 = vmatpush1.bf16.msra.mxu0 0
        %2603 = vmatprep.subr.bf16.mxu0 0
        %2604 = vmatpush1.bf16.msra.mxu0 0
        %2605 = vmatprep.mubr.bf16.mxu0 0
        %2606 = vmatmul.mubr.bf16.gmra.mrb[0].mxu0 %v2550
        %v2607 = vpop.f32.mrb[0].mxu0
        %v2608 = vadd.f32 0.0, %v2607
        %v2609 = vpop.f32.mrb[0].mxu0
        %v2610 = vpop.f32.mrb[0].mxu0
        %v2611 = vadd.f32 0.0, %v2610
        %v2612 = vpop.f32.mrb[0].mxu0
        %2613 = vmatprep.mubr.bf16.mxu0 0
        %2614 = vmatmul.mubr.bf16.gmra.mrb[0].mxu0 %v2553
        %v2615 = vpop.f32.mrb[0].mxu0
        %v2616 = vadd.f32 0.0, %v2615
        %v2617 = vpop.f32.mrb[0].mxu0
        %v2618 = vpop.f32.mrb[0].mxu0
        %v2619 = vadd.f32 0.0, %v2618
        %v2620 = vpop.f32.mrb[0].mxu0
        %2621 = vmatprep.mubr.bf16.mxu0 0
        %2622 = vmatmul.mubr.bf16.gmra.mrb[0].mxu0 %v2556
        %v2623 = vpop.f32.mrb[0].mxu0
        %v2624 = vadd.f32 0.0, %v2623
        %v2625 = vpop.f32.mrb[0].mxu0
        %v2626 = vpop.f32.mrb[0].mxu0
        %v2627 = vadd.f32 0.0, %v2626
        %v2628 = vpop.f32.mrb[0].mxu0
        %2629 = vmatprep.mubr.bf16.mxu0 0
        %2630 = vmatmul.mubr.bf16.gmra.mrb[0].mxu0 %v2559
        %v2631 = vpop.f32.mrb[0].mxu0
        %v2632 = vadd.f32 0.0, %v2631
        %v2633 = vpop.f32.mrb[0].mxu0
        %v2634 = vpop.f32.mrb[0].mxu0
        %v2635 = vadd.f32 0.0, %v2634
        %v2636 = vpop.f32.mrb[0].mxu0
        %2637 = vmatprep.mubr.bf16.mxu0 0
        %2638 = vmatmul.mubr.bf16.gmra.mrb[0].mxu0 %v2562
        %v2639 = vpop.f32.mrb[0].mxu0
        %v2640 = vadd.f32 0.0, %v2639
        %v2641 = vpop.f32.mrb[0].mxu0
        %v2642 = vpop.f32.mrb[0].mxu0
        %v2643 = vadd.f32 0.0, %v2642
        %v2644 = vpop.f32.mrb[0].mxu0
        %2645 = vmatprep.mubr.bf16.mxu0 0
        %2646 = vmatmul.mubr.bf16.gmra.mrb[0].mxu0 %v2565
        %v2647 = vpop.f32.mrb[0].mxu0
        %v2648 = vadd.f32 0.0, %v2647
        %v2649 = vpop.f32.mrb[0].mxu0
        %v2650 = vpop.f32.mrb[0].mxu0
        %v2651 = vadd.f32 0.0, %v2650
        %v2652 = vpop.f32.mrb[0].mxu0
        %2653 = vmatprep.mubr.bf16.mxu0 0
        %2654 = vmatmul.mubr.bf16.gmra.mrb[0].mxu0 %v2568
        %v2655 = vpop.f32.mrb[0].mxu0
        %v2656 = vadd.f32 0.0, %v2655
        %v2657 = vpop.f32.mrb[0].mxu0
        %v2658 = vpop.f32.mrb[0].mxu0
        %v2659 = vadd.f32 0.0, %v2658
        %v2660 = vpop.f32.mrb[0].mxu0
        %2661 = vdwg.mxu0
        %v2662 = vadd.f32 %v2515, %v2608
        %v2663 = vadd.f32 %v2516, %v2611
        %v2664 = vadd.f32 %v2517, %v2616
        %v2665 = vadd.f32 %v2518, %v2619
        %v2666 = vadd.f32 %v2519, %v2624
        %v2667 = vadd.f32 %v2520, %v2627
        %v2668 = vadd.f32 %v2521, %v2632
        %v2669 = vadd.f32 %v2522, %v2635
        %v2670 = vadd.f32 %v2523, %v2640
        %v2671 = vadd.f32 %v2524, %v2643
        %v2672 = vadd.f32 %v2525, %v2648
        %v2673 = vadd.f32 %v2526, %v2651
        %v2674 = vadd.f32 %v2527, %v2656
        %v2675 = vadd.f32 %v2528, %v2659
        %v2676 = vadd.f32 %v2662, %v1471
        %v2677 = vadd.f32 %v2663, %v1471
        %v2678 = vadd.f32 %v2664, %v1471
        %v2679 = vadd.f32 %v2665, %v1471
        %v2680 = vadd.f32 %v2666, %v1471
        %v2681 = vadd.f32 %v2667, %v1471
        %v2682 = vadd.f32 %v2668, %v1471
        %v2683 = vadd.f32 %v2669, %v1471
        %v2684 = vadd.f32 %v2670, %v1471
        %v2685 = vadd.f32 %v2671, %v1471
        %v2686 = vadd.f32 %v2672, %v1471
        %v2687 = vadd.f32 %v2673, %v1471
        %v2688 = vadd.f32 %v2674, %v1471
        %v2689 = vadd.f32 %v2675, %v1471
        %v2690 = vmax.f32 %v2676, 0.0
        %v2691 = vmax.f32 %v2677, 0.0
        %v2692 = vmax.f32 %v2678, 0.0
        %v2693 = vmax.f32 %v2679, 0.0
        %v2694 = vmax.f32 %v2680, 0.0
        %v2695 = vmax.f32 %v2681, 0.0
        %v2696 = vmax.f32 %v2682, 0.0
        %v2697 = vmax.f32 %v2683, 0.0
        %v2698 = vmax.f32 %v2684, 0.0
        %v2699 = vmax.f32 %v2685, 0.0
        %v2700 = vmax.f32 %v2686, 0.0
        %v2701 = vmax.f32 %v2687, 0.0
        %v2702 = vmax.f32 %v2688, 0.0
        %v2703 = vmax.f32 %v2689, 0.0
        %2704 = vst.msk [vmem:[#allocation2] sm:$0xff] %vm1501, %v2690
        %2705 = vst.msk [vmem:[#allocation2 + $0x8] sm:$0xff] %vm1501, %v2691
        %2706 = vst.msk [vmem:[#allocation2 + $0x10] sm:$0xff] %vm1501, %v2692
        %2707 = vst.msk [vmem:[#allocation2 + $0x18] sm:$0xff] %vm1501, %v2693
        %2708 = vst.msk [vmem:[#allocation2 + $0x20] sm:$0xff] %vm1501, %v2694
        %2709 = vst.msk [vmem:[#allocation2 + $0x28] sm:$0xff] %vm1501, %v2695
        %2710 = vst.msk [vmem:[#allocation2 + $0x30] sm:$0xff] %vm1501, %v2696
        %2711 = vst.msk [vmem:[#allocation2 + $0x38] sm:$0xff] %vm1501, %v2697
        %2712 = vst.msk [vmem:[#allocation2 + $0x40] sm:$0xff] %vm1501, %v2698
        %2713 = vst.msk [vmem:[#allocation2 + $0x48] sm:$0xff] %vm1501, %v2699
        %2714 = vst.msk [vmem:[#allocation2 + $0x50] sm:$0xff] %vm1501, %v2700
        %2715 = vst.msk [vmem:[#allocation2 + $0x58] sm:$0xff] %vm1501, %v2701
        %2716 = vst.msk [vmem:[#allocation2 + $0x60] sm:$0xff] %vm1501, %v2702
        %2717 = vst.msk [vmem:[#allocation2 + $0x68] sm:$0xff] %vm1501, %v2703
        %v2718 = vld [vmem:[#allocation2] ss:$7 sm:$0xff]
        %v2719 = vld [vmem:[%s1517] ss:$7 sm:$0xff]
        %v2720 = vld [vmem:[%s1519] ss:$7 sm:$0xff]
        %v2721 = vld [vmem:[%s1521] ss:$7 sm:$0xff]
        %v2722 = vmax.f32 %v2718, %v2720
        %v2723 = vmax.f32 %v2719, %v2721
        %v2724 = vld [vmem:[%s1525] ss:$7 sm:$0xff]
        %v2725 = vld [vmem:[%s1527] ss:$7 sm:$0xff]
        %v2726 = vmax.f32 %v2722, %v2724
        %v2727 = vmax.f32 %v2723, %v2725
        %v2728 = vld [vmem:[%s1531] ss:$7 sm:$0xff]
        %v2729 = vld [vmem:[%s1533] ss:$7 sm:$0xff]
        %v2730 = vmax.f32 %v2726, %v2728
        %v2731 = vmax.f32 %v2727, %v2729
        %v2732 = vld [vmem:[%s1537] ss:$7 sm:$0xff]
        %v2733 = vld [vmem:[%s1539] ss:$7 sm:$0xff]
        %v2734 = vmax.f32 %v2730, %v2732
        %v2735 = vmax.f32 %v2731, %v2733
        %v2736 = vld [vmem:[%s1543] ss:$7 sm:$0xff]
        %v2737 = vld [vmem:[%s1545] ss:$7 sm:$0xff]
        %v2738 = vmax.f32 %v2734, %v2736
        %v2739 = vmax.f32 %v2735, %v2737
        %v2740 = vld [vmem:[%s1549] ss:$7 sm:$0xff]
        %v2741 = vld [vmem:[%s1551] ss:$7 sm:$0xff]
        %v2742 = vmax.f32 %v2738, %v2740
        %v2743 = vmax.f32 %v2739, %v2741
        %v2744 = vld [vmem:[%s329 + $0x70] sm:$0xf]
        %v2745 = vld [vmem:[%s329 + $0x74] sm:$0xf]
        %v2746 = vld [vmem:[%s329 + $0x78] sm:$0xf]
        %v2747 = vld [vmem:[%s329 + $0x7c] sm:$0xf]
        %v2748 = vld [vmem:[%s329 + $0x80] sm:$0xf]
        %v2749 = vld [vmem:[%s329 + $0x84] sm:$0xf]
        %v2750 = vld [vmem:[%s329 + $0x88] sm:$0xf]
        %v2751 = vld [vmem:[%s329 + $0x8c] sm:$0xf]
        %v2752 = vld [vmem:[%s329 + $0x90] sm:$0xf]
        %v2753 = vld [vmem:[%s329 + $0x94] sm:$0xf]
        %v2754 = vld [vmem:[%s329 + $0x98] sm:$0xf]
        %v2755 = vld [vmem:[%s329 + $0x9c] sm:$0xf]
        %v2756 = vld [vmem:[%s329 + $0xa0] sm:$0xf]
        %v2757 = vld [vmem:[%s329 + $0xa4] sm:$0xf]
        %v2758 = vld [vmem:[%s1] sm:$0x3]
        %v2759 = vld [vmem:[%s329 + $0xa8] sm:$0x1]
        %v2760 = vld [vmem:[%s348] sm:$0x3]
        %v2776 = vunpack.c.l.b16 %v2744
        %v2777 = vunpack.c.l.b16 %v2745
        %v2778 = vunpack.c.l.b16 %v2746
        %v2779 = vunpack.c.l.b16 %v2747
        %v2780 = vunpack.c.l.b16 %v2748
        %v2781 = vunpack.c.l.b16 %v2749
        %v2782 = vunpack.c.l.b16 %v2750
        %v2783 = vunpack.c.l.b16 %v2751
        %v2784 = vunpack.c.l.b16 %v2752
        %v2785 = vunpack.c.l.b16 %v2753
        %v2786 = vunpack.c.l.b16 %v2754
        %v2787 = vunpack.c.l.b16 %v2755
        %v2788 = vunpack.c.l.b16 %v2756
        %v2789 = vunpack.c.l.b16 %v2757
        %v2790 = vunpack.c.l.b16 %v2759
        %v2791 = vpack.c.b16 %v2777, %v2776
        %v2792 = vpack.c.b16 %v2779, %v2778
        %v2793 = vpack.c.b16 %v2781, %v2780
        %v2794 = vpack.c.b16 %v2783, %v2782
        %v2795 = vpack.c.b16 %v2785, %v2784
        %v2796 = vpack.c.b16 %v2787, %v2786
        %v2797 = vpack.c.b16 %v2789, %v2788
        %v2798 = vpack.c.b16 %v2790, %v2790
        %v2800 = vshrl.u32 %v2791, 16
        %v2802 = vshll.u32 %v2791, 16
        %v2804 = vrot.slane %v2802, 1
        %v2805 = vor.u32 %v2800, %v2804
        %v2807 = vshll.u32 %v2792, 16
        %v2809 = vrot.slane %v2807, 1
        %v2810 = vsel %vm388, %v2805, %v2809
        %v2811 = vshrl.u32 %v2792, 16
        %v2813 = vor.u32 %v2811, %v2809
        %v2815 = vshll.u32 %v2793, 16
        %v2817 = vrot.slane %v2815, 1
        %v2818 = vsel %vm388, %v2813, %v2817
        %v2819 = vshrl.u32 %v2793, 16
        %v2821 = vor.u32 %v2819, %v2817
        %v2823 = vshll.u32 %v2794, 16
        %v2825 = vrot.slane %v2823, 1
        %v2826 = vsel %vm388, %v2821, %v2825
        %v2827 = vshrl.u32 %v2794, 16
        %v2829 = vor.u32 %v2827, %v2825
        %v2831 = vshll.u32 %v2795, 16
        %v2833 = vrot.slane %v2831, 1
        %v2834 = vsel %vm388, %v2829, %v2833
        %v2835 = vshrl.u32 %v2795, 16
        %v2837 = vor.u32 %v2835, %v2833
        %v2839 = vshll.u32 %v2796, 16
        %v2841 = vrot.slane %v2839, 1
        %v2842 = vsel %vm388, %v2837, %v2841
        %v2843 = vshrl.u32 %v2796, 16
        %v2845 = vor.u32 %v2843, %v2841
        %v2847 = vshll.u32 %v2797, 16
        %v2849 = vrot.slane %v2847, 1
        %v2850 = vsel %vm388, %v2845, %v2849
        %v2851 = vshrl.u32 %v2797, 16
        %v2853 = vor.u32 %v2851, %v2849
        %v2855 = vshll.u32 %v2798, 16
        %v2857 = vrot.slane %v2855, 1
        %v2858 = vsel %vm388, %v2853, %v2857
        %v2860 = vsel %vm449, %v2810, 0
        %v2863 = vsel %vm449, %v2818, 0
        %v2866 = vsel %vm449, %v2826, 0
        %v2869 = vsel %vm449, %v2834, 0
        %v2872 = vsel %vm449, %v2842, 0
        %v2875 = vsel %vm449, %v2850, 0
        %v2878 = vsel %vm449, %v2858, 0
        %v2881 = vsel %vm471, %v2760, 0
        %2883 = vmatprep.subr.bf16.mxu0 0
        %2884 = vmatpush1.bf16.msra.mxu0 %v2881
        %2885 = vmatprep.subr.bf16.mxu0 0
        %2886 = vmatpush1.bf16.msra.mxu0 0
        %2887 = vmatprep.subr.bf16.mxu0 0
        %2888 = vmatpush1.bf16.msra.mxu0 0
        %2889 = vmatprep.subr.bf16.mxu0 0
        %2890 = vmatpush1.bf16.msra.mxu0 0
        %2891 = vmatprep.subr.bf16.mxu0 0
        %2892 = vmatpush1.bf16.msra.mxu0 0
        %2893 = vmatprep.subr.bf16.mxu0 0
        %2894 = vmatpush1.bf16.msra.mxu0 0
        %2895 = vmatprep.subr.bf16.mxu0 0
        %2896 = vmatpush1.bf16.msra.mxu0 0
        %2897 = vmatprep.subr.bf16.mxu0 0
        %2898 = vmatpush1.bf16.msra.mxu0 0
        %2899 = vmatprep.subr.bf16.mxu0 0
        %2900 = vmatpush1.bf16.msra.mxu0 0
        %2901 = vmatprep.subr.bf16.mxu0 0
        %2902 = vmatpush1.bf16.msra.mxu0 0
        %2903 = vmatprep.subr.bf16.mxu0 0
        %2904 = vmatpush1.bf16.msra.mxu0 0
        %2905 = vmatprep.subr.bf16.mxu0 0
        %2906 = vmatpush1.bf16.msra.mxu0 0
        %2907 = vmatprep.subr.bf16.mxu0 0
        %2908 = vmatpush1.bf16.msra.mxu0 0
        %2909 = vmatprep.subr.bf16.mxu0 0
        %2910 = vmatpush1.bf16.msra.mxu0 0
        %2911 = vmatprep.subr.bf16.mxu0 0
        %2912 = vmatpush1.bf16.msra.mxu0 0
        %2913 = vmatprep.subr.bf16.mxu0 0
        %2914 = vmatpush1.bf16.msra.mxu0 0
        %2915 = vmatprep.mubr.bf16.mxu0 0
        %2916 = vmatmul.mubr.bf16.gmra.mrb[0].mxu0 %v2860
        %v2917 = vpop.f32.mrb[0].mxu0
        %v2918 = vadd.f32 0.0, %v2917
        %v2919 = vpop.f32.mrb[0].mxu0
        %v2920 = vpop.f32.mrb[0].mxu0
        %v2921 = vadd.f32 0.0, %v2920
        %v2922 = vpop.f32.mrb[0].mxu0
        %2923 = vmatprep.mubr.bf16.mxu0 0
        %2924 = vmatmul.mubr.bf16.gmra.mrb[0].mxu0 %v2863
        %v2925 = vpop.f32.mrb[0].mxu0
        %v2926 = vadd.f32 0.0, %v2925
        %v2927 = vpop.f32.mrb[0].mxu0
        %v2928 = vpop.f32.mrb[0].mxu0
        %v2929 = vadd.f32 0.0, %v2928
        %v2930 = vpop.f32.mrb[0].mxu0
        %2931 = vmatprep.mubr.bf16.mxu0 0
        %2932 = vmatmul.mubr.bf16.gmra.mrb[0].mxu0 %v2866
        %v2933 = vpop.f32.mrb[0].mxu0
        %v2934 = vadd.f32 0.0, %v2933
        %v2935 = vpop.f32.mrb[0].mxu0
        %v2936 = vpop.f32.mrb[0].mxu0
        %v2937 = vadd.f32 0.0, %v2936
        %v2938 = vpop.f32.mrb[0].mxu0
        %2939 = vmatprep.mubr.bf16.mxu0 0
        %2940 = vmatmul.mubr.bf16.gmra.mrb[0].mxu0 %v2869
        %v2941 = vpop.f32.mrb[0].mxu0
        %v2942 = vadd.f32 0.0, %v2941
        %v2943 = vpop.f32.mrb[0].mxu0
        %v2944 = vpop.f32.mrb[0].mxu0
        %v2945 = vadd.f32 0.0, %v2944
        %v2946 = vpop.f32.mrb[0].mxu0
        %2947 = vmatprep.mubr.bf16.mxu0 0
        %2948 = vmatmul.mubr.bf16.gmra.mrb[0].mxu0 %v2872
        %v2949 = vpop.f32.mrb[0].mxu0
        %v2950 = vadd.f32 0.0, %v2949
        %v2951 = vpop.f32.mrb[0].mxu0
        %v2952 = vpop.f32.mrb[0].mxu0
        %v2953 = vadd.f32 0.0, %v2952
        %v2954 = vpop.f32.mrb[0].mxu0
        %2955 = vmatprep.mubr.bf16.mxu0 0
        %2956 = vmatmul.mubr.bf16.gmra.mrb[0].mxu0 %v2875
        %v2957 = vpop.f32.mrb[0].mxu0
        %v2958 = vadd.f32 0.0, %v2957
        %v2959 = vpop.f32.mrb[0].mxu0
        %v2960 = vpop.f32.mrb[0].mxu0
        %v2961 = vadd.f32 0.0, %v2960
        %v2962 = vpop.f32.mrb[0].mxu0
        %2963 = vmatprep.mubr.bf16.mxu0 0
        %2964 = vmatmul.mubr.bf16.gmra.mrb[0].mxu0 %v2878
        %v2965 = vpop.f32.mrb[0].mxu0
        %v2966 = vadd.f32 0.0, %v2965
        %v2967 = vpop.f32.mrb[0].mxu0
        %v2968 = vpop.f32.mrb[0].mxu0
        %v2969 = vadd.f32 0.0, %v2968
        %v2970 = vpop.f32.mrb[0].mxu0
        %2971 = vdwg.mxu0
        %v2972 = vsel %vm449, %v2791, 0
        %v2974 = vsel %vm449, %v2792, 0
        %v2976 = vsel %vm449, %v2793, 0
        %v2978 = vsel %vm449, %v2794, 0
        %v2980 = vsel %vm449, %v2795, 0
        %v2982 = vsel %vm449, %v2796, 0
        %v2984 = vsel %vm449, %v2797, 0
        %v2987 = vsel %vm471, %v2758, 0
        %2989 = vmatprep.subr.bf16.mxu0 0
        %2990 = vmatpush1.bf16.msra.mxu0 %v2987
        %2991 = vmatprep.subr.bf16.mxu0 0
        %2992 = vmatpush1.bf16.msra.mxu0 0
        %2993 = vmatprep.subr.bf16.mxu0 0
        %2994 = vmatpush1.bf16.msra.mxu0 0
        %2995 = vmatprep.subr.bf16.mxu0 0
        %2996 = vmatpush1.bf16.msra.mxu0 0
        %2997 = vmatprep.subr.bf16.mxu0 0
        %2998 = vmatpush1.bf16.msra.mxu0 0
        %2999 = vmatprep.subr.bf16.mxu0 0
        %3000 = vmatpush1.bf16.msra.mxu0 0
        %3001 = vmatprep.subr.bf16.mxu0 0
        %3002 = vmatpush1.bf16.msra.mxu0 0
        %3003 = vmatprep.subr.bf16.mxu0 0
        %3004 = vmatpush1.bf16.msra.mxu0 0
        %3005 = vmatprep.subr.bf16.mxu0 0
        %3006 = vmatpush1.bf16.msra.mxu0 0
        %3007 = vmatprep.subr.bf16.mxu0 0
        %3008 = vmatpush1.bf16.msra.mxu0 0
        %3009 = vmatprep.subr.bf16.mxu0 0
        %3010 = vmatpush1.bf16.msra.mxu0 0
        %3011 = vmatprep.subr.bf16.mxu0 0
        %3012 = vmatpush1.bf16.msra.mxu0 0
        %3013 = vmatprep.subr.bf16.mxu0 0
        %3014 = vmatpush1.bf16.msra.mxu0 0
        %3015 = vmatprep.subr.bf16.mxu0 0
        %3016 = vmatpush1.bf16.msra.mxu0 0
        %3017 = vmatprep.subr.bf16.mxu0 0
        %3018 = vmatpush1.bf16.msra.mxu0 0
        %3019 = vmatprep.subr.bf16.mxu0 0
        %3020 = vmatpush1.bf16.msra.mxu0 0
        %3021 = vmatprep.mubr.bf16.mxu0 0
        %3022 = vmatmul.mubr.bf16.gmra.mrb[0].mxu0 %v2972
        %v3023 = vpop.f32.mrb[0].mxu0
        %v3024 = vadd.f32 %v2918, %v3023
        %v3025 = vpop.f32.mrb[0].mxu0
        %v3026 = vpop.f32.mrb[0].mxu0
        %v3027 = vadd.f32 %v2921, %v3026
        %v3028 = vpop.f32.mrb[0].mxu0
        %3029 = vmatprep.mubr.bf16.mxu0 0
        %3030 = vmatmul.mubr.bf16.gmra.mrb[0].mxu0 %v2974
        %v3031 = vpop.f32.mrb[0].mxu0
        %v3032 = vadd.f32 %v2926, %v3031
        %v3033 = vpop.f32.mrb[0].mxu0
        %v3034 = vpop.f32.mrb[0].mxu0
        %v3035 = vadd.f32 %v2929, %v3034
        %v3036 = vpop.f32.mrb[0].mxu0
        %3037 = vmatprep.mubr.bf16.mxu0 0
        %3038 = vmatmul.mubr.bf16.gmra.mrb[0].mxu0 %v2976
        %v3039 = vpop.f32.mrb[0].mxu0
        %v3040 = vadd.f32 %v2934, %v3039
        %v3041 = vpop.f32.mrb[0].mxu0
        %v3042 = vpop.f32.mrb[0].mxu0
        %v3043 = vadd.f32 %v2937, %v3042
        %v3044 = vpop.f32.mrb[0].mxu0
        %3045 = vmatprep.mubr.bf16.mxu0 0
        %3046 = vmatmul.mubr.bf16.gmra.mrb[0].mxu0 %v2978
        %v3047 = vpop.f32.mrb[0].mxu0
        %v3048 = vadd.f32 %v2942, %v3047
        %v3049 = vpop.f32.mrb[0].mxu0
        %v3050 = vpop.f32.mrb[0].mxu0
        %v3051 = vadd.f32 %v2945, %v3050
        %v3052 = vpop.f32.mrb[0].mxu0
        %3053 = vmatprep.mubr.bf16.mxu0 0
        %3054 = vmatmul.mubr.bf16.gmra.mrb[0].mxu0 %v2980
        %v3055 = vpop.f32.mrb[0].mxu0
        %v3056 = vadd.f32 %v2950, %v3055
        %v3057 = vpop.f32.mrb[0].mxu0
        %v3058 = vpop.f32.mrb[0].mxu0
        %v3059 = vadd.f32 %v2953, %v3058
        %v3060 = vpop.f32.mrb[0].mxu0
        %3061 = vmatprep.mubr.bf16.mxu0 0
        %3062 = vmatmul.mubr.bf16.gmra.mrb[0].mxu0 %v2982
        %v3063 = vpop.f32.mrb[0].mxu0
        %v3064 = vadd.f32 %v2958, %v3063
        %v3065 = vpop.f32.mrb[0].mxu0
        %v3066 = vpop.f32.mrb[0].mxu0
        %v3067 = vadd.f32 %v2961, %v3066
        %v3068 = vpop.f32.mrb[0].mxu0
        %3069 = vmatprep.mubr.bf16.mxu0 0
        %3070 = vmatmul.mubr.bf16.gmra.mrb[0].mxu0 %v2984
        %v3071 = vpop.f32.mrb[0].mxu0
        %v3072 = vadd.f32 %v2966, %v3071
        %v3073 = vpop.f32.mrb[0].mxu0
        %v3074 = vpop.f32.mrb[0].mxu0
        %v3075 = vadd.f32 %v2969, %v3074
        %v3076 = vpop.f32.mrb[0].mxu0
        %3077 = vdwg.mxu0
        %v3078 = vld [vmem:[%s329 + $0x70] sm:$0xe]
        %v3079 = vld [vmem:[%s671] sm:$0x3]
        %v3081 = vunpack.c.l.b16 %v3078
        %v3082 = vpack.c.b16 %v2777, %v3081
        %v3083 = vrot.slane %v3082, 1
        %v3084 = vrot.slane %v2792, 1
        %v3085 = vsel %vm676, %v3083, %v3084
        %v3086 = vrot.slane %v2793, 1
        %v3087 = vsel %vm676, %v3084, %v3086
        %v3088 = vrot.slane %v2794, 1
        %v3089 = vsel %vm676, %v3086, %v3088
        %v3090 = vrot.slane %v2795, 1
        %v3091 = vsel %vm676, %v3088, %v3090
        %v3092 = vrot.slane %v2796, 1
        %v3093 = vsel %vm676, %v3090, %v3092
        %v3094 = vrot.slane %v2797, 1
        %v3095 = vsel %vm676, %v3092, %v3094
        %v3096 = vrot.slane %v2798, 1
        %v3097 = vsel %vm676, %v3094, %v3096
        %v3099 = vsel %vm449, %v3085, 0
        %v3102 = vsel %vm449, %v3087, 0
        %v3105 = vsel %vm449, %v3089, 0
        %v3108 = vsel %vm449, %v3091, 0
        %v3111 = vsel %vm449, %v3093, 0
        %v3114 = vsel %vm449, %v3095, 0
        %v3117 = vsel %vm449, %v3097, 0
        %v3120 = vsel %vm471, %v3079, 0
        %3122 = vmatprep.subr.bf16.mxu0 0
        %3123 = vmatpush1.bf16.msra.mxu0 %v3120
        %3124 = vmatprep.subr.bf16.mxu0 0
        %3125 = vmatpush1.bf16.msra.mxu0 0
        %3126 = vmatprep.subr.bf16.mxu0 0
        %3127 = vmatpush1.bf16.msra.mxu0 0
        %3128 = vmatprep.subr.bf16.mxu0 0
        %3129 = vmatpush1.bf16.msra.mxu0 0
        %3130 = vmatprep.subr.bf16.mxu0 0
        %3131 = vmatpush1.bf16.msra.mxu0 0
        %3132 = vmatprep.subr.bf16.mxu0 0
        %3133 = vmatpush1.bf16.msra.mxu0 0
        %3134 = vmatprep.subr.bf16.mxu0 0
        %3135 = vmatpush1.bf16.msra.mxu0 0
        %3136 = vmatprep.subr.bf16.mxu0 0
        %3137 = vmatpush1.bf16.msra.mxu0 0
        %3138 = vmatprep.subr.bf16.mxu0 0
        %3139 = vmatpush1.bf16.msra.mxu0 0
        %3140 = vmatprep.subr.bf16.mxu0 0
        %3141 = vmatpush1.bf16.msra.mxu0 0
        %3142 = vmatprep.subr.bf16.mxu0 0
        %3143 = vmatpush1.bf16.msra.mxu0 0
        %3144 = vmatprep.subr.bf16.mxu0 0
        %3145 = vmatpush1.bf16.msra.mxu0 0
        %3146 = vmatprep.subr.bf16.mxu0 0
        %3147 = vmatpush1.bf16.msra.mxu0 0
        %3148 = vmatprep.subr.bf16.mxu0 0
        %3149 = vmatpush1.bf16.msra.mxu0 0
        %3150 = vmatprep.subr.bf16.mxu0 0
        %3151 = vmatpush1.bf16.msra.mxu0 0
        %3152 = vmatprep.subr.bf16.mxu0 0
        %3153 = vmatpush1.bf16.msra.mxu0 0
        %3154 = vmatprep.mubr.bf16.mxu0 0
        %3155 = vmatmul.mubr.bf16.gmra.mrb[0].mxu0 %v3099
        %v3156 = vpop.f32.mrb[0].mxu0
        %v3157 = vadd.f32 0.0, %v3156
        %v3158 = vpop.f32.mrb[0].mxu0
        %v3159 = vpop.f32.mrb[0].mxu0
        %v3160 = vadd.f32 0.0, %v3159
        %v3161 = vpop.f32.mrb[0].mxu0
        %3162 = vmatprep.mubr.bf16.mxu0 0
        %3163 = vmatmul.mubr.bf16.gmra.mrb[0].mxu0 %v3102
        %v3164 = vpop.f32.mrb[0].mxu0
        %v3165 = vadd.f32 0.0, %v3164
        %v3166 = vpop.f32.mrb[0].mxu0
        %v3167 = vpop.f32.mrb[0].mxu0
        %v3168 = vadd.f32 0.0, %v3167
        %v3169 = vpop.f32.mrb[0].mxu0
        %3170 = vmatprep.mubr.bf16.mxu0 0
        %3171 = vmatmul.mubr.bf16.gmra.mrb[0].mxu0 %v3105
        %v3172 = vpop.f32.mrb[0].mxu0
        %v3173 = vadd.f32 0.0, %v3172
        %v3174 = vpop.f32.mrb[0].mxu0
        %v3175 = vpop.f32.mrb[0].mxu0
        %v3176 = vadd.f32 0.0, %v3175
        %v3177 = vpop.f32.mrb[0].mxu0
        %3178 = vmatprep.mubr.bf16.mxu0 0
        %3179 = vmatmul.mubr.bf16.gmra.mrb[0].mxu0 %v3108
        %v3180 = vpop.f32.mrb[0].mxu0
        %v3181 = vadd.f32 0.0, %v3180
        %v3182 = vpop.f32.mrb[0].mxu0
        %v3183 = vpop.f32.mrb[0].mxu0
        %v3184 = vadd.f32 0.0, %v3183
        %v3185 = vpop.f32.mrb[0].mxu0
        %3186 = vmatprep.mubr.bf16.mxu0 0
        %3187 = vmatmul.mubr.bf16.gmra.mrb[0].mxu0 %v3111
        %v3188 = vpop.f32.mrb[0].mxu0
        %v3189 = vadd.f32 0.0, %v3188
        %v3190 = vpop.f32.mrb[0].mxu0
        %v3191 = vpop.f32.mrb[0].mxu0
        %v3192 = vadd.f32 0.0, %v3191
        %v3193 = vpop.f32.mrb[0].mxu0
        %3194 = vmatprep.mubr.bf16.mxu0 0
        %3195 = vmatmul.mubr.bf16.gmra.mrb[0].mxu0 %v3114
        %v3196 = vpop.f32.mrb[0].mxu0
        %v3197 = vadd.f32 0.0, %v3196
        %v3198 = vpop.f32.mrb[0].mxu0
        %v3199 = vpop.f32.mrb[0].mxu0
        %v3200 = vadd.f32 0.0, %v3199
        %v3201 = vpop.f32.mrb[0].mxu0
        %3202 = vmatprep.mubr.bf16.mxu0 0
        %3203 = vmatmul.mubr.bf16.gmra.mrb[0].mxu0 %v3117
        %v3204 = vpop.f32.mrb[0].mxu0
        %v3205 = vadd.f32 0.0, %v3204
        %v3206 = vpop.f32.mrb[0].mxu0
        %v3207 = vpop.f32.mrb[0].mxu0
        %v3208 = vadd.f32 0.0, %v3207
        %v3209 = vpop.f32.mrb[0].mxu0
        %3210 = vdwg.mxu0
        %v3211 = vadd.f32 %v3024, %v3157
        %v3212 = vadd.f32 %v3027, %v3160
        %v3213 = vadd.f32 %v3032, %v3165
        %v3214 = vadd.f32 %v3035, %v3168
        %v3215 = vadd.f32 %v3040, %v3173
        %v3216 = vadd.f32 %v3043, %v3176
        %v3217 = vadd.f32 %v3048, %v3181
        %v3218 = vadd.f32 %v3051, %v3184
        %v3219 = vadd.f32 %v3056, %v3189
        %v3220 = vadd.f32 %v3059, %v3192
        %v3221 = vadd.f32 %v3064, %v3197
        %v3222 = vadd.f32 %v3067, %v3200
        %v3223 = vadd.f32 %v3072, %v3205
        %v3224 = vadd.f32 %v3075, %v3208
        %v3225 = vld [vmem:[%s329 + $0xa8] sm:$0x3]
        %v3226 = vld [vmem:[%s820] sm:$0x3]
        %v3228 = vunpack.c.l.b16 %v3225
        %v3229 = vpack.c.b16 %v3228, %v3228
        %v3231 = vshrl.u32 %v3082, 16
        %v3233 = vrot.slane %v3231, 1
        %v3234 = vshll.u32 %v3082, 16
        %v3236 = vrot.slane %v3234, 2
        %v3237 = vor.u32 %v3233, %v3236
        %v3238 = vrot.slane %v2811, 1
        %v3239 = vrot.slane %v2807, 2
        %v3240 = vor.u32 %v3238, %v3239
        %v3241 = vsel %vm825, %v3237, %v3240
        %v3242 = vrot.slane %v2819, 1
        %v3243 = vrot.slane %v2815, 2
        %v3244 = vor.u32 %v3242, %v3243
        %v3245 = vsel %vm825, %v3240, %v3244
        %v3246 = vrot.slane %v2827, 1
        %v3247 = vrot.slane %v2823, 2
        %v3248 = vor.u32 %v3246, %v3247
        %v3249 = vsel %vm825, %v3244, %v3248
        %v3250 = vrot.slane %v2835, 1
        %v3251 = vrot.slane %v2831, 2
        %v3252 = vor.u32 %v3250, %v3251
        %v3253 = vsel %vm825, %v3248, %v3252
        %v3254 = vrot.slane %v2843, 1
        %v3255 = vrot.slane %v2839, 2
        %v3256 = vor.u32 %v3254, %v3255
        %v3257 = vsel %vm825, %v3252, %v3256
        %v3258 = vrot.slane %v2851, 1
        %v3259 = vrot.slane %v2847, 2
        %v3260 = vor.u32 %v3258, %v3259
        %v3261 = vsel %vm825, %v3256, %v3260
        %v3263 = vshrl.u32 %v3229, 16
        %v3265 = vrot.slane %v3263, 1
        %v3266 = vshll.u32 %v3229, 16
        %v3268 = vrot.slane %v3266, 2
        %v3269 = vor.u32 %v3265, %v3268
        %v3270 = vsel %vm825, %v3260, %v3269
        %v3272 = vsel %vm449, %v3241, 0
        %v3275 = vsel %vm449, %v3245, 0
        %v3278 = vsel %vm449, %v3249, 0
        %v3281 = vsel %vm449, %v3253, 0
        %v3284 = vsel %vm449, %v3257, 0
        %v3287 = vsel %vm449, %v3261, 0
        %v3290 = vsel %vm449, %v3270, 0
        %v3293 = vsel %vm471, %v3226, 0
        %3295 = vmatprep.subr.bf16.mxu0 0
        %3296 = vmatpush1.bf16.msra.mxu0 %v3293
        %3297 = vmatprep.subr.bf16.mxu0 0
        %3298 = vmatpush1.bf16.msra.mxu0 0
        %3299 = vmatprep.subr.bf16.mxu0 0
        %3300 = vmatpush1.bf16.msra.mxu0 0
        %3301 = vmatprep.subr.bf16.mxu0 0
        %3302 = vmatpush1.bf16.msra.mxu0 0
        %3303 = vmatprep.subr.bf16.mxu0 0
        %3304 = vmatpush1.bf16.msra.mxu0 0
        %3305 = vmatprep.subr.bf16.mxu0 0
        %3306 = vmatpush1.bf16.msra.mxu0 0
        %3307 = vmatprep.subr.bf16.mxu0 0
        %3308 = vmatpush1.bf16.msra.mxu0 0
        %3309 = vmatprep.subr.bf16.mxu0 0
        %3310 = vmatpush1.bf16.msra.mxu0 0
        %3311 = vmatprep.subr.bf16.mxu0 0
        %3312 = vmatpush1.bf16.msra.mxu0 0
        %3313 = vmatprep.subr.bf16.mxu0 0
        %3314 = vmatpush1.bf16.msra.mxu0 0
        %3315 = vmatprep.subr.bf16.mxu0 0
        %3316 = vmatpush1.bf16.msra.mxu0 0
        %3317 = vmatprep.subr.bf16.mxu0 0
        %3318 = vmatpush1.bf16.msra.mxu0 0
        %3319 = vmatprep.subr.bf16.mxu0 0
        %3320 = vmatpush1.bf16.msra.mxu0 0
        %3321 = vmatprep.subr.bf16.mxu0 0
        %3322 = vmatpush1.bf16.msra.mxu0 0
        %3323 = vmatprep.subr.bf16.mxu0 0
        %3324 = vmatpush1.bf16.msra.mxu0 0
        %3325 = vmatprep.subr.bf16.mxu0 0
        %3326 = vmatpush1.bf16.msra.mxu0 0
        %3327 = vmatprep.mubr.bf16.mxu0 0
        %3328 = vmatmul.mubr.bf16.gmra.mrb[0].mxu0 %v3272
        %v3329 = vpop.f32.mrb[0].mxu0
        %v3330 = vadd.f32 0.0, %v3329
        %v3331 = vpop.f32.mrb[0].mxu0
        %v3332 = vpop.f32.mrb[0].mxu0
        %v3333 = vadd.f32 0.0, %v3332
        %v3334 = vpop.f32.mrb[0].mxu0
        %3335 = vmatprep.mubr.bf16.mxu0 0
        %3336 = vmatmul.mubr.bf16.gmra.mrb[0].mxu0 %v3275
        %v3337 = vpop.f32.mrb[0].mxu0
        %v3338 = vadd.f32 0.0, %v3337
        %v3339 = vpop.f32.mrb[0].mxu0
        %v3340 = vpop.f32.mrb[0].mxu0
        %v3341 = vadd.f32 0.0, %v3340
        %v3342 = vpop.f32.mrb[0].mxu0
        %3343 = vmatprep.mubr.bf16.mxu0 0
        %3344 = vmatmul.mubr.bf16.gmra.mrb[0].mxu0 %v3278
        %v3345 = vpop.f32.mrb[0].mxu0
        %v3346 = vadd.f32 0.0, %v3345
        %v3347 = vpop.f32.mrb[0].mxu0
        %v3348 = vpop.f32.mrb[0].mxu0
        %v3349 = vadd.f32 0.0, %v3348
        %v3350 = vpop.f32.mrb[0].mxu0
        %3351 = vmatprep.mubr.bf16.mxu0 0
        %3352 = vmatmul.mubr.bf16.gmra.mrb[0].mxu0 %v3281
        %v3353 = vpop.f32.mrb[0].mxu0
        %v3354 = vadd.f32 0.0, %v3353
        %v3355 = vpop.f32.mrb[0].mxu0
        %v3356 = vpop.f32.mrb[0].mxu0
        %v3357 = vadd.f32 0.0, %v3356
        %v3358 = vpop.f32.mrb[0].mxu0
        %3359 = vmatprep.mubr.bf16.mxu0 0
        %3360 = vmatmul.mubr.bf16.gmra.mrb[0].mxu0 %v3284
        %v3361 = vpop.f32.mrb[0].mxu0
        %v3362 = vadd.f32 0.0, %v3361
        %v3363 = vpop.f32.mrb[0].mxu0
        %v3364 = vpop.f32.mrb[0].mxu0
        %v3365 = vadd.f32 0.0, %v3364
        %v3366 = vpop.f32.mrb[0].mxu0
        %3367 = vmatprep.mubr.bf16.mxu0 0
        %3368 = vmatmul.mubr.bf16.gmra.mrb[0].mxu0 %v3287
        %v3369 = vpop.f32.mrb[0].mxu0
        %v3370 = vadd.f32 0.0, %v3369
        %v3371 = vpop.f32.mrb[0].mxu0
        %v3372 = vpop.f32.mrb[0].mxu0
        %v3373 = vadd.f32 0.0, %v3372
        %v3374 = vpop.f32.mrb[0].mxu0
        %3375 = vmatprep.mubr.bf16.mxu0 0
        %3376 = vmatmul.mubr.bf16.gmra.mrb[0].mxu0 %v3290
        %v3377 = vpop.f32.mrb[0].mxu0
        %v3378 = vadd.f32 0.0, %v3377
        %v3379 = vpop.f32.mrb[0].mxu0
        %v3380 = vpop.f32.mrb[0].mxu0
        %v3381 = vadd.f32 0.0, %v3380
        %v3382 = vpop.f32.mrb[0].mxu0
        %3383 = vdwg.mxu0
        %v3384 = vadd.f32 %v3211, %v3330
        %v3385 = vadd.f32 %v3212, %v3333
        %v3386 = vadd.f32 %v3213, %v3338
        %v3387 = vadd.f32 %v3214, %v3341
        %v3388 = vadd.f32 %v3215, %v3346
        %v3389 = vadd.f32 %v3216, %v3349
        %v3390 = vadd.f32 %v3217, %v3354
        %v3391 = vadd.f32 %v3218, %v3357
        %v3392 = vadd.f32 %v3219, %v3362
        %v3393 = vadd.f32 %v3220, %v3365
        %v3394 = vadd.f32 %v3221, %v3370
        %v3395 = vadd.f32 %v3222, %v3373
        %v3396 = vadd.f32 %v3223, %v3378
        %v3397 = vadd.f32 %v3224, %v3381
        %v3398 = vld [vmem:[%s329 + $0x70] sm:$0xc]
        %v3399 = vld [vmem:[%s995] sm:$0x3]
        %v3401 = vunpack.c.l.b16 %v3398
        %v3402 = vpack.c.b16 %v2777, %v3401
        %v3403 = vrot.slane %v3402, 2
        %v3404 = vrot.slane %v2792, 2
        %v3405 = vsel %vm1000, %v3403, %v3404
        %v3406 = vrot.slane %v2793, 2
        %v3407 = vsel %vm1000, %v3404, %v3406
        %v3408 = vrot.slane %v2794, 2
        %v3409 = vsel %vm1000, %v3406, %v3408
        %v3410 = vrot.slane %v2795, 2
        %v3411 = vsel %vm1000, %v3408, %v3410
        %v3412 = vrot.slane %v2796, 2
        %v3413 = vsel %vm1000, %v3410, %v3412
        %v3414 = vrot.slane %v2797, 2
        %v3415 = vsel %vm1000, %v3412, %v3414
        %v3416 = vrot.slane %v3229, 2
        %v3417 = vsel %vm1000, %v3414, %v3416
        %v3419 = vsel %vm449, %v3405, 0
        %v3422 = vsel %vm449, %v3407, 0
        %v3425 = vsel %vm449, %v3409, 0
        %v3428 = vsel %vm449, %v3411, 0
        %v3431 = vsel %vm449, %v3413, 0
        %v3434 = vsel %vm449, %v3415, 0
        %v3437 = vsel %vm449, %v3417, 0
        %v3440 = vsel %vm471, %v3399, 0
        %3442 = vmatprep.subr.bf16.mxu0 0
        %3443 = vmatpush1.bf16.msra.mxu0 %v3440
        %3444 = vmatprep.subr.bf16.mxu0 0
        %3445 = vmatpush1.bf16.msra.mxu0 0
        %3446 = vmatprep.subr.bf16.mxu0 0
        %3447 = vmatpush1.bf16.msra.mxu0 0
        %3448 = vmatprep.subr.bf16.mxu0 0
        %3449 = vmatpush1.bf16.msra.mxu0 0
        %3450 = vmatprep.subr.bf16.mxu0 0
        %3451 = vmatpush1.bf16.msra.mxu0 0
        %3452 = vmatprep.subr.bf16.mxu0 0
        %3453 = vmatpush1.bf16.msra.mxu0 0
        %3454 = vmatprep.subr.bf16.mxu0 0
        %3455 = vmatpush1.bf16.msra.mxu0 0
        %3456 = vmatprep.subr.bf16.mxu0 0
        %3457 = vmatpush1.bf16.msra.mxu0 0
        %3458 = vmatprep.subr.bf16.mxu0 0
        %3459 = vmatpush1.bf16.msra.mxu0 0
        %3460 = vmatprep.subr.bf16.mxu0 0
        %3461 = vmatpush1.bf16.msra.mxu0 0
        %3462 = vmatprep.subr.bf16.mxu0 0
        %3463 = vmatpush1.bf16.msra.mxu0 0
        %3464 = vmatprep.subr.bf16.mxu0 0
        %3465 = vmatpush1.bf16.msra.mxu0 0
        %3466 = vmatprep.subr.bf16.mxu0 0
        %3467 = vmatpush1.bf16.msra.mxu0 0
        %3468 = vmatprep.subr.bf16.mxu0 0
        %3469 = vmatpush1.bf16.msra.mxu0 0
        %3470 = vmatprep.subr.bf16.mxu0 0
        %3471 = vmatpush1.bf16.msra.mxu0 0
        %3472 = vmatprep.subr.bf16.mxu0 0
        %3473 = vmatpush1.bf16.msra.mxu0 0
        %3474 = vmatprep.mubr.bf16.mxu0 0
        %3475 = vmatmul.mubr.bf16.gmra.mrb[0].mxu0 %v3419
        %v3476 = vpop.f32.mrb[0].mxu0
        %v3477 = vadd.f32 0.0, %v3476
        %v3478 = vpop.f32.mrb[0].mxu0
        %v3479 = vpop.f32.mrb[0].mxu0
        %v3480 = vadd.f32 0.0, %v3479
        %v3481 = vpop.f32.mrb[0].mxu0
        %3482 = vmatprep.mubr.bf16.mxu0 0
        %3483 = vmatmul.mubr.bf16.gmra.mrb[0].mxu0 %v3422
        %v3484 = vpop.f32.mrb[0].mxu0
        %v3485 = vadd.f32 0.0, %v3484
        %v3486 = vpop.f32.mrb[0].mxu0
        %v3487 = vpop.f32.mrb[0].mxu0
        %v3488 = vadd.f32 0.0, %v3487
        %v3489 = vpop.f32.mrb[0].mxu0
        %3490 = vmatprep.mubr.bf16.mxu0 0
        %3491 = vmatmul.mubr.bf16.gmra.mrb[0].mxu0 %v3425
        %v3492 = vpop.f32.mrb[0].mxu0
        %v3493 = vadd.f32 0.0, %v3492
        %v3494 = vpop.f32.mrb[0].mxu0
        %v3495 = vpop.f32.mrb[0].mxu0
        %v3496 = vadd.f32 0.0, %v3495
        %v3497 = vpop.f32.mrb[0].mxu0
        %3498 = vmatprep.mubr.bf16.mxu0 0
        %3499 = vmatmul.mubr.bf16.gmra.mrb[0].mxu0 %v3428
        %v3500 = vpop.f32.mrb[0].mxu0
        %v3501 = vadd.f32 0.0, %v3500
        %v3502 = vpop.f32.mrb[0].mxu0
        %v3503 = vpop.f32.mrb[0].mxu0
        %v3504 = vadd.f32 0.0, %v3503
        %v3505 = vpop.f32.mrb[0].mxu0
        %3506 = vmatprep.mubr.bf16.mxu0 0
        %3507 = vmatmul.mubr.bf16.gmra.mrb[0].mxu0 %v3431
        %v3508 = vpop.f32.mrb[0].mxu0
        %v3509 = vadd.f32 0.0, %v3508
        %v3510 = vpop.f32.mrb[0].mxu0
        %v3511 = vpop.f32.mrb[0].mxu0
        %v3512 = vadd.f32 0.0, %v3511
        %v3513 = vpop.f32.mrb[0].mxu0
        %3514 = vmatprep.mubr.bf16.mxu0 0
        %3515 = vmatmul.mubr.bf16.gmra.mrb[0].mxu0 %v3434
        %v3516 = vpop.f32.mrb[0].mxu0
        %v3517 = vadd.f32 0.0, %v3516
        %v3518 = vpop.f32.mrb[0].mxu0
        %v3519 = vpop.f32.mrb[0].mxu0
        %v3520 = vadd.f32 0.0, %v3519
        %v3521 = vpop.f32.mrb[0].mxu0
        %3522 = vmatprep.mubr.bf16.mxu0 0
        %3523 = vmatmul.mubr.bf16.gmra.mrb[0].mxu0 %v3437
        %v3524 = vpop.f32.mrb[0].mxu0
        %v3525 = vadd.f32 0.0, %v3524
        %v3526 = vpop.f32.mrb[0].mxu0
        %v3527 = vpop.f32.mrb[0].mxu0
        %v3528 = vadd.f32 0.0, %v3527
        %v3529 = vpop.f32.mrb[0].mxu0
        %3530 = vdwg.mxu0
        %v3531 = vadd.f32 %v3384, %v3477
        %v3532 = vadd.f32 %v3385, %v3480
        %v3533 = vadd.f32 %v3386, %v3485
        %v3534 = vadd.f32 %v3387, %v3488
        %v3535 = vadd.f32 %v3388, %v3493
        %v3536 = vadd.f32 %v3389, %v3496
        %v3537 = vadd.f32 %v3390, %v3501
        %v3538 = vadd.f32 %v3391, %v3504
        %v3539 = vadd.f32 %v3392, %v3509
        %v3540 = vadd.f32 %v3393, %v3512
        %v3541 = vadd.f32 %v3394, %v3517
        %v3542 = vadd.f32 %v3395, %v3520
        %v3543 = vadd.f32 %v3396, %v3525
        %v3544 = vadd.f32 %v3397, %v3528
        %v3545 = vld [vmem:[%s329 + $0xa8] sm:$0x7]
        %v3546 = vld [vmem:[%s1144] sm:$0x3]
        %v3548 = vunpack.c.l.b16 %v3545
        %v3549 = vpack.c.b16 %v3548, %v3548
        %v3551 = vshrl.u32 %v3402, 16
        %v3553 = vrot.slane %v3551, 2
        %v3554 = vshll.u32 %v3402, 16
        %v3556 = vrot.slane %v3554, 3
        %v3557 = vor.u32 %v3553, %v3556
        %v3558 = vrot.slane %v2811, 2
        %v3559 = vrot.slane %v2807, 3
        %v3560 = vor.u32 %v3558, %v3559
        %v3561 = vsel %vm1149, %v3557, %v3560
        %v3562 = vrot.slane %v2819, 2
        %v3563 = vrot.slane %v2815, 3
        %v3564 = vor.u32 %v3562, %v3563
        %v3565 = vsel %vm1149, %v3560, %v3564
        %v3566 = vrot.slane %v2827, 2
        %v3567 = vrot.slane %v2823, 3
        %v3568 = vor.u32 %v3566, %v3567
        %v3569 = vsel %vm1149, %v3564, %v3568
        %v3570 = vrot.slane %v2835, 2
        %v3571 = vrot.slane %v2831, 3
        %v3572 = vor.u32 %v3570, %v3571
        %v3573 = vsel %vm1149, %v3568, %v3572
        %v3574 = vrot.slane %v2843, 2
        %v3575 = vrot.slane %v2839, 3
        %v3576 = vor.u32 %v3574, %v3575
        %v3577 = vsel %vm1149, %v3572, %v3576
        %v3578 = vrot.slane %v2851, 2
        %v3579 = vrot.slane %v2847, 3
        %v3580 = vor.u32 %v3578, %v3579
        %v3581 = vsel %vm1149, %v3576, %v3580
        %v3583 = vshrl.u32 %v3549, 16
        %v3585 = vrot.slane %v3583, 2
        %v3586 = vshll.u32 %v3549, 16
        %v3588 = vrot.slane %v3586, 3
        %v3589 = vor.u32 %v3585, %v3588
        %v3590 = vsel %vm1149, %v3580, %v3589
        %v3592 = vsel %vm449, %v3561, 0
        %v3595 = vsel %vm449, %v3565, 0
        %v3598 = vsel %vm449, %v3569, 0
        %v3601 = vsel %vm449, %v3573, 0
        %v3604 = vsel %vm449, %v3577, 0
        %v3607 = vsel %vm449, %v3581, 0
        %v3610 = vsel %vm449, %v3590, 0
        %v3613 = vsel %vm471, %v3546, 0
        %3615 = vmatprep.subr.bf16.mxu0 0
        %3616 = vmatpush1.bf16.msra.mxu0 %v3613
        %3617 = vmatprep.subr.bf16.mxu0 0
        %3618 = vmatpush1.bf16.msra.mxu0 0
        %3619 = vmatprep.subr.bf16.mxu0 0
        %3620 = vmatpush1.bf16.msra.mxu0 0
        %3621 = vmatprep.subr.bf16.mxu0 0
        %3622 = vmatpush1.bf16.msra.mxu0 0
        %3623 = vmatprep.subr.bf16.mxu0 0
        %3624 = vmatpush1.bf16.msra.mxu0 0
        %3625 = vmatprep.subr.bf16.mxu0 0
        %3626 = vmatpush1.bf16.msra.mxu0 0
        %3627 = vmatprep.subr.bf16.mxu0 0
        %3628 = vmatpush1.bf16.msra.mxu0 0
        %3629 = vmatprep.subr.bf16.mxu0 0
        %3630 = vmatpush1.bf16.msra.mxu0 0
        %3631 = vmatprep.subr.bf16.mxu0 0
        %3632 = vmatpush1.bf16.msra.mxu0 0
        %3633 = vmatprep.subr.bf16.mxu0 0
        %3634 = vmatpush1.bf16.msra.mxu0 0
        %3635 = vmatprep.subr.bf16.mxu0 0
        %3636 = vmatpush1.bf16.msra.mxu0 0
        %3637 = vmatprep.subr.bf16.mxu0 0
        %3638 = vmatpush1.bf16.msra.mxu0 0
        %3639 = vmatprep.subr.bf16.mxu0 0
        %3640 = vmatpush1.bf16.msra.mxu0 0
        %3641 = vmatprep.subr.bf16.mxu0 0
        %3642 = vmatpush1.bf16.msra.mxu0 0
        %3643 = vmatprep.subr.bf16.mxu0 0
        %3644 = vmatpush1.bf16.msra.mxu0 0
        %3645 = vmatprep.subr.bf16.mxu0 0
        %3646 = vmatpush1.bf16.msra.mxu0 0
        %3647 = vmatprep.mubr.bf16.mxu0 0
        %3648 = vmatmul.mubr.bf16.gmra.mrb[0].mxu0 %v3592
        %v3649 = vpop.f32.mrb[0].mxu0
        %v3650 = vadd.f32 0.0, %v3649
        %v3651 = vpop.f32.mrb[0].mxu0
        %v3652 = vpop.f32.mrb[0].mxu0
        %v3653 = vadd.f32 0.0, %v3652
        %v3654 = vpop.f32.mrb[0].mxu0
        %3655 = vmatprep.mubr.bf16.mxu0 0
        %3656 = vmatmul.mubr.bf16.gmra.mrb[0].mxu0 %v3595
        %v3657 = vpop.f32.mrb[0].mxu0
        %v3658 = vadd.f32 0.0, %v3657
        %v3659 = vpop.f32.mrb[0].mxu0
        %v3660 = vpop.f32.mrb[0].mxu0
        %v3661 = vadd.f32 0.0, %v3660
        %v3662 = vpop.f32.mrb[0].mxu0
        %3663 = vmatprep.mubr.bf16.mxu0 0
        %3664 = vmatmul.mubr.bf16.gmra.mrb[0].mxu0 %v3598
        %v3665 = vpop.f32.mrb[0].mxu0
        %v3666 = vadd.f32 0.0, %v3665
        %v3667 = vpop.f32.mrb[0].mxu0
        %v3668 = vpop.f32.mrb[0].mxu0
        %v3669 = vadd.f32 0.0, %v3668
        %v3670 = vpop.f32.mrb[0].mxu0
        %3671 = vmatprep.mubr.bf16.mxu0 0
        %3672 = vmatmul.mubr.bf16.gmra.mrb[0].mxu0 %v3601
        %v3673 = vpop.f32.mrb[0].mxu0
        %v3674 = vadd.f32 0.0, %v3673
        %v3675 = vpop.f32.mrb[0].mxu0
        %v3676 = vpop.f32.mrb[0].mxu0
        %v3677 = vadd.f32 0.0, %v3676
        %v3678 = vpop.f32.mrb[0].mxu0
        %3679 = vmatprep.mubr.bf16.mxu0 0
        %3680 = vmatmul.mubr.bf16.gmra.mrb[0].mxu0 %v3604
        %v3681 = vpop.f32.mrb[0].mxu0
        %v3682 = vadd.f32 0.0, %v3681
        %v3683 = vpop.f32.mrb[0].mxu0
        %v3684 = vpop.f32.mrb[0].mxu0
        %v3685 = vadd.f32 0.0, %v3684
        %v3686 = vpop.f32.mrb[0].mxu0
        %3687 = vmatprep.mubr.bf16.mxu0 0
        %3688 = vmatmul.mubr.bf16.gmra.mrb[0].mxu0 %v3607
        %v3689 = vpop.f32.mrb[0].mxu0
        %v3690 = vadd.f32 0.0, %v3689
        %v3691 = vpop.f32.mrb[0].mxu0
        %v3692 = vpop.f32.mrb[0].mxu0
        %v3693 = vadd.f32 0.0, %v3692
        %v3694 = vpop.f32.mrb[0].mxu0
        %3695 = vmatprep.mubr.bf16.mxu0 0
        %3696 = vmatmul.mubr.bf16.gmra.mrb[0].mxu0 %v3610
        %v3697 = vpop.f32.mrb[0].mxu0
        %v3698 = vadd.f32 0.0, %v3697
        %v3699 = vpop.f32.mrb[0].mxu0
        %v3700 = vpop.f32.mrb[0].mxu0
        %v3701 = vadd.f32 0.0, %v3700
        %v3702 = vpop.f32.mrb[0].mxu0
        %3703 = vdwg.mxu0
        %v3704 = vadd.f32 %v3531, %v3650
        %v3705 = vadd.f32 %v3532, %v3653
        %v3706 = vadd.f32 %v3533, %v3658
        %v3707 = vadd.f32 %v3534, %v3661
        %v3708 = vadd.f32 %v3535, %v3666
        %v3709 = vadd.f32 %v3536, %v3669
        %v3710 = vadd.f32 %v3537, %v3674
        %v3711 = vadd.f32 %v3538, %v3677
        %v3712 = vadd.f32 %v3539, %v3682
        %v3713 = vadd.f32 %v3540, %v3685
        %v3714 = vadd.f32 %v3541, %v3690
        %v3715 = vadd.f32 %v3542, %v3693
        %v3716 = vadd.f32 %v3543, %v3698
        %v3717 = vadd.f32 %v3544, %v3701
        %v3718 = vld [vmem:[%s329 + $0x70] sm:$0x8]
        %v3719 = vld [vmem:[%s1319] sm:$0x3]
        %v3721 = vunpack.c.l.b16 %v3718
        %v3722 = vpack.c.b16 %v2777, %v3721
        %v3723 = vrot.slane %v3722, 3
        %v3724 = vrot.slane %v2792, 3
        %v3725 = vsel %vm1324, %v3723, %v3724
        %v3726 = vrot.slane %v2793, 3
        %v3727 = vsel %vm1324, %v3724, %v3726
        %v3728 = vrot.slane %v2794, 3
        %v3729 = vsel %vm1324, %v3726, %v3728
        %v3730 = vrot.slane %v2795, 3
        %v3731 = vsel %vm1324, %v3728, %v3730
        %v3732 = vrot.slane %v2796, 3
        %v3733 = vsel %vm1324, %v3730, %v3732
        %v3734 = vrot.slane %v2797, 3
        %v3735 = vsel %vm1324, %v3732, %v3734
        %v3736 = vrot.slane %v3549, 3
        %v3737 = vsel %vm1324, %v3734, %v3736
        %v3739 = vsel %vm449, %v3725, 0
        %v3742 = vsel %vm449, %v3727, 0
        %v3745 = vsel %vm449, %v3729, 0
        %v3748 = vsel %vm449, %v3731, 0
        %v3751 = vsel %vm449, %v3733, 0
        %v3754 = vsel %vm449, %v3735, 0
        %v3757 = vsel %vm449, %v3737, 0
        %v3760 = vsel %vm471, %v3719, 0
        %3762 = vmatprep.subr.bf16.mxu0 0
        %3763 = vmatpush1.bf16.msra.mxu0 %v3760
        %3764 = vmatprep.subr.bf16.mxu0 0
        %3765 = vmatpush1.bf16.msra.mxu0 0
        %3766 = vmatprep.subr.bf16.mxu0 0
        %3767 = vmatpush1.bf16.msra.mxu0 0
        %3768 = vmatprep.subr.bf16.mxu0 0
        %3769 = vmatpush1.bf16.msra.mxu0 0
        %3770 = vmatprep.subr.bf16.mxu0 0
        %3771 = vmatpush1.bf16.msra.mxu0 0
        %3772 = vmatprep.subr.bf16.mxu0 0
        %3773 = vmatpush1.bf16.msra.mxu0 0
        %3774 = vmatprep.subr.bf16.mxu0 0
        %3775 = vmatpush1.bf16.msra.mxu0 0
        %3776 = vmatprep.subr.bf16.mxu0 0
        %3777 = vmatpush1.bf16.msra.mxu0 0
        %3778 = vmatprep.subr.bf16.mxu0 0
        %3779 = vmatpush1.bf16.msra.mxu0 0
        %3780 = vmatprep.subr.bf16.mxu0 0
        %3781 = vmatpush1.bf16.msra.mxu0 0
        %3782 = vmatprep.subr.bf16.mxu0 0
        %3783 = vmatpush1.bf16.msra.mxu0 0
        %3784 = vmatprep.subr.bf16.mxu0 0
        %3785 = vmatpush1.bf16.msra.mxu0 0
        %3786 = vmatprep.subr.bf16.mxu0 0
        %3787 = vmatpush1.bf16.msra.mxu0 0
        %3788 = vmatprep.subr.bf16.mxu0 0
        %3789 = vmatpush1.bf16.msra.mxu0 0
        %3790 = vmatprep.subr.bf16.mxu0 0
        %3791 = vmatpush1.bf16.msra.mxu0 0
        %3792 = vmatprep.subr.bf16.mxu0 0
        %3793 = vmatpush1.bf16.msra.mxu0 0
        %3794 = vmatprep.mubr.bf16.mxu0 0
        %3795 = vmatmul.mubr.bf16.gmra.mrb[0].mxu0 %v3739
        %v3796 = vpop.f32.mrb[0].mxu0
        %v3797 = vadd.f32 0.0, %v3796
        %v3798 = vpop.f32.mrb[0].mxu0
        %v3799 = vpop.f32.mrb[0].mxu0
        %v3800 = vadd.f32 0.0, %v3799
        %v3801 = vpop.f32.mrb[0].mxu0
        %3802 = vmatprep.mubr.bf16.mxu0 0
        %3803 = vmatmul.mubr.bf16.gmra.mrb[0].mxu0 %v3742
        %v3804 = vpop.f32.mrb[0].mxu0
        %v3805 = vadd.f32 0.0, %v3804
        %v3806 = vpop.f32.mrb[0].mxu0
        %v3807 = vpop.f32.mrb[0].mxu0
        %v3808 = vadd.f32 0.0, %v3807
        %v3809 = vpop.f32.mrb[0].mxu0
        %3810 = vmatprep.mubr.bf16.mxu0 0
        %3811 = vmatmul.mubr.bf16.gmra.mrb[0].mxu0 %v3745
        %v3812 = vpop.f32.mrb[0].mxu0
        %v3813 = vadd.f32 0.0, %v3812
        %v3814 = vpop.f32.mrb[0].mxu0
        %v3815 = vpop.f32.mrb[0].mxu0
        %v3816 = vadd.f32 0.0, %v3815
        %v3817 = vpop.f32.mrb[0].mxu0
        %3818 = vmatprep.mubr.bf16.mxu0 0
        %3819 = vmatmul.mubr.bf16.gmra.mrb[0].mxu0 %v3748
        %v3820 = vpop.f32.mrb[0].mxu0
        %v3821 = vadd.f32 0.0, %v3820
        %v3822 = vpop.f32.mrb[0].mxu0
        %v3823 = vpop.f32.mrb[0].mxu0
        %v3824 = vadd.f32 0.0, %v3823
        %v3825 = vpop.f32.mrb[0].mxu0
        %3826 = vmatprep.mubr.bf16.mxu0 0
        %3827 = vmatmul.mubr.bf16.gmra.mrb[0].mxu0 %v3751
        %v3828 = vpop.f32.mrb[0].mxu0
        %v3829 = vadd.f32 0.0, %v3828
        %v3830 = vpop.f32.mrb[0].mxu0
        %v3831 = vpop.f32.mrb[0].mxu0
        %v3832 = vadd.f32 0.0, %v3831
        %v3833 = vpop.f32.mrb[0].mxu0
        %3834 = vmatprep.mubr.bf16.mxu0 0
        %3835 = vmatmul.mubr.bf16.gmra.mrb[0].mxu0 %v3754
        %v3836 = vpop.f32.mrb[0].mxu0
        %v3837 = vadd.f32 0.0, %v3836
        %v3838 = vpop.f32.mrb[0].mxu0
        %v3839 = vpop.f32.mrb[0].mxu0
        %v3840 = vadd.f32 0.0, %v3839
        %v3841 = vpop.f32.mrb[0].mxu0
        %3842 = vmatprep.mubr.bf16.mxu0 0
        %3843 = vmatmul.mubr.bf16.gmra.mrb[0].mxu0 %v3757
        %v3844 = vpop.f32.mrb[0].mxu0
        %v3845 = vadd.f32 0.0, %v3844
        %v3846 = vpop.f32.mrb[0].mxu0
        %v3847 = vpop.f32.mrb[0].mxu0
        %v3848 = vadd.f32 0.0, %v3847
        %v3849 = vpop.f32.mrb[0].mxu0
        %3850 = vdwg.mxu0
        %v3851 = vadd.f32 %v3704, %v3797
        %v3852 = vadd.f32 %v3705, %v3800
        %v3853 = vadd.f32 %v3706, %v3805
        %v3854 = vadd.f32 %v3707, %v3808
        %v3855 = vadd.f32 %v3708, %v3813
        %v3856 = vadd.f32 %v3709, %v3816
        %v3857 = vadd.f32 %v3710, %v3821
        %v3858 = vadd.f32 %v3711, %v3824
        %v3859 = vadd.f32 %v3712, %v3829
        %v3860 = vadd.f32 %v3713, %v3832
        %v3861 = vadd.f32 %v3714, %v3837
        %v3862 = vadd.f32 %v3715, %v3840
        %v3863 = vadd.f32 %v3716, %v3845
        %v3864 = vadd.f32 %v3717, %v3848
        %v3865 = vadd.f32 %v3851, %v1471
        %v3866 = vadd.f32 %v3852, %v1471
        %v3867 = vadd.f32 %v3853, %v1471
        %v3868 = vadd.f32 %v3854, %v1471
        %v3869 = vadd.f32 %v3855, %v1471
        %v3870 = vadd.f32 %v3856, %v1471
        %v3871 = vadd.f32 %v3857, %v1471
        %v3872 = vadd.f32 %v3858, %v1471
        %v3873 = vadd.f32 %v3859, %v1471
        %v3874 = vadd.f32 %v3860, %v1471
        %v3875 = vadd.f32 %v3861, %v1471
        %v3876 = vadd.f32 %v3862, %v1471
        %v3877 = vadd.f32 %v3863, %v1471
        %v3878 = vadd.f32 %v3864, %v1471
        %v3879 = vmax.f32 %v3865, 0.0
        %v3880 = vmax.f32 %v3866, 0.0
        %v3881 = vmax.f32 %v3867, 0.0
        %v3882 = vmax.f32 %v3868, 0.0
        %v3883 = vmax.f32 %v3869, 0.0
        %v3884 = vmax.f32 %v3870, 0.0
        %v3885 = vmax.f32 %v3871, 0.0
        %v3886 = vmax.f32 %v3872, 0.0
        %v3887 = vmax.f32 %v3873, 0.0
        %v3888 = vmax.f32 %v3874, 0.0
        %v3889 = vmax.f32 %v3875, 0.0
        %v3890 = vmax.f32 %v3876, 0.0
        %v3891 = vmax.f32 %v3877, 0.0
        %v3892 = vmax.f32 %v3878, 0.0
        %3893 = vst.msk [vmem:[#allocation2] sm:$0xff] %vm1501, %v3879
        %3894 = vst.msk [vmem:[#allocation2 + $0x8] sm:$0xff] %vm1501, %v3880
        %3895 = vst.msk [vmem:[#allocation2 + $0x10] sm:$0xff] %vm1501, %v3881
        %3896 = vst.msk [vmem:[#allocation2 + $0x18] sm:$0xff] %vm1501, %v3882
        %3897 = vst.msk [vmem:[#allocation2 + $0x20] sm:$0xff] %vm1501, %v3883
        %3898 = vst.msk [vmem:[#allocation2 + $0x28] sm:$0xff] %vm1501, %v3884
        %3899 = vst.msk [vmem:[#allocation2 + $0x30] sm:$0xff] %vm1501, %v3885
        %3900 = vst.msk [vmem:[#allocation2 + $0x38] sm:$0xff] %vm1501, %v3886
        %3901 = vst.msk [vmem:[#allocation2 + $0x40] sm:$0xff] %vm1501, %v3887
        %3902 = vst.msk [vmem:[#allocation2 + $0x48] sm:$0xff] %vm1501, %v3888
        %3903 = vst.msk [vmem:[#allocation2 + $0x50] sm:$0xff] %vm1501, %v3889
        %3904 = vst.msk [vmem:[#allocation2 + $0x58] sm:$0xff] %vm1501, %v3890
        %3905 = vst.msk [vmem:[#allocation2 + $0x60] sm:$0xff] %vm1501, %v3891
        %3906 = vst.msk [vmem:[#allocation2 + $0x68] sm:$0xff] %vm1501, %v3892
        %v3907 = vld [vmem:[#allocation2] ss:$7 sm:$0xff]
        %v3908 = vld [vmem:[%s1517] ss:$7 sm:$0xff]
        %v3909 = vld [vmem:[%s1519] ss:$7 sm:$0xff]
        %v3910 = vld [vmem:[%s1521] ss:$7 sm:$0xff]
        %v3911 = vmax.f32 %v3907, %v3909
        %v3912 = vmax.f32 %v3908, %v3910
        %v3913 = vld [vmem:[%s1525] ss:$7 sm:$0xff]
        %v3914 = vld [vmem:[%s1527] ss:$7 sm:$0xff]
        %v3915 = vmax.f32 %v3911, %v3913
        %v3916 = vmax.f32 %v3912, %v3914
        %v3917 = vld [vmem:[%s1531] ss:$7 sm:$0xff]
        %v3918 = vld [vmem:[%s1533] ss:$7 sm:$0xff]
        %v3919 = vmax.f32 %v3915, %v3917
        %v3920 = vmax.f32 %v3916, %v3918
        %v3921 = vld [vmem:[%s1537] ss:$7 sm:$0xff]
        %v3922 = vld [vmem:[%s1539] ss:$7 sm:$0xff]
        %v3923 = vmax.f32 %v3919, %v3921
        %v3924 = vmax.f32 %v3920, %v3922
        %v3925 = vld [vmem:[%s1543] ss:$7 sm:$0xff]
        %v3926 = vld [vmem:[%s1545] ss:$7 sm:$0xff]
        %v3927 = vmax.f32 %v3923, %v3925
        %v3928 = vmax.f32 %v3924, %v3926
        %v3929 = vld [vmem:[%s1549] ss:$7 sm:$0xff]
        %v3930 = vld [vmem:[%s1551] ss:$7 sm:$0xff]
        %v3931 = vmax.f32 %v3927, %v3929
        %v3932 = vmax.f32 %v3928, %v3930
        %v3933 = vld [vmem:[%s329 + $0xa8] sm:$0xf]
        %v3934 = vld [vmem:[%s1] sm:$0x3]
        %v3935 = vld [vmem:[%s348] sm:$0x3]
        %v3937 = vunpack.c.l.b16 %v3933
        %v3938 = vpack.c.b16 %v3937, %v3937
        %v3940 = vshrl.u32 %v3938, 16
        %v3942 = vshll.u32 %v3938, 16
        %v3944 = vrot.slane %v3942, 1
        %v3945 = vor.u32 %v3940, %v3944
        %v3947 = vsel %vm449, %v3945, 0
        %v3950 = vsel %vm471, %v3935, 0
        %3952 = vmatprep.subr.bf16.mxu0 0
        %3953 = vmatpush1.bf16.msra.mxu0 %v3950
        %3954 = vmatprep.subr.bf16.mxu0 0
        %3955 = vmatpush1.bf16.msra.mxu0 0
        %3956 = vmatprep.subr.bf16.mxu0 0
        %3957 = vmatpush1.bf16.msra.mxu0 0
        %3958 = vmatprep.subr.bf16.mxu0 0
        %3959 = vmatpush1.bf16.msra.mxu0 0
        %3960 = vmatprep.subr.bf16.mxu0 0
        %3961 = vmatpush1.bf16.msra.mxu0 0
        %3962 = vmatprep.subr.bf16.mxu0 0
        %3963 = vmatpush1.bf16.msra.mxu0 0
        %3964 = vmatprep.subr.bf16.mxu0 0
        %3965 = vmatpush1.bf16.msra.mxu0 0
        %3966 = vmatprep.subr.bf16.mxu0 0
        %3967 = vmatpush1.bf16.msra.mxu0 0
        %3968 = vmatprep.subr.bf16.mxu0 0
        %3969 = vmatpush1.bf16.msra.mxu0 0
        %3970 = vmatprep.subr.bf16.mxu0 0
        %3971 = vmatpush1.bf16.msra.mxu0 0
        %3972 = vmatprep.subr.bf16.mxu0 0
        %3973 = vmatpush1.bf16.msra.mxu0 0
        %3974 = vmatprep.subr.bf16.mxu0 0
        %3975 = vmatpush1.bf16.msra.mxu0 0
        %3976 = vmatprep.subr.bf16.mxu0 0
        %3977 = vmatpush1.bf16.msra.mxu0 0
        %3978 = vmatprep.subr.bf16.mxu0 0
        %3979 = vmatpush1.bf16.msra.mxu0 0
        %3980 = vmatprep.subr.bf16.mxu0 0
        %3981 = vmatpush1.bf16.msra.mxu0 0
        %3982 = vmatprep.subr.bf16.mxu0 0
        %3983 = vmatpush1.bf16.msra.mxu0 0
        %3984 = vmatprep.mubr.bf16.mxu0 0
        %3985 = vmatmul.mubr.bf16.gmra.mrb[0].mxu0 %v3947
        %v3986 = vpop.f32.mrb[0].mxu0
        %v3987 = vadd.f32 0.0, %v3986
        %v3988 = vpop.f32.mrb[0].mxu0
        %v3989 = vpop.f32.mrb[0].mxu0
        %v3990 = vpop.f32.mrb[0].mxu0
        %3991 = vdwg.mxu0
        %v3993 = vsel %vm449, %v3933, 0
        %v3996 = vsel %vm471, %v3934, 0
        %3998 = vmatprep.subr.bf16.mxu0 0
        %3999 = vmatpush1.bf16.msra.mxu0 %v3996
        %4000 = vmatprep.subr.bf16.mxu0 0
        %4001 = vmatpush1.bf16.msra.mxu0 0
        %4002 = vmatprep.subr.bf16.mxu0 0
        %4003 = vmatpush1.bf16.msra.mxu0 0
        %4004 = vmatprep.subr.bf16.mxu0 0
        %4005 = vmatpush1.bf16.msra.mxu0 0
        %4006 = vmatprep.subr.bf16.mxu0 0
        %4007 = vmatpush1.bf16.msra.mxu0 0
        %4008 = vmatprep.subr.bf16.mxu0 0
        %4009 = vmatpush1.bf16.msra.mxu0 0
        %4010 = vmatprep.subr.bf16.mxu0 0
        %4011 = vmatpush1.bf16.msra.mxu0 0
        %4012 = vmatprep.subr.bf16.mxu0 0
        %4013 = vmatpush1.bf16.msra.mxu0 0
        %4014 = vmatprep.subr.bf16.mxu0 0
        %4015 = vmatpush1.bf16.msra.mxu0 0
        %4016 = vmatprep.subr.bf16.mxu0 0
        %4017 = vmatpush1.bf16.msra.mxu0 0
        %4018 = vmatprep.subr.bf16.mxu0 0
        %4019 = vmatpush1.bf16.msra.mxu0 0
        %4020 = vmatprep.subr.bf16.mxu0 0
        %4021 = vmatpush1.bf16.msra.mxu0 0
        %4022 = vmatprep.subr.bf16.mxu0 0
        %4023 = vmatpush1.bf16.msra.mxu0 0
        %4024 = vmatprep.subr.bf16.mxu0 0
        %4025 = vmatpush1.bf16.msra.mxu0 0
        %4026 = vmatprep.subr.bf16.mxu0 0
        %4027 = vmatpush1.bf16.msra.mxu0 0
        %4028 = vmatprep.subr.bf16.mxu0 0
        %4029 = vmatpush1.bf16.msra.mxu0 0
        %4030 = vmatprep.mubr.bf16.mxu0 0
        %4031 = vmatmul.mubr.bf16.gmra.mrb[0].mxu0 %v3993
        %v4032 = vpop.f32.mrb[0].mxu0
        %v4033 = vadd.f32 %v3987, %v4032
        %v4034 = vpop.f32.mrb[0].mxu0
        %v4035 = vpop.f32.mrb[0].mxu0
        %v4036 = vpop.f32.mrb[0].mxu0
        %4037 = vdwg.mxu0
        %v4038 = vld [vmem:[%s329 + $0xa8] sm:$0xe]
        %v4039 = vld [vmem:[%s329 + $0xac] sm:$0x1]
        %v4040 = vld [vmem:[%s671] sm:$0x3]
        %v4043 = vunpack.c.l.b16 %v4038
        %v4044 = vunpack.c.l.b16 %v4039
        %v4045 = vpack.c.b16 %v4044, %v4043
        %v4046 = vrot.slane %v4045, 1
        %v4048 = vsel %vm449, %v4046, 0
        %v4051 = vsel %vm471, %v4040, 0
        %4053 = vmatprep.subr.bf16.mxu0 0
        %4054 = vmatpush1.bf16.msra.mxu0 %v4051
        %4055 = vmatprep.subr.bf16.mxu0 0
        %4056 = vmatpush1.bf16.msra.mxu0 0
        %4057 = vmatprep.subr.bf16.mxu0 0
        %4058 = vmatpush1.bf16.msra.mxu0 0
        %4059 = vmatprep.subr.bf16.mxu0 0
        %4060 = vmatpush1.bf16.msra.mxu0 0
        %4061 = vmatprep.subr.bf16.mxu0 0
        %4062 = vmatpush1.bf16.msra.mxu0 0
        %4063 = vmatprep.subr.bf16.mxu0 0
        %4064 = vmatpush1.bf16.msra.mxu0 0
        %4065 = vmatprep.subr.bf16.mxu0 0
        %4066 = vmatpush1.bf16.msra.mxu0 0
        %4067 = vmatprep.subr.bf16.mxu0 0
        %4068 = vmatpush1.bf16.msra.mxu0 0
        %4069 = vmatprep.subr.bf16.mxu0 0
        %4070 = vmatpush1.bf16.msra.mxu0 0
        %4071 = vmatprep.subr.bf16.mxu0 0
        %4072 = vmatpush1.bf16.msra.mxu0 0
        %4073 = vmatprep.subr.bf16.mxu0 0
        %4074 = vmatpush1.bf16.msra.mxu0 0
        %4075 = vmatprep.subr.bf16.mxu0 0
        %4076 = vmatpush1.bf16.msra.mxu0 0
        %4077 = vmatprep.subr.bf16.mxu0 0
        %4078 = vmatpush1.bf16.msra.mxu0 0
        %4079 = vmatprep.subr.bf16.mxu0 0
        %4080 = vmatpush1.bf16.msra.mxu0 0
        %4081 = vmatprep.subr.bf16.mxu0 0
        %4082 = vmatpush1.bf16.msra.mxu0 0
        %4083 = vmatprep.subr.bf16.mxu0 0
        %4084 = vmatpush1.bf16.msra.mxu0 0
        %4085 = vmatprep.mubr.bf16.mxu0 0
        %4086 = vmatmul.mubr.bf16.gmra.mrb[0].mxu0 %v4048
        %v4087 = vpop.f32.mrb[0].mxu0
        %v4088 = vadd.f32 0.0, %v4087
        %v4089 = vpop.f32.mrb[0].mxu0
        %v4090 = vpop.f32.mrb[0].mxu0
        %v4091 = vpop.f32.mrb[0].mxu0
        %4092 = vdwg.mxu0
        %v4093 = vadd.f32 %v4033, %v4088
        %v4094 = vld [vmem:[%s820] sm:$0x3]
        %v4096 = vshrl.u32 %v4045, 16
        %v4098 = vrot.slane %v4096, 1
        %v4099 = vshll.u32 %v4045, 16
        %v4101 = vrot.slane %v4099, 2
        %v4102 = vor.u32 %v4098, %v4101
        %v4104 = vsel %vm449, %v4102, 0
        %v4107 = vsel %vm471, %v4094, 0
        %4109 = vmatprep.subr.bf16.mxu0 0
        %4110 = vmatpush1.bf16.msra.mxu0 %v4107
        %4111 = vmatprep.subr.bf16.mxu0 0
        %4112 = vmatpush1.bf16.msra.mxu0 0
        %4113 = vmatprep.subr.bf16.mxu0 0
        %4114 = vmatpush1.bf16.msra.mxu0 0
        %4115 = vmatprep.subr.bf16.mxu0 0
        %4116 = vmatpush1.bf16.msra.mxu0 0
        %4117 = vmatprep.subr.bf16.mxu0 0
        %4118 = vmatpush1.bf16.msra.mxu0 0
        %4119 = vmatprep.subr.bf16.mxu0 0
        %4120 = vmatpush1.bf16.msra.mxu0 0
        %4121 = vmatprep.subr.bf16.mxu0 0
        %4122 = vmatpush1.bf16.msra.mxu0 0
        %4123 = vmatprep.subr.bf16.mxu0 0
        %4124 = vmatpush1.bf16.msra.mxu0 0
        %4125 = vmatprep.subr.bf16.mxu0 0
        %4126 = vmatpush1.bf16.msra.mxu0 0
        %4127 = vmatprep.subr.bf16.mxu0 0
        %4128 = vmatpush1.bf16.msra.mxu0 0
        %4129 = vmatprep.subr.bf16.mxu0 0
        %4130 = vmatpush1.bf16.msra.mxu0 0
        %4131 = vmatprep.subr.bf16.mxu0 0
        %4132 = vmatpush1.bf16.msra.mxu0 0
        %4133 = vmatprep.subr.bf16.mxu0 0
        %4134 = vmatpush1.bf16.msra.mxu0 0
        %4135 = vmatprep.subr.bf16.mxu0 0
        %4136 = vmatpush1.bf16.msra.mxu0 0
        %4137 = vmatprep.subr.bf16.mxu0 0
        %4138 = vmatpush1.bf16.msra.mxu0 0
        %4139 = vmatprep.subr.bf16.mxu0 0
        %4140 = vmatpush1.bf16.msra.mxu0 0
        %4141 = vmatprep.mubr.bf16.mxu0 0
        %4142 = vmatmul.mubr.bf16.gmra.mrb[0].mxu0 %v4104
        %v4143 = vpop.f32.mrb[0].mxu0
        %v4144 = vadd.f32 0.0, %v4143
        %v4145 = vpop.f32.mrb[0].mxu0
        %v4146 = vpop.f32.mrb[0].mxu0
        %v4147 = vpop.f32.mrb[0].mxu0
        %4148 = vdwg.mxu0
        %v4149 = vadd.f32 %v4093, %v4144
        %v4150 = vld [vmem:[%s329 + $0xa8] sm:$0xc]
        %v4151 = vld [vmem:[%s329 + $0xac] sm:$0x3]
        %v4152 = vld [vmem:[%s995] sm:$0x3]
        %v4155 = vunpack.c.l.b16 %v4150
        %v4156 = vunpack.c.l.b16 %v4151
        %v4157 = vpack.c.b16 %v4156, %v4155
        %v4158 = vrot.slane %v4157, 2
        %v4160 = vsel %vm449, %v4158, 0
        %v4163 = vsel %vm471, %v4152, 0
        %4165 = vmatprep.subr.bf16.mxu0 0
        %4166 = vmatpush1.bf16.msra.mxu0 %v4163
        %4167 = vmatprep.subr.bf16.mxu0 0
        %4168 = vmatpush1.bf16.msra.mxu0 0
        %4169 = vmatprep.subr.bf16.mxu0 0
        %4170 = vmatpush1.bf16.msra.mxu0 0
        %4171 = vmatprep.subr.bf16.mxu0 0
        %4172 = vmatpush1.bf16.msra.mxu0 0
        %4173 = vmatprep.subr.bf16.mxu0 0
        %4174 = vmatpush1.bf16.msra.mxu0 0
        %4175 = vmatprep.subr.bf16.mxu0 0
        %4176 = vmatpush1.bf16.msra.mxu0 0
        %4177 = vmatprep.subr.bf16.mxu0 0
        %4178 = vmatpush1.bf16.msra.mxu0 0
        %4179 = vmatprep.subr.bf16.mxu0 0
        %4180 = vmatpush1.bf16.msra.mxu0 0
        %4181 = vmatprep.subr.bf16.mxu0 0
        %4182 = vmatpush1.bf16.msra.mxu0 0
        %4183 = vmatprep.subr.bf16.mxu0 0
        %4184 = vmatpush1.bf16.msra.mxu0 0
        %4185 = vmatprep.subr.bf16.mxu0 0
        %4186 = vmatpush1.bf16.msra.mxu0 0
        %4187 = vmatprep.subr.bf16.mxu0 0
        %4188 = vmatpush1.bf16.msra.mxu0 0
        %4189 = vmatprep.subr.bf16.mxu0 0
        %4190 = vmatpush1.bf16.msra.mxu0 0
        %4191 = vmatprep.subr.bf16.mxu0 0
        %4192 = vmatpush1.bf16.msra.mxu0 0
        %4193 = vmatprep.subr.bf16.mxu0 0
        %4194 = vmatpush1.bf16.msra.mxu0 0
        %4195 = vmatprep.subr.bf16.mxu0 0
        %4196 = vmatpush1.bf16.msra.mxu0 0
        %4197 = vmatprep.mubr.bf16.mxu0 0
        %4198 = vmatmul.mubr.bf16.gmra.mrb[0].mxu0 %v4160
        %v4199 = vpop.f32.mrb[0].mxu0
        %v4200 = vadd.f32 0.0, %v4199
        %v4201 = vpop.f32.mrb[0].mxu0
        %v4202 = vpop.f32.mrb[0].mxu0
        %v4203 = vpop.f32.mrb[0].mxu0
        %4204 = vdwg.mxu0
        %v4205 = vadd.f32 %v4149, %v4200
        %v4206 = vld [vmem:[%s1144] sm:$0x3]
        %v4208 = vshrl.u32 %v4157, 16
        %v4210 = vrot.slane %v4208, 2
        %v4211 = vshll.u32 %v4157, 16
        %v4213 = vrot.slane %v4211, 3
        %v4214 = vor.u32 %v4210, %v4213
        %v4216 = vsel %vm449, %v4214, 0
        %v4219 = vsel %vm471, %v4206, 0
        %4221 = vmatprep.subr.bf16.mxu0 0
        %4222 = vmatpush1.bf16.msra.mxu0 %v4219
        %4223 = vmatprep.subr.bf16.mxu0 0
        %4224 = vmatpush1.bf16.msra.mxu0 0
        %4225 = vmatprep.subr.bf16.mxu0 0
        %4226 = vmatpush1.bf16.msra.mxu0 0
        %4227 = vmatprep.subr.bf16.mxu0 0
        %4228 = vmatpush1.bf16.msra.mxu0 0
        %4229 = vmatprep.subr.bf16.mxu0 0
        %4230 = vmatpush1.bf16.msra.mxu0 0
        %4231 = vmatprep.subr.bf16.mxu0 0
        %4232 = vmatpush1.bf16.msra.mxu0 0
        %4233 = vmatprep.subr.bf16.mxu0 0
        %4234 = vmatpush1.bf16.msra.mxu0 0
        %4235 = vmatprep.subr.bf16.mxu0 0
        %4236 = vmatpush1.bf16.msra.mxu0 0
        %4237 = vmatprep.subr.bf16.mxu0 0
        %4238 = vmatpush1.bf16.msra.mxu0 0
        %4239 = vmatprep.subr.bf16.mxu0 0
        %4240 = vmatpush1.bf16.msra.mxu0 0
        %4241 = vmatprep.subr.bf16.mxu0 0
        %4242 = vmatpush1.bf16.msra.mxu0 0
        %4243 = vmatprep.subr.bf16.mxu0 0
        %4244 = vmatpush1.bf16.msra.mxu0 0
        %4245 = vmatprep.subr.bf16.mxu0 0
        %4246 = vmatpush1.bf16.msra.mxu0 0
        %4247 = vmatprep.subr.bf16.mxu0 0
        %4248 = vmatpush1.bf16.msra.mxu0 0
        %4249 = vmatprep.subr.bf16.mxu0 0
        %4250 = vmatpush1.bf16.msra.mxu0 0
        %4251 = vmatprep.subr.bf16.mxu0 0
        %4252 = vmatpush1.bf16.msra.mxu0 0
        %4253 = vmatprep.mubr.bf16.mxu0 0
        %4254 = vmatmul.mubr.bf16.gmra.mrb[0].mxu0 %v4216
        %v4255 = vpop.f32.mrb[0].mxu0
        %v4256 = vadd.f32 0.0, %v4255
        %v4257 = vpop.f32.mrb[0].mxu0
        %v4258 = vpop.f32.mrb[0].mxu0
        %v4259 = vpop.f32.mrb[0].mxu0
        %4260 = vdwg.mxu0
        %v4261 = vadd.f32 %v4205, %v4256
        %v4262 = vld [vmem:[%s329 + $0xa8] sm:$0x8]
        %v4263 = vld [vmem:[%s329 + $0xac] sm:$0x7]
        %v4264 = vld [vmem:[%s1319] sm:$0x3]
        %v4267 = vunpack.c.l.b16 %v4262
        %v4268 = vunpack.c.l.b16 %v4263
        %v4269 = vpack.c.b16 %v4268, %v4267
        %v4270 = vrot.slane %v4269, 3
        %v4272 = vsel %vm449, %v4270, 0
        %v4275 = vsel %vm471, %v4264, 0
        %4277 = vmatprep.subr.bf16.mxu0 0
        %4278 = vmatpush1.bf16.msra.mxu0 %v4275
        %4279 = vmatprep.subr.bf16.mxu0 0
        %4280 = vmatpush1.bf16.msra.mxu0 0
        %4281 = vmatprep.subr.bf16.mxu0 0
        %4282 = vmatpush1.bf16.msra.mxu0 0
        %4283 = vmatprep.subr.bf16.mxu0 0
        %4284 = vmatpush1.bf16.msra.mxu0 0
        %4285 = vmatprep.subr.bf16.mxu0 0
        %4286 = vmatpush1.bf16.msra.mxu0 0
        %4287 = vmatprep.subr.bf16.mxu0 0
        %4288 = vmatpush1.bf16.msra.mxu0 0
        %4289 = vmatprep.subr.bf16.mxu0 0
        %4290 = vmatpush1.bf16.msra.mxu0 0
        %4291 = vmatprep.subr.bf16.mxu0 0
        %4292 = vmatpush1.bf16.msra.mxu0 0
        %4293 = vmatprep.subr.bf16.mxu0 0
        %4294 = vmatpush1.bf16.msra.mxu0 0
        %4295 = vmatprep.subr.bf16.mxu0 0
        %4296 = vmatpush1.bf16.msra.mxu0 0
        %4297 = vmatprep.subr.bf16.mxu0 0
        %4298 = vmatpush1.bf16.msra.mxu0 0
        %4299 = vmatprep.subr.bf16.mxu0 0
        %4300 = vmatpush1.bf16.msra.mxu0 0
        %4301 = vmatprep.subr.bf16.mxu0 0
        %4302 = vmatpush1.bf16.msra.mxu0 0
        %4303 = vmatprep.subr.bf16.mxu0 0
        %4304 = vmatpush1.bf16.msra.mxu0 0
        %4305 = vmatprep.subr.bf16.mxu0 0
        %4306 = vmatpush1.bf16.msra.mxu0 0
        %4307 = vmatprep.subr.bf16.mxu0 0
        %4308 = vmatpush1.bf16.msra.mxu0 0
        %4309 = vmatprep.mubr.bf16.mxu0 0
        %4310 = vmatmul.mubr.bf16.gmra.mrb[0].mxu0 %v4272
        %v4311 = vpop.f32.mrb[0].mxu0
        %v4312 = vadd.f32 0.0, %v4311
        %v4313 = vpop.f32.mrb[0].mxu0
        %v4314 = vpop.f32.mrb[0].mxu0
        %v4315 = vpop.f32.mrb[0].mxu0
        %4316 = vdwg.mxu0
        %v4317 = vadd.f32 %v4261, %v4312
        %v4318 = vadd.f32 %v4317, %v1471
        %v4319 = vmax.f32 %v4318, 0.0
        %vm4320 = vcmask 260096
        %v4321 = vsel %vm4320, %v4319, -inf
        %v4322 = vrot.slane %v4321, 4
        %v4323 = vmax.f32 %v4321, %v4322
        %v4324 = vrot.slane %v4323, 2
        %v4325 = vmax.f32 %v4323, %v4324
        %v4326 = vrot.slane %v4325, 1
        %v4327 = vmax.f32 %v4325, %v4326
        %vm4335 = vcmask 1042432
        %v4336 = vrot.slane %v1553, 5
        %v4337 = vrot.slane %v1554, 5
        %v4338 = vsel %vm4335, %v4336, %v4337
        %v4339 = vrot.slane %v2742, 5
        %v4340 = vsel %vm4335, %v4337, %v4339
        %v4341 = vrot.slane %v2743, 5
        %v4342 = vsel %vm4335, %v4339, %v4341
        %v4343 = vrot.slane %v3931, 5
        %v4344 = vsel %vm4335, %v4341, %v4343
        %v4345 = vrot.slane %v3932, 5
        %v4346 = vsel %vm4335, %v4343, %v4345
        %v4347 = vrot.slane %v4327, 5
        %v4348 = vsel %vm4335, %v4345, %v4347
        %v4356 = vsel %vm4335, 0.0, %v4336
        %vm4357 = vcmask 1043456
        %v4358 = vsel %vm4357, %v4348, 0.0
        %v4359 = vld [vmem:[%s4] sm:$0x1]
        %v4360 = vpack.c.bf16 %v4338, %v4356
        %v4361 = vpack.c.bf16 %v4342, %v4340
        %v4362 = vpack.c.bf16 %v4346, %v4344
        %v4363 = vpack.c.bf16 %v4358, %v4358
        %v4364 = vld [vmem:[%s3] sm:$0xf]
        %v4365 = vld [vmem:[%s3 + $0x4] sm:$0xf]
        %v4366 = vld [vmem:[%s3 + $0x8] sm:$0xf]
        %v4367 = vld [vmem:[%s3 + $0xc] sm:$0xf]
        %s4368 = scalar_lea.vmem %s3, 16
        %v4369 = vld [vmem:[%s4368] sm:$0xf]
        %v4370 = vld [vmem:[%s4368 + $0x4] sm:$0xf]
        %v4371 = vld [vmem:[%s4368 + $0x8] sm:$0xf]
        %v4372 = vld [vmem:[%s4368 + $0xc] sm:$0xf]
        %v4374 = vshrl.u32 %v4360, 16
        %v4376 = vshll.u32 %v4360, 16
        %v4378 = vrot.slane %v4376, 1
        %v4379 = vor.u32 %v4374, %v4378
        %v4381 = vshll.u32 %v4361, 16
        %v4383 = vrot.slane %v4381, 1
        %v4384 = vsel %vm388, %v4379, %v4383
        %v4385 = vshrl.u32 %v4361, 16
        %v4387 = vor.u32 %v4385, %v4383
        %v4389 = vshll.u32 %v4362, 16
        %v4391 = vrot.slane %v4389, 1
        %v4392 = vsel %vm388, %v4387, %v4391
        %v4393 = vshrl.u32 %v4362, 16
        %v4395 = vor.u32 %v4393, %v4391
        %v4397 = vshll.u32 %v4363, 16
        %v4399 = vrot.slane %v4397, 1
        %v4400 = vsel %vm388, %v4395, %v4399
        %v4401 = vshrl.u32 %v4363, 16
        %v4407 = vunpack.c.l.b16 %v4369
        %v4408 = vunpack.c.l.b16 %v4370
        %v4409 = vunpack.c.l.b16 %v4371
        %v4410 = vunpack.c.l.b16 %v4372
        %v4411 = vpack.c.b16 %v4408, %v4407
        %v4412 = vpack.c.b16 %v4410, %v4409
        %v4416 = vsel %vm1501, %v4384, 0
        %v4419 = vsel %vm1501, %v4392, 0
        %v4422 = vsel %vm1501, %v4400, 0
        %v4425 = vsel %vm1501, %v4401, 0
        %4427 = vmatprep.subr.bf16.mxu0 0
        %4428 = vmatpush1.bf16.msra.mxu0 %v4411
        %4429 = vmatprep.subr.bf16.mxu0 0
        %4430 = vmatpush1.bf16.msra.mxu0 %v4412
        %4431 = vmatprep.subr.bf16.mxu0 0
        %4432 = vmatpush1.bf16.msra.mxu0 0
        %4433 = vmatprep.subr.bf16.mxu0 0
        %4434 = vmatpush1.bf16.msra.mxu0 0
        %4435 = vmatprep.subr.bf16.mxu0 0
        %4436 = vmatpush1.bf16.msra.mxu0 0
        %4437 = vmatprep.subr.bf16.mxu0 0
        %4438 = vmatpush1.bf16.msra.mxu0 0
        %4439 = vmatprep.subr.bf16.mxu0 0
        %4440 = vmatpush1.bf16.msra.mxu0 0
        %4441 = vmatprep.subr.bf16.mxu0 0
        %4442 = vmatpush1.bf16.msra.mxu0 0
        %4443 = vmatprep.subr.bf16.mxu0 0
        %4444 = vmatpush1.bf16.msra.mxu0 0
        %4445 = vmatprep.subr.bf16.mxu0 0
        %4446 = vmatpush1.bf16.msra.mxu0 0
        %4447 = vmatprep.subr.bf16.mxu0 0
        %4448 = vmatpush1.bf16.msra.mxu0 0
        %4449 = vmatprep.subr.bf16.mxu0 0
        %4450 = vmatpush1.bf16.msra.mxu0 0
        %4451 = vmatprep.subr.bf16.mxu0 0
        %4452 = vmatpush1.bf16.msra.mxu0 0
        %4453 = vmatprep.subr.bf16.mxu0 0
        %4454 = vmatpush1.bf16.msra.mxu0 0
        %4455 = vmatprep.subr.bf16.mxu0 0
        %4456 = vmatpush1.bf16.msra.mxu0 0
        %4457 = vmatprep.subr.bf16.mxu0 0
        %4458 = vmatpush1.bf16.msra.mxu0 0
        %4459 = vmatprep.mubr.bf16.mxu0 0
        %4460 = vmatmul.mubr.bf16.gmra.mrb[0].mxu0 %v4416
        %v4461 = vpop.f32.mrb[0].mxu0
        %v4462 = vadd.f32 0.0, %v4461
        %v4463 = vpop.f32.mrb[0].mxu0
        %v4464 = vpop.f32.mrb[0].mxu0
        %v4465 = vadd.f32 0.0, %v4464
        %v4466 = vpop.f32.mrb[0].mxu0
        %4467 = vmatprep.mubr.bf16.mxu0 0
        %4468 = vmatmul.mubr.bf16.gmra.mrb[0].mxu0 %v4419
        %v4469 = vpop.f32.mrb[0].mxu0
        %v4470 = vadd.f32 0.0, %v4469
        %v4471 = vpop.f32.mrb[0].mxu0
        %v4472 = vpop.f32.mrb[0].mxu0
        %v4473 = vadd.f32 0.0, %v4472
        %v4474 = vpop.f32.mrb[0].mxu0
        %4475 = vmatprep.mubr.bf16.mxu0 0
        %4476 = vmatmul.mubr.bf16.gmra.mrb[0].mxu0 %v4422
        %v4477 = vpop.f32.mrb[0].mxu0
        %v4478 = vadd.f32 0.0, %v4477
        %v4479 = vpop.f32.mrb[0].mxu0
        %v4480 = vpop.f32.mrb[0].mxu0
        %v4481 = vadd.f32 0.0, %v4480
        %v4482 = vpop.f32.mrb[0].mxu0
        %4483 = vmatprep.mubr.bf16.mxu0 0
        %4484 = vmatmul.mubr.bf16.gmra.mrb[0].mxu0 %v4425
        %v4485 = vpop.f32.mrb[0].mxu0
        %v4486 = vadd.f32 0.0, %v4485
        %v4487 = vpop.f32.mrb[0].mxu0
        %v4488 = vpop.f32.mrb[0].mxu0
        %v4489 = vpop.f32.mrb[0].mxu0
        %4490 = vdwg.mxu0
        %v4495 = vunpack.c.l.b16 %v4364
        %v4496 = vunpack.c.l.b16 %v4365
        %v4497 = vunpack.c.l.b16 %v4366
        %v4498 = vunpack.c.l.b16 %v4367
        %v4499 = vpack.c.b16 %v4496, %v4495
        %v4500 = vpack.c.b16 %v4498, %v4497
        %v4503 = vsel %vm1501, %v4360, 0
        %v4505 = vsel %vm1501, %v4361, 0
        %v4507 = vsel %vm1501, %v4362, 0
        %v4509 = vsel %vm1501, %v4363, 0
        %4511 = vmatprep.subr.bf16.mxu0 0
        %4512 = vmatpush1.bf16.msra.mxu0 %v4499
        %4513 = vmatprep.subr.bf16.mxu0 0
        %4514 = vmatpush1.bf16.msra.mxu0 %v4500
        %4515 = vmatprep.subr.bf16.mxu0 0
        %4516 = vmatpush1.bf16.msra.mxu0 0
        %4517 = vmatprep.subr.bf16.mxu0 0
        %4518 = vmatpush1.bf16.msra.mxu0 0
        %4519 = vmatprep.subr.bf16.mxu0 0
        %4520 = vmatpush1.bf16.msra.mxu0 0
        %4521 = vmatprep.subr.bf16.mxu0 0
        %4522 = vmatpush1.bf16.msra.mxu0 0
        %4523 = vmatprep.subr.bf16.mxu0 0
        %4524 = vmatpush1.bf16.msra.mxu0 0
        %4525 = vmatprep.subr.bf16.mxu0 0
        %4526 = vmatpush1.bf16.msra.mxu0 0
        %4527 = vmatprep.subr.bf16.mxu0 0
        %4528 = vmatpush1.bf16.msra.mxu0 0
        %4529 = vmatprep.subr.bf16.mxu0 0
        %4530 = vmatpush1.bf16.msra.mxu0 0
        %4531 = vmatprep.subr.bf16.mxu0 0
        %4532 = vmatpush1.bf16.msra.mxu0 0
        %4533 = vmatprep.subr.bf16.mxu0 0
        %4534 = vmatpush1.bf16.msra.mxu0 0
        %4535 = vmatprep.subr.bf16.mxu0 0
        %4536 = vmatpush1.bf16.msra.mxu0 0
        %4537 = vmatprep.subr.bf16.mxu0 0
        %4538 = vmatpush1.bf16.msra.mxu0 0
        %4539 = vmatprep.subr.bf16.mxu0 0
        %4540 = vmatpush1.bf16.msra.mxu0 0
        %4541 = vmatprep.subr.bf16.mxu0 0
        %4542 = vmatpush1.bf16.msra.mxu0 0
        %4543 = vmatprep.mubr.bf16.mxu0 0
        %4544 = vmatmul.mubr.bf16.gmra.mrb[0].mxu0 %v4503
        %v4545 = vpop.f32.mrb[0].mxu0
        %v4546 = vadd.f32 %v4462, %v4545
        %v4547 = vpop.f32.mrb[0].mxu0
        %v4548 = vpop.f32.mrb[0].mxu0
        %v4549 = vadd.f32 %v4465, %v4548
        %v4550 = vpop.f32.mrb[0].mxu0
        %4551 = vmatprep.mubr.bf16.mxu0 0
        %4552 = vmatmul.mubr.bf16.gmra.mrb[0].mxu0 %v4505
        %v4553 = vpop.f32.mrb[0].mxu0
        %v4554 = vadd.f32 %v4470, %v4553
        %v4555 = vpop.f32.mrb[0].mxu0
        %v4556 = vpop.f32.mrb[0].mxu0
        %v4557 = vadd.f32 %v4473, %v4556
        %v4558 = vpop.f32.mrb[0].mxu0
        %4559 = vmatprep.mubr.bf16.mxu0 0
        %4560 = vmatmul.mubr.bf16.gmra.mrb[0].mxu0 %v4507
        %v4561 = vpop.f32.mrb[0].mxu0
        %v4562 = vadd.f32 %v4478, %v4561
        %v4563 = vpop.f32.mrb[0].mxu0
        %v4564 = vpop.f32.mrb[0].mxu0
        %v4565 = vadd.f32 %v4481, %v4564
        %v4566 = vpop.f32.mrb[0].mxu0
        %4567 = vmatprep.mubr.bf16.mxu0 0
        %4568 = vmatmul.mubr.bf16.gmra.mrb[0].mxu0 %v4509
        %v4569 = vpop.f32.mrb[0].mxu0
        %v4570 = vadd.f32 %v4486, %v4569
        %v4571 = vpop.f32.mrb[0].mxu0
        %v4572 = vpop.f32.mrb[0].mxu0
        %v4573 = vpop.f32.mrb[0].mxu0
        %4574 = vdwg.mxu0
        %s4575 = scalar_lea.vmem %s3, 32
        %v4576 = vld [vmem:[%s4575] sm:$0xf]
        %v4577 = vld [vmem:[%s4575 + $0x4] sm:$0xf]
        %v4578 = vld [vmem:[%s4575 + $0x8] sm:$0xf]
        %v4579 = vld [vmem:[%s4575 + $0xc] sm:$0xf]
        %v4584 = vrot.slane %v4360, 1
        %v4585 = vrot.slane %v4361, 1
        %v4586 = vsel %vm676, %v4584, %v4585
        %v4587 = vrot.slane %v4362, 1
        %v4588 = vsel %vm676, %v4585, %v4587
        %v4589 = vrot.slane %v4363, 1
        %v4590 = vsel %vm676, %v4587, %v4589
        %v4595 = vunpack.c.l.b16 %v4576
        %v4596 = vunpack.c.l.b16 %v4577
        %v4597 = vunpack.c.l.b16 %v4578
        %v4598 = vunpack.c.l.b16 %v4579
        %v4599 = vpack.c.b16 %v4596, %v4595
        %v4600 = vpack.c.b16 %v4598, %v4597
        %v4604 = vsel %vm1501, %v4586, 0
        %v4607 = vsel %vm1501, %v4588, 0
        %v4610 = vsel %vm1501, %v4590, 0
        %v4613 = vsel %vm1501, %v4589, 0
        %4615 = vmatprep.subr.bf16.mxu0 0
        %4616 = vmatpush1.bf16.msra.mxu0 %v4599
        %4617 = vmatprep.subr.bf16.mxu0 0
        %4618 = vmatpush1.bf16.msra.mxu0 %v4600
        %4619 = vmatprep.subr.bf16.mxu0 0
        %4620 = vmatpush1.bf16.msra.mxu0 0
        %4621 = vmatprep.subr.bf16.mxu0 0
        %4622 = vmatpush1.bf16.msra.mxu0 0
        %4623 = vmatprep.subr.bf16.mxu0 0
        %4624 = vmatpush1.bf16.msra.mxu0 0
        %4625 = vmatprep.subr.bf16.mxu0 0
        %4626 = vmatpush1.bf16.msra.mxu0 0
        %4627 = vmatprep.subr.bf16.mxu0 0
        %4628 = vmatpush1.bf16.msra.mxu0 0
        %4629 = vmatprep.subr.bf16.mxu0 0
        %4630 = vmatpush1.bf16.msra.mxu0 0
        %4631 = vmatprep.subr.bf16.mxu0 0
        %4632 = vmatpush1.bf16.msra.mxu0 0
        %4633 = vmatprep.subr.bf16.mxu0 0
        %4634 = vmatpush1.bf16.msra.mxu0 0
        %4635 = vmatprep.subr.bf16.mxu0 0
        %4636 = vmatpush1.bf16.msra.mxu0 0
        %4637 = vmatprep.subr.bf16.mxu0 0
        %4638 = vmatpush1.bf16.msra.mxu0 0
        %4639 = vmatprep.subr.bf16.mxu0 0
        %4640 = vmatpush1.bf16.msra.mxu0 0
        %4641 = vmatprep.subr.bf16.mxu0 0
        %4642 = vmatpush1.bf16.msra.mxu0 0
        %4643 = vmatprep.subr.bf16.mxu0 0
        %4644 = vmatpush1.bf16.msra.mxu0 0
        %4645 = vmatprep.subr.bf16.mxu0 0
        %4646 = vmatpush1.bf16.msra.mxu0 0
        %4647 = vmatprep.mubr.bf16.mxu0 0
        %4648 = vmatmul.mubr.bf16.gmra.mrb[0].mxu0 %v4604
        %v4649 = vpop.f32.mrb[0].mxu0
        %v4650 = vadd.f32 0.0, %v4649
        %v4651 = vpop.f32.mrb[0].mxu0
        %v4652 = vpop.f32.mrb[0].mxu0
        %v4653 = vadd.f32 0.0, %v4652
        %v4654 = vpop.f32.mrb[0].mxu0
        %4655 = vmatprep.mubr.bf16.mxu0 0
        %4656 = vmatmul.mubr.bf16.gmra.mrb[0].mxu0 %v4607
        %v4657 = vpop.f32.mrb[0].mxu0
        %v4658 = vadd.f32 0.0, %v4657
        %v4659 = vpop.f32.mrb[0].mxu0
        %v4660 = vpop.f32.mrb[0].mxu0
        %v4661 = vadd.f32 0.0, %v4660
        %v4662 = vpop.f32.mrb[0].mxu0
        %4663 = vmatprep.mubr.bf16.mxu0 0
        %4664 = vmatmul.mubr.bf16.gmra.mrb[0].mxu0 %v4610
        %v4665 = vpop.f32.mrb[0].mxu0
        %v4666 = vadd.f32 0.0, %v4665
        %v4667 = vpop.f32.mrb[0].mxu0
        %v4668 = vpop.f32.mrb[0].mxu0
        %v4669 = vadd.f32 0.0, %v4668
        %v4670 = vpop.f32.mrb[0].mxu0
        %4671 = vmatprep.mubr.bf16.mxu0 0
        %4672 = vmatmul.mubr.bf16.gmra.mrb[0].mxu0 %v4613
        %v4673 = vpop.f32.mrb[0].mxu0
        %v4674 = vadd.f32 0.0, %v4673
        %v4675 = vpop.f32.mrb[0].mxu0
        %v4676 = vpop.f32.mrb[0].mxu0
        %v4677 = vpop.f32.mrb[0].mxu0
        %4678 = vdwg.mxu0
        %v4679 = vadd.f32 %v4546, %v4650
        %v4680 = vadd.f32 %v4549, %v4653
        %v4681 = vadd.f32 %v4554, %v4658
        %v4682 = vadd.f32 %v4557, %v4661
        %v4683 = vadd.f32 %v4562, %v4666
        %v4684 = vadd.f32 %v4565, %v4669
        %v4685 = vadd.f32 %v4570, %v4674
        %s4686 = scalar_lea.vmem %s3, 48
        %v4687 = vld [vmem:[%s4686] sm:$0xf]
        %v4688 = vld [vmem:[%s4686 + $0x4] sm:$0xf]
        %v4689 = vld [vmem:[%s4686 + $0x8] sm:$0xf]
        %v4690 = vld [vmem:[%s4686 + $0xc] sm:$0xf]
        %v4691 = vrot.slane %v4374, 1
        %v4692 = vrot.slane %v4376, 2
        %v4693 = vor.u32 %v4691, %v4692
        %v4694 = vrot.slane %v4385, 1
        %v4695 = vrot.slane %v4381, 2
        %v4696 = vor.u32 %v4694, %v4695
        %v4697 = vsel %vm825, %v4693, %v4696
        %v4698 = vrot.slane %v4393, 1
        %v4699 = vrot.slane %v4389, 2
        %v4700 = vor.u32 %v4698, %v4699
        %v4701 = vsel %vm825, %v4696, %v4700
        %v4702 = vrot.slane %v4401, 1
        %v4703 = vrot.slane %v4397, 2
        %v4704 = vor.u32 %v4702, %v4703
        %v4705 = vsel %vm825, %v4700, %v4704
        %v4710 = vunpack.c.l.b16 %v4687
        %v4711 = vunpack.c.l.b16 %v4688
        %v4712 = vunpack.c.l.b16 %v4689
        %v4713 = vunpack.c.l.b16 %v4690
        %v4714 = vpack.c.b16 %v4711, %v4710
        %v4715 = vpack.c.b16 %v4713, %v4712
        %v4719 = vsel %vm1501, %v4697, 0
        %v4722 = vsel %vm1501, %v4701, 0
        %v4725 = vsel %vm1501, %v4705, 0
        %v4728 = vsel %vm1501, %v4702, 0
        %4730 = vmatprep.subr.bf16.mxu0 0
        %4731 = vmatpush1.bf16.msra.mxu0 %v4714
        %4732 = vmatprep.subr.bf16.mxu0 0
        %4733 = vmatpush1.bf16.msra.mxu0 %v4715
        %4734 = vmatprep.subr.bf16.mxu0 0
        %4735 = vmatpush1.bf16.msra.mxu0 0
        %4736 = vmatprep.subr.bf16.mxu0 0
        %4737 = vmatpush1.bf16.msra.mxu0 0
        %4738 = vmatprep.subr.bf16.mxu0 0
        %4739 = vmatpush1.bf16.msra.mxu0 0
        %4740 = vmatprep.subr.bf16.mxu0 0
        %4741 = vmatpush1.bf16.msra.mxu0 0
        %4742 = vmatprep.subr.bf16.mxu0 0
        %4743 = vmatpush1.bf16.msra.mxu0 0
        %4744 = vmatprep.subr.bf16.mxu0 0
        %4745 = vmatpush1.bf16.msra.mxu0 0
        %4746 = vmatprep.subr.bf16.mxu0 0
        %4747 = vmatpush1.bf16.msra.mxu0 0
        %4748 = vmatprep.subr.bf16.mxu0 0
        %4749 = vmatpush1.bf16.msra.mxu0 0
        %4750 = vmatprep.subr.bf16.mxu0 0
        %4751 = vmatpush1.bf16.msra.mxu0 0
        %4752 = vmatprep.subr.bf16.mxu0 0
        %4753 = vmatpush1.bf16.msra.mxu0 0
        %4754 = vmatprep.subr.bf16.mxu0 0
        %4755 = vmatpush1.bf16.msra.mxu0 0
        %4756 = vmatprep.subr.bf16.mxu0 0
        %4757 = vmatpush1.bf16.msra.mxu0 0
        %4758 = vmatprep.subr.bf16.mxu0 0
        %4759 = vmatpush1.bf16.msra.mxu0 0
        %4760 = vmatprep.subr.bf16.mxu0 0
        %4761 = vmatpush1.bf16.msra.mxu0 0
        %4762 = vmatprep.mubr.bf16.mxu0 0
        %4763 = vmatmul.mubr.bf16.gmra.mrb[0].mxu0 %v4719
        %v4764 = vpop.f32.mrb[0].mxu0
        %v4765 = vadd.f32 0.0, %v4764
        %v4766 = vpop.f32.mrb[0].mxu0
        %v4767 = vpop.f32.mrb[0].mxu0
        %v4768 = vadd.f32 0.0, %v4767
        %v4769 = vpop.f32.mrb[0].mxu0
        %4770 = vmatprep.mubr.bf16.mxu0 0
        %4771 = vmatmul.mubr.bf16.gmra.mrb[0].mxu0 %v4722
        %v4772 = vpop.f32.mrb[0].mxu0
        %v4773 = vadd.f32 0.0, %v4772
        %v4774 = vpop.f32.mrb[0].mxu0
        %v4775 = vpop.f32.mrb[0].mxu0
        %v4776 = vadd.f32 0.0, %v4775
        %v4777 = vpop.f32.mrb[0].mxu0
        %4778 = vmatprep.mubr.bf16.mxu0 0
        %4779 = vmatmul.mubr.bf16.gmra.mrb[0].mxu0 %v4725
        %v4780 = vpop.f32.mrb[0].mxu0
        %v4781 = vadd.f32 0.0, %v4780
        %v4782 = vpop.f32.mrb[0].mxu0
        %v4783 = vpop.f32.mrb[0].mxu0
        %v4784 = vadd.f32 0.0, %v4783
        %v4785 = vpop.f32.mrb[0].mxu0
        %4786 = vmatprep.mubr.bf16.mxu0 0
        %4787 = vmatmul.mubr.bf16.gmra.mrb[0].mxu0 %v4728
        %v4788 = vpop.f32.mrb[0].mxu0
        %v4789 = vadd.f32 0.0, %v4788
        %v4790 = vpop.f32.mrb[0].mxu0
        %v4791 = vpop.f32.mrb[0].mxu0
        %v4792 = vpop.f32.mrb[0].mxu0
        %4793 = vdwg.mxu0
        %v4794 = vadd.f32 %v4679, %v4765
        %v4795 = vadd.f32 %v4680, %v4768
        %v4796 = vadd.f32 %v4681, %v4773
        %v4797 = vadd.f32 %v4682, %v4776
        %v4798 = vadd.f32 %v4683, %v4781
        %v4799 = vadd.f32 %v4684, %v4784
        %v4800 = vadd.f32 %v4685, %v4789
        %s4801 = scalar_lea.vmem %s3, 64
        %v4802 = vld [vmem:[%s4801] sm:$0xf]
        %v4803 = vld [vmem:[%s4801 + $0x4] sm:$0xf]
        %v4804 = vld [vmem:[%s4801 + $0x8] sm:$0xf]
        %v4805 = vld [vmem:[%s4801 + $0xc] sm:$0xf]
        %v4806 = vrot.slane %v4360, 2
        %v4807 = vrot.slane %v4361, 2
        %v4808 = vsel %vm1000, %v4806, %v4807
        %v4809 = vrot.slane %v4362, 2
        %v4810 = vsel %vm1000, %v4807, %v4809
        %v4811 = vrot.slane %v4363, 2
        %v4812 = vsel %vm1000, %v4809, %v4811
        %v4817 = vunpack.c.l.b16 %v4802
        %v4818 = vunpack.c.l.b16 %v4803
        %v4819 = vunpack.c.l.b16 %v4804
        %v4820 = vunpack.c.l.b16 %v4805
        %v4821 = vpack.c.b16 %v4818, %v4817
        %v4822 = vpack.c.b16 %v4820, %v4819
        %v4826 = vsel %vm1501, %v4808, 0
        %v4829 = vsel %vm1501, %v4810, 0
        %v4832 = vsel %vm1501, %v4812, 0
        %v4835 = vsel %vm1501, %v4811, 0
        %4837 = vmatprep.subr.bf16.mxu0 0
        %4838 = vmatpush1.bf16.msra.mxu0 %v4821
        %4839 = vmatprep.subr.bf16.mxu0 0
        %4840 = vmatpush1.bf16.msra.mxu0 %v4822
        %4841 = vmatprep.subr.bf16.mxu0 0
        %4842 = vmatpush1.bf16.msra.mxu0 0
        %4843 = vmatprep.subr.bf16.mxu0 0
        %4844 = vmatpush1.bf16.msra.mxu0 0
        %4845 = vmatprep.subr.bf16.mxu0 0
        %4846 = vmatpush1.bf16.msra.mxu0 0
        %4847 = vmatprep.subr.bf16.mxu0 0
        %4848 = vmatpush1.bf16.msra.mxu0 0
        %4849 = vmatprep.subr.bf16.mxu0 0
        %4850 = vmatpush1.bf16.msra.mxu0 0
        %4851 = vmatprep.subr.bf16.mxu0 0
        %4852 = vmatpush1.bf16.msra.mxu0 0
        %4853 = vmatprep.subr.bf16.mxu0 0
        %4854 = vmatpush1.bf16.msra.mxu0 0
        %4855 = vmatprep.subr.bf16.mxu0 0
        %4856 = vmatpush1.bf16.msra.mxu0 0
        %4857 = vmatprep.subr.bf16.mxu0 0
        %4858 = vmatpush1.bf16.msra.mxu0 0
        %4859 = vmatprep.subr.bf16.mxu0 0
        %4860 = vmatpush1.bf16.msra.mxu0 0
        %4861 = vmatprep.subr.bf16.mxu0 0
        %4862 = vmatpush1.bf16.msra.mxu0 0
        %4863 = vmatprep.subr.bf16.mxu0 0
        %4864 = vmatpush1.bf16.msra.mxu0 0
        %4865 = vmatprep.subr.bf16.mxu0 0
        %4866 = vmatpush1.bf16.msra.mxu0 0
        %4867 = vmatprep.subr.bf16.mxu0 0
        %4868 = vmatpush1.bf16.msra.mxu0 0
        %4869 = vmatprep.mubr.bf16.mxu0 0
        %4870 = vmatmul.mubr.bf16.gmra.mrb[0].mxu0 %v4826
        %v4871 = vpop.f32.mrb[0].mxu0
        %v4872 = vadd.f32 0.0, %v4871
        %v4873 = vpop.f32.mrb[0].mxu0
        %v4874 = vpop.f32.mrb[0].mxu0
        %v4875 = vadd.f32 0.0, %v4874
        %v4876 = vpop.f32.mrb[0].mxu0
        %4877 = vmatprep.mubr.bf16.mxu0 0
        %4878 = vmatmul.mubr.bf16.gmra.mrb[0].mxu0 %v4829
        %v4879 = vpop.f32.mrb[0].mxu0
        %v4880 = vadd.f32 0.0, %v4879
        %v4881 = vpop.f32.mrb[0].mxu0
        %v4882 = vpop.f32.mrb[0].mxu0
        %v4883 = vadd.f32 0.0, %v4882
        %v4884 = vpop.f32.mrb[0].mxu0
        %4885 = vmatprep.mubr.bf16.mxu0 0
        %4886 = vmatmul.mubr.bf16.gmra.mrb[0].mxu0 %v4832
        %v4887 = vpop.f32.mrb[0].mxu0
        %v4888 = vadd.f32 0.0, %v4887
        %v4889 = vpop.f32.mrb[0].mxu0
        %v4890 = vpop.f32.mrb[0].mxu0
        %v4891 = vadd.f32 0.0, %v4890
        %v4892 = vpop.f32.mrb[0].mxu0
        %4893 = vmatprep.mubr.bf16.mxu0 0
        %4894 = vmatmul.mubr.bf16.gmra.mrb[0].mxu0 %v4835
        %v4895 = vpop.f32.mrb[0].mxu0
        %v4896 = vadd.f32 0.0, %v4895
        %v4897 = vpop.f32.mrb[0].mxu0
        %v4898 = vpop.f32.mrb[0].mxu0
        %v4899 = vpop.f32.mrb[0].mxu0
        %4900 = vdwg.mxu0
        %v4901 = vadd.f32 %v4794, %v4872
        %v4902 = vadd.f32 %v4795, %v4875
        %v4903 = vadd.f32 %v4796, %v4880
        %v4904 = vadd.f32 %v4797, %v4883
        %v4905 = vadd.f32 %v4798, %v4888
        %v4906 = vadd.f32 %v4799, %v4891
        %v4907 = vadd.f32 %v4800, %v4896
        %s4908 = scalar_lea.vmem %s3, 80
        %v4909 = vld [vmem:[%s4908] sm:$0xf]
        %v4910 = vld [vmem:[%s4908 + $0x4] sm:$0xf]
        %v4911 = vld [vmem:[%s4908 + $0x8] sm:$0xf]
        %v4912 = vld [vmem:[%s4908 + $0xc] sm:$0xf]
        %v4913 = vrot.slane %v4374, 2
        %v4914 = vrot.slane %v4376, 3
        %v4915 = vor.u32 %v4913, %v4914
        %v4916 = vrot.slane %v4385, 2
        %v4917 = vrot.slane %v4381, 3
        %v4918 = vor.u32 %v4916, %v4917
        %v4919 = vsel %vm1149, %v4915, %v4918
        %v4920 = vrot.slane %v4393, 2
        %v4921 = vrot.slane %v4389, 3
        %v4922 = vor.u32 %v4920, %v4921
        %v4923 = vsel %vm1149, %v4918, %v4922
        %v4924 = vrot.slane %v4401, 2
        %v4925 = vrot.slane %v4397, 3
        %v4926 = vor.u32 %v4924, %v4925
        %v4927 = vsel %vm1149, %v4922, %v4926
        %v4932 = vunpack.c.l.b16 %v4909
        %v4933 = vunpack.c.l.b16 %v4910
        %v4934 = vunpack.c.l.b16 %v4911
        %v4935 = vunpack.c.l.b16 %v4912
        %v4936 = vpack.c.b16 %v4933, %v4932
        %v4937 = vpack.c.b16 %v4935, %v4934
        %v4941 = vsel %vm1501, %v4919, 0
        %v4944 = vsel %vm1501, %v4923, 0
        %v4947 = vsel %vm1501, %v4927, 0
        %v4950 = vsel %vm1501, %v4924, 0
        %4952 = vmatprep.subr.bf16.mxu0 0
        %4953 = vmatpush1.bf16.msra.mxu0 %v4936
        %4954 = vmatprep.subr.bf16.mxu0 0
        %4955 = vmatpush1.bf16.msra.mxu0 %v4937
        %4956 = vmatprep.subr.bf16.mxu0 0
        %4957 = vmatpush1.bf16.msra.mxu0 0
        %4958 = vmatprep.subr.bf16.mxu0 0
        %4959 = vmatpush1.bf16.msra.mxu0 0
        %4960 = vmatprep.subr.bf16.mxu0 0
        %4961 = vmatpush1.bf16.msra.mxu0 0
        %4962 = vmatprep.subr.bf16.mxu0 0
        %4963 = vmatpush1.bf16.msra.mxu0 0
        %4964 = vmatprep.subr.bf16.mxu0 0
        %4965 = vmatpush1.bf16.msra.mxu0 0
        %4966 = vmatprep.subr.bf16.mxu0 0
        %4967 = vmatpush1.bf16.msra.mxu0 0
        %4968 = vmatprep.subr.bf16.mxu0 0
        %4969 = vmatpush1.bf16.msra.mxu0 0
        %4970 = vmatprep.subr.bf16.mxu0 0
        %4971 = vmatpush1.bf16.msra.mxu0 0
        %4972 = vmatprep.subr.bf16.mxu0 0
        %4973 = vmatpush1.bf16.msra.mxu0 0
        %4974 = vmatprep.subr.bf16.mxu0 0
        %4975 = vmatpush1.bf16.msra.mxu0 0
        %4976 = vmatprep.subr.bf16.mxu0 0
        %4977 = vmatpush1.bf16.msra.mxu0 0
        %4978 = vmatprep.subr.bf16.mxu0 0
        %4979 = vmatpush1.bf16.msra.mxu0 0
        %4980 = vmatprep.subr.bf16.mxu0 0
        %4981 = vmatpush1.bf16.msra.mxu0 0
        %4982 = vmatprep.subr.bf16.mxu0 0
        %4983 = vmatpush1.bf16.msra.mxu0 0
        %4984 = vmatprep.mubr.bf16.mxu0 0
        %4985 = vmatmul.mubr.bf16.gmra.mrb[0].mxu0 %v4941
        %v4986 = vpop.f32.mrb[0].mxu0
        %v4987 = vadd.f32 0.0, %v4986
        %v4988 = vpop.f32.mrb[0].mxu0
        %v4989 = vpop.f32.mrb[0].mxu0
        %v4990 = vadd.f32 0.0, %v4989
        %v4991 = vpop.f32.mrb[0].mxu0
        %4992 = vmatprep.mubr.bf16.mxu0 0
        %4993 = vmatmul.mubr.bf16.gmra.mrb[0].mxu0 %v4944
        %v4994 = vpop.f32.mrb[0].mxu0
        %v4995 = vadd.f32 0.0, %v4994
        %v4996 = vpop.f32.mrb[0].mxu0
        %v4997 = vpop.f32.mrb[0].mxu0
        %v4998 = vadd.f32 0.0, %v4997
        %v4999 = vpop.f32.mrb[0].mxu0
        %5000 = vmatprep.mubr.bf16.mxu0 0
        %5001 = vmatmul.mubr.bf16.gmra.mrb[0].mxu0 %v4947
        %v5002 = vpop.f32.mrb[0].mxu0
        %v5003 = vadd.f32 0.0, %v5002
        %v5004 = vpop.f32.mrb[0].mxu0
        %v5005 = vpop.f32.mrb[0].mxu0
        %v5006 = vadd.f32 0.0, %v5005
        %v5007 = vpop.f32.mrb[0].mxu0
        %5008 = vmatprep.mubr.bf16.mxu0 0
        %5009 = vmatmul.mubr.bf16.gmra.mrb[0].mxu0 %v4950
        %v5010 = vpop.f32.mrb[0].mxu0
        %v5011 = vadd.f32 0.0, %v5010
        %v5012 = vpop.f32.mrb[0].mxu0
        %v5013 = vpop.f32.mrb[0].mxu0
        %v5014 = vpop.f32.mrb[0].mxu0
        %5015 = vdwg.mxu0
        %v5016 = vadd.f32 %v4901, %v4987
        %v5017 = vadd.f32 %v4902, %v4990
        %v5018 = vadd.f32 %v4903, %v4995
        %v5019 = vadd.f32 %v4904, %v4998
        %v5020 = vadd.f32 %v4905, %v5003
        %v5021 = vadd.f32 %v4906, %v5006
        %v5022 = vadd.f32 %v4907, %v5011
        %s5023 = scalar_lea.vmem %s3, 96
        %v5024 = vld [vmem:[%s5023] sm:$0xf]
        %v5025 = vld [vmem:[%s5023 + $0x4] sm:$0xf]
        %v5026 = vld [vmem:[%s5023 + $0x8] sm:$0xf]
        %v5027 = vld [vmem:[%s5023 + $0xc] sm:$0xf]
        %v5028 = vrot.slane %v4360, 3
        %v5029 = vrot.slane %v4361, 3
        %v5030 = vsel %vm1324, %v5028, %v5029
        %v5031 = vrot.slane %v4362, 3
        %v5032 = vsel %vm1324, %v5029, %v5031
        %v5033 = vrot.slane %v4363, 3
        %v5034 = vsel %vm1324, %v5031, %v5033
        %v5039 = vunpack.c.l.b16 %v5024
        %v5040 = vunpack.c.l.b16 %v5025
        %v5041 = vunpack.c.l.b16 %v5026
        %v5042 = vunpack.c.l.b16 %v5027
        %v5043 = vpack.c.b16 %v5040, %v5039
        %v5044 = vpack.c.b16 %v5042, %v5041
        %v5048 = vsel %vm1501, %v5030, 0
        %v5051 = vsel %vm1501, %v5032, 0
        %v5054 = vsel %vm1501, %v5034, 0
        %v5057 = vsel %vm1501, %v5033, 0
        %5059 = vmatprep.subr.bf16.mxu0 0
        %5060 = vmatpush1.bf16.msra.mxu0 %v5043
        %5061 = vmatprep.subr.bf16.mxu0 0
        %5062 = vmatpush1.bf16.msra.mxu0 %v5044
        %5063 = vmatprep.subr.bf16.mxu0 0
        %5064 = vmatpush1.bf16.msra.mxu0 0
        %5065 = vmatprep.subr.bf16.mxu0 0
        %5066 = vmatpush1.bf16.msra.mxu0 0
        %5067 = vmatprep.subr.bf16.mxu0 0
        %5068 = vmatpush1.bf16.msra.mxu0 0
        %5069 = vmatprep.subr.bf16.mxu0 0
        %5070 = vmatpush1.bf16.msra.mxu0 0
        %5071 = vmatprep.subr.bf16.mxu0 0
        %5072 = vmatpush1.bf16.msra.mxu0 0
        %5073 = vmatprep.subr.bf16.mxu0 0
        %5074 = vmatpush1.bf16.msra.mxu0 0
        %5075 = vmatprep.subr.bf16.mxu0 0
        %5076 = vmatpush1.bf16.msra.mxu0 0
        %5077 = vmatprep.subr.bf16.mxu0 0
        %5078 = vmatpush1.bf16.msra.mxu0 0
        %5079 = vmatprep.subr.bf16.mxu0 0
        %5080 = vmatpush1.bf16.msra.mxu0 0
        %5081 = vmatprep.subr.bf16.mxu0 0
        %5082 = vmatpush1.bf16.msra.mxu0 0
        %5083 = vmatprep.subr.bf16.mxu0 0
        %5084 = vmatpush1.bf16.msra.mxu0 0
        %5085 = vmatprep.subr.bf16.mxu0 0
        %5086 = vmatpush1.bf16.msra.mxu0 0
        %5087 = vmatprep.subr.bf16.mxu0 0
        %5088 = vmatpush1.bf16.msra.mxu0 0
        %5089 = vmatprep.subr.bf16.mxu0 0
        %5090 = vmatpush1.bf16.msra.mxu0 0
        %5091 = vmatprep.mubr.bf16.mxu0 0
        %5092 = vmatmul.mubr.bf16.gmra.mrb[0].mxu0 %v5048
        %v5093 = vpop.f32.mrb[0].mxu0
        %v5094 = vadd.f32 0.0, %v5093
        %v5095 = vpop.f32.mrb[0].mxu0
        %v5096 = vpop.f32.mrb[0].mxu0
        %v5097 = vadd.f32 0.0, %v5096
        %v5098 = vpop.f32.mrb[0].mxu0
        %5099 = vmatprep.mubr.bf16.mxu0 0
        %5100 = vmatmul.mubr.bf16.gmra.mrb[0].mxu0 %v5051
        %v5101 = vpop.f32.mrb[0].mxu0
        %v5102 = vadd.f32 0.0, %v5101
        %v5103 = vpop.f32.mrb[0].mxu0
        %v5104 = vpop.f32.mrb[0].mxu0
        %v5105 = vadd.f32 0.0, %v5104
        %v5106 = vpop.f32.mrb[0].mxu0
        %5107 = vmatprep.mubr.bf16.mxu0 0
        %5108 = vmatmul.mubr.bf16.gmra.mrb[0].mxu0 %v5054
        %v5109 = vpop.f32.mrb[0].mxu0
        %v5110 = vadd.f32 0.0, %v5109
        %v5111 = vpop.f32.mrb[0].mxu0
        %v5112 = vpop.f32.mrb[0].mxu0
        %v5113 = vadd.f32 0.0, %v5112
        %v5114 = vpop.f32.mrb[0].mxu0
        %5115 = vmatprep.mubr.bf16.mxu0 0
        %5116 = vmatmul.mubr.bf16.gmra.mrb[0].mxu0 %v5057
        %v5117 = vpop.f32.mrb[0].mxu0
        %v5118 = vadd.f32 0.0, %v5117
        %v5119 = vpop.f32.mrb[0].mxu0
        %v5120 = vpop.f32.mrb[0].mxu0
        %v5121 = vpop.f32.mrb[0].mxu0
        %5122 = vdwg.mxu0
        %v5123 = vadd.f32 %v5016, %v5094
        %v5124 = vadd.f32 %v5017, %v5097
        %v5125 = vadd.f32 %v5018, %v5102
        %v5126 = vadd.f32 %v5019, %v5105
        %v5127 = vadd.f32 %v5020, %v5110
        %v5128 = vadd.f32 %v5021, %v5113
        %v5129 = vadd.f32 %v5022, %v5118
        %v5131 = vlaneseq
        %v5132 = vshrl.u32 %v5131, 7
        %v5133 = vsub.s32 0, %v5132
        %v5134 = vrot.slane %v4359, %v5133
        %v5136 = vadd.f32 %v5123, %v5134
        %v5137 = vadd.f32 %v5124, %v5134
        %v5138 = vadd.f32 %v5125, %v5134
        %v5139 = vadd.f32 %v5126, %v5134
        %v5140 = vadd.f32 %v5127, %v5134
        %v5141 = vadd.f32 %v5128, %v5134
        %v5142 = vadd.f32 %v5129, %v5134
        %v5143 = vmax.f32 %v5136, 0.0
        %v5144 = vmax.f32 %v5137, 0.0
        %v5145 = vmax.f32 %v5138, 0.0
        %v5146 = vmax.f32 %v5139, 0.0
        %v5147 = vmax.f32 %v5140, 0.0
        %v5148 = vmax.f32 %v5141, 0.0
        %v5149 = vmax.f32 %v5142, 0.0
        %5150 = vst.msk [vmem:[#allocation2] sm:$0xff] %vm1501, %v5143
        %5151 = vst.msk [vmem:[#allocation2 + $0x8] sm:$0xff] %vm1501, %v5144
        %5152 = vst.msk [vmem:[#allocation2 + $0x10] sm:$0xff] %vm1501, %v5145
        %5153 = vst.msk [vmem:[#allocation2 + $0x18] sm:$0xff] %vm1501, %v5146
        %5154 = vst.msk [vmem:[#allocation2 + $0x20] sm:$0xff] %vm1501, %v5147
        %5155 = vst.msk [vmem:[#allocation2 + $0x28] sm:$0xff] %vm1501, %v5148
        %vm5156 = vcmask 253952
        %5157 = vst.msk [vmem:[#allocation2 + $0x30] sm:$0x1] %vm5156, %v5149
        %v5158 = vld [vmem:[#allocation2] ss:$7 sm:$0x7f]
        %v5159 = vld [vmem:[%s1519] ss:$7 sm:$0x7f]
        %v5160 = vmax.f32 %v5158, %v5159
        %v5161 = vld [vmem:[%s1525] ss:$7 sm:$0x7f]
        %v5162 = vmax.f32 %v5160, %v5161
        %v5163 = vld [vmem:[%s1531] ss:$7 sm:$0x7f]
        %v5164 = vmax.f32 %v5162, %v5163
        %v5165 = vld [vmem:[%s1537] ss:$7 sm:$0x7f]
        %v5166 = vmax.f32 %v5164, %v5165
        %v5167 = vld [vmem:[%s1543] ss:$7 sm:$0x7f]
        %v5168 = vmax.f32 %v5166, %v5167
        %v5169 = vld [vmem:[%s1549] ss:$7 sm:$0x7f]
        %v5170 = vmax.f32 %v5168, %v5169
        %v5172 = vrot.slane %v5170, 5
        %v5174 = vsel %vm4335, 0.0, %v5172
        %v5175 = vsel %vm471, %v5172, 0.0
        %v5176 = vld [vmem:[%s6] sm:$0x1]
        %v5177 = vpack.c.bf16 %v5174, %v5174
        %v5178 = vld [vmem:[%s5] sm:$0xf]
        %v5179 = vld [vmem:[%s5 + $0x4] sm:$0xf]
        %v5180 = vld [vmem:[%s5 + $0x8] sm:$0xf]
        %v5181 = vld [vmem:[%s5 + $0xc] sm:$0xf]
        %s5182 = scalar_lea.vmem %s5, 16
        %v5183 = vld [vmem:[%s5182] sm:$0xf]
        %v5184 = vld [vmem:[%s5182 + $0x4] sm:$0xf]
        %v5185 = vld [vmem:[%s5182 + $0x8] sm:$0xf]
        %v5186 = vld [vmem:[%s5182 + $0xc] sm:$0xf]
        %v5188 = vshrl.u32 %v5177, 16
        %v5190 = vshll.u32 %v5177, 16
        %v5192 = vrot.slane %v5190, 1
        %v5193 = vor.u32 %v5188, %v5192
        %v5198 = vunpack.c.l.b16 %v5183
        %v5199 = vunpack.c.l.b16 %v5184
        %v5200 = vunpack.c.l.b16 %v5185
        %v5201 = vunpack.c.l.b16 %v5186
        %v5202 = vpack.c.b16 %v5199, %v5198
        %v5203 = vpack.c.b16 %v5201, %v5200
        %v5207 = vsel %vm1501, %v5193, 0
        %5209 = vmatprep.subr.bf16.mxu0 0
        %5210 = vmatpush1.bf16.msra.mxu0 %v5202
        %5211 = vmatprep.subr.bf16.mxu0 0
        %5212 = vmatpush1.bf16.msra.mxu0 %v5203
        %5213 = vmatprep.subr.bf16.mxu0 0
        %5214 = vmatpush1.bf16.msra.mxu0 0
        %5215 = vmatprep.subr.bf16.mxu0 0
        %5216 = vmatpush1.bf16.msra.mxu0 0
        %5217 = vmatprep.subr.bf16.mxu0 0
        %5218 = vmatpush1.bf16.msra.mxu0 0
        %5219 = vmatprep.subr.bf16.mxu0 0
        %5220 = vmatpush1.bf16.msra.mxu0 0
        %5221 = vmatprep.subr.bf16.mxu0 0
        %5222 = vmatpush1.bf16.msra.mxu0 0
        %5223 = vmatprep.subr.bf16.mxu0 0
        %5224 = vmatpush1.bf16.msra.mxu0 0
        %5225 = vmatprep.subr.bf16.mxu0 0
        %5226 = vmatpush1.bf16.msra.mxu0 0
        %5227 = vmatprep.subr.bf16.mxu0 0
        %5228 = vmatpush1.bf16.msra.mxu0 0
        %5229 = vmatprep.subr.bf16.mxu0 0
        %5230 = vmatpush1.bf16.msra.mxu0 0
        %5231 = vmatprep.subr.bf16.mxu0 0
        %5232 = vmatpush1.bf16.msra.mxu0 0
        %5233 = vmatprep.subr.bf16.mxu0 0
        %5234 = vmatpush1.bf16.msra.mxu0 0
        %5235 = vmatprep.subr.bf16.mxu0 0
        %5236 = vmatpush1.bf16.msra.mxu0 0
        %5237 = vmatprep.subr.bf16.mxu0 0
        %5238 = vmatpush1.bf16.msra.mxu0 0
        %5239 = vmatprep.subr.bf16.mxu0 0
        %5240 = vmatpush1.bf16.msra.mxu0 0
        %5241 = vmatprep.mubr.bf16.mxu0 0
        %5242 = vmatmul.mubr.bf16.gmra.mrb[0].mxu0 %v5207
        %v5243 = vpop.f32.mrb[0].mxu0
        %v5244 = vadd.f32 0.0, %v5243
        %v5245 = vpop.f32.mrb[0].mxu0
        %v5246 = vpop.f32.mrb[0].mxu0
        %v5247 = vpop.f32.mrb[0].mxu0
        %5248 = vdwg.mxu0
        %v5253 = vunpack.c.l.b16 %v5178
        %v5254 = vunpack.c.l.b16 %v5179
        %v5255 = vunpack.c.l.b16 %v5180
        %v5256 = vunpack.c.l.b16 %v5181
        %v5257 = vpack.c.b16 %v5254, %v5253
        %v5258 = vpack.c.b16 %v5256, %v5255
        %v5261 = vsel %vm1501, %v5177, 0
        %5263 = vmatprep.subr.bf16.mxu0 0
        %5264 = vmatpush1.bf16.msra.mxu0 %v5257
        %5265 = vmatprep.subr.bf16.mxu0 0
        %5266 = vmatpush1.bf16.msra.mxu0 %v5258
        %5267 = vmatprep.subr.bf16.mxu0 0
        %5268 = vmatpush1.bf16.msra.mxu0 0
        %5269 = vmatprep.subr.bf16.mxu0 0
        %5270 = vmatpush1.bf16.msra.mxu0 0
        %5271 = vmatprep.subr.bf16.mxu0 0
        %5272 = vmatpush1.bf16.msra.mxu0 0
        %5273 = vmatprep.subr.bf16.mxu0 0
        %5274 = vmatpush1.bf16.msra.mxu0 0
        %5275 = vmatprep.subr.bf16.mxu0 0
        %5276 = vmatpush1.bf16.msra.mxu0 0
        %5277 = vmatprep.subr.bf16.mxu0 0
        %5278 = vmatpush1.bf16.msra.mxu0 0
        %5279 = vmatprep.subr.bf16.mxu0 0
        %5280 = vmatpush1.bf16.msra.mxu0 0
        %5281 = vmatprep.subr.bf16.mxu0 0
        %5282 = vmatpush1.bf16.msra.mxu0 0
        %5283 = vmatprep.subr.bf16.mxu0 0
        %5284 = vmatpush1.bf16.msra.mxu0 0
        %5285 = vmatprep.subr.bf16.mxu0 0
        %5286 = vmatpush1.bf16.msra.mxu0 0
        %5287 = vmatprep.subr.bf16.mxu0 0
        %5288 = vmatpush1.bf16.msra.mxu0 0
        %5289 = vmatprep.subr.bf16.mxu0 0
        %5290 = vmatpush1.bf16.msra.mxu0 0
        %5291 = vmatprep.subr.bf16.mxu0 0
        %5292 = vmatpush1.bf16.msra.mxu0 0
        %5293 = vmatprep.subr.bf16.mxu0 0
        %5294 = vmatpush1.bf16.msra.mxu0 0
        %5295 = vmatprep.mubr.bf16.mxu0 0
        %5296 = vmatmul.mubr.bf16.gmra.mrb[0].mxu0 %v5261
        %v5297 = vpop.f32.mrb[0].mxu0
        %v5298 = vadd.f32 %v5244, %v5297
        %v5299 = vpop.f32.mrb[0].mxu0
        %v5300 = vpop.f32.mrb[0].mxu0
        %v5301 = vpop.f32.mrb[0].mxu0
        %5302 = vdwg.mxu0
        %v5303 = vpack.c.bf16 %v5175, %v5174
        %s5304 = scalar_lea.vmem %s5, 32
        %v5305 = vld [vmem:[%s5304] sm:$0xf]
        %v5306 = vld [vmem:[%s5304 + $0x4] sm:$0xf]
        %v5307 = vld [vmem:[%s5304 + $0x8] sm:$0xf]
        %v5308 = vld [vmem:[%s5304 + $0xc] sm:$0xf]
        %v5310 = vrot.slane %v5303, 1
        %v5315 = vunpack.c.l.b16 %v5305
        %v5316 = vunpack.c.l.b16 %v5306
        %v5317 = vunpack.c.l.b16 %v5307
        %v5318 = vunpack.c.l.b16 %v5308
        %v5319 = vpack.c.b16 %v5316, %v5315
        %v5320 = vpack.c.b16 %v5318, %v5317
        %v5324 = vsel %vm1501, %v5310, 0
        %5326 = vmatprep.subr.bf16.mxu0 0
        %5327 = vmatpush1.bf16.msra.mxu0 %v5319
        %5328 = vmatprep.subr.bf16.mxu0 0
        %5329 = vmatpush1.bf16.msra.mxu0 %v5320
        %5330 = vmatprep.subr.bf16.mxu0 0
        %5331 = vmatpush1.bf16.msra.mxu0 0
        %5332 = vmatprep.subr.bf16.mxu0 0
        %5333 = vmatpush1.bf16.msra.mxu0 0
        %5334 = vmatprep.subr.bf16.mxu0 0
        %5335 = vmatpush1.bf16.msra.mxu0 0
        %5336 = vmatprep.subr.bf16.mxu0 0
        %5337 = vmatpush1.bf16.msra.mxu0 0
        %5338 = vmatprep.subr.bf16.mxu0 0
        %5339 = vmatpush1.bf16.msra.mxu0 0
        %5340 = vmatprep.subr.bf16.mxu0 0
        %5341 = vmatpush1.bf16.msra.mxu0 0
        %5342 = vmatprep.subr.bf16.mxu0 0
        %5343 = vmatpush1.bf16.msra.mxu0 0
        %5344 = vmatprep.subr.bf16.mxu0 0
        %5345 = vmatpush1.bf16.msra.mxu0 0
        %5346 = vmatprep.subr.bf16.mxu0 0
        %5347 = vmatpush1.bf16.msra.mxu0 0
        %5348 = vmatprep.subr.bf16.mxu0 0
        %5349 = vmatpush1.bf16.msra.mxu0 0
        %5350 = vmatprep.subr.bf16.mxu0 0
        %5351 = vmatpush1.bf16.msra.mxu0 0
        %5352 = vmatprep.subr.bf16.mxu0 0
        %5353 = vmatpush1.bf16.msra.mxu0 0
        %5354 = vmatprep.subr.bf16.mxu0 0
        %5355 = vmatpush1.bf16.msra.mxu0 0
        %5356 = vmatprep.subr.bf16.mxu0 0
        %5357 = vmatpush1.bf16.msra.mxu0 0
        %5358 = vmatprep.mubr.bf16.mxu0 0
        %5359 = vmatmul.mubr.bf16.gmra.mrb[0].mxu0 %v5324
        %v5360 = vpop.f32.mrb[0].mxu0
        %v5361 = vadd.f32 0.0, %v5360
        %v5362 = vpop.f32.mrb[0].mxu0
        %v5363 = vpop.f32.mrb[0].mxu0
        %v5364 = vpop.f32.mrb[0].mxu0
        %5365 = vdwg.mxu0
        %v5366 = vadd.f32 %v5298, %v5361
        %s5367 = scalar_lea.vmem %s5, 48
        %v5368 = vld [vmem:[%s5367] sm:$0xf]
        %v5369 = vld [vmem:[%s5367 + $0x4] sm:$0xf]
        %v5370 = vld [vmem:[%s5367 + $0x8] sm:$0xf]
        %v5371 = vld [vmem:[%s5367 + $0xc] sm:$0xf]
        %v5373 = vshrl.u32 %v5303, 16
        %v5375 = vrot.slane %v5373, 1
        %v5376 = vshll.u32 %v5303, 16
        %v5378 = vrot.slane %v5376, 2
        %v5379 = vor.u32 %v5375, %v5378
        %v5384 = vunpack.c.l.b16 %v5368
        %v5385 = vunpack.c.l.b16 %v5369
        %v5386 = vunpack.c.l.b16 %v5370
        %v5387 = vunpack.c.l.b16 %v5371
        %v5388 = vpack.c.b16 %v5385, %v5384
        %v5389 = vpack.c.b16 %v5387, %v5386
        %v5393 = vsel %vm1501, %v5379, 0
        %5395 = vmatprep.subr.bf16.mxu0 0
        %5396 = vmatpush1.bf16.msra.mxu0 %v5388
        %5397 = vmatprep.subr.bf16.mxu0 0
        %5398 = vmatpush1.bf16.msra.mxu0 %v5389
        %5399 = vmatprep.subr.bf16.mxu0 0
        %5400 = vmatpush1.bf16.msra.mxu0 0
        %5401 = vmatprep.subr.bf16.mxu0 0
        %5402 = vmatpush1.bf16.msra.mxu0 0
        %5403 = vmatprep.subr.bf16.mxu0 0
        %5404 = vmatpush1.bf16.msra.mxu0 0
        %5405 = vmatprep.subr.bf16.mxu0 0
        %5406 = vmatpush1.bf16.msra.mxu0 0
        %5407 = vmatprep.subr.bf16.mxu0 0
        %5408 = vmatpush1.bf16.msra.mxu0 0
        %5409 = vmatprep.subr.bf16.mxu0 0
        %5410 = vmatpush1.bf16.msra.mxu0 0
        %5411 = vmatprep.subr.bf16.mxu0 0
        %5412 = vmatpush1.bf16.msra.mxu0 0
        %5413 = vmatprep.subr.bf16.mxu0 0
        %5414 = vmatpush1.bf16.msra.mxu0 0
        %5415 = vmatprep.subr.bf16.mxu0 0
        %5416 = vmatpush1.bf16.msra.mxu0 0
        %5417 = vmatprep.subr.bf16.mxu0 0
        %5418 = vmatpush1.bf16.msra.mxu0 0
        %5419 = vmatprep.subr.bf16.mxu0 0
        %5420 = vmatpush1.bf16.msra.mxu0 0
        %5421 = vmatprep.subr.bf16.mxu0 0
        %5422 = vmatpush1.bf16.msra.mxu0 0
        %5423 = vmatprep.subr.bf16.mxu0 0
        %5424 = vmatpush1.bf16.msra.mxu0 0
        %5425 = vmatprep.subr.bf16.mxu0 0
        %5426 = vmatpush1.bf16.msra.mxu0 0
        %5427 = vmatprep.mubr.bf16.mxu0 0
        %5428 = vmatmul.mubr.bf16.gmra.mrb[0].mxu0 %v5393
        %v5429 = vpop.f32.mrb[0].mxu0
        %v5430 = vadd.f32 0.0, %v5429
        %v5431 = vpop.f32.mrb[0].mxu0
        %v5432 = vpop.f32.mrb[0].mxu0
        %v5433 = vpop.f32.mrb[0].mxu0
        %5434 = vdwg.mxu0
        %v5435 = vadd.f32 %v5366, %v5430
        %s5436 = scalar_lea.vmem %s5, 64
        %v5437 = vld [vmem:[%s5436] sm:$0xf]
        %v5438 = vld [vmem:[%s5436 + $0x4] sm:$0xf]
        %v5439 = vld [vmem:[%s5436 + $0x8] sm:$0xf]
        %v5440 = vld [vmem:[%s5436 + $0xc] sm:$0xf]
        %v5441 = vrot.slane %v5303, 2
        %v5446 = vunpack.c.l.b16 %v5437
        %v5447 = vunpack.c.l.b16 %v5438
        %v5448 = vunpack.c.l.b16 %v5439
        %v5449 = vunpack.c.l.b16 %v5440
        %v5450 = vpack.c.b16 %v5447, %v5446
        %v5451 = vpack.c.b16 %v5449, %v5448
        %v5455 = vsel %vm1501, %v5441, 0
        %5457 = vmatprep.subr.bf16.mxu0 0
        %5458 = vmatpush1.bf16.msra.mxu0 %v5450
        %5459 = vmatprep.subr.bf16.mxu0 0
        %5460 = vmatpush1.bf16.msra.mxu0 %v5451
        %5461 = vmatprep.subr.bf16.mxu0 0
        %5462 = vmatpush1.bf16.msra.mxu0 0
        %5463 = vmatprep.subr.bf16.mxu0 0
        %5464 = vmatpush1.bf16.msra.mxu0 0
        %5465 = vmatprep.subr.bf16.mxu0 0
        %5466 = vmatpush1.bf16.msra.mxu0 0
        %5467 = vmatprep.subr.bf16.mxu0 0
        %5468 = vmatpush1.bf16.msra.mxu0 0
        %5469 = vmatprep.subr.bf16.mxu0 0
        %5470 = vmatpush1.bf16.msra.mxu0 0
        %5471 = vmatprep.subr.bf16.mxu0 0
        %5472 = vmatpush1.bf16.msra.mxu0 0
        %5473 = vmatprep.subr.bf16.mxu0 0
        %5474 = vmatpush1.bf16.msra.mxu0 0
        %5475 = vmatprep.subr.bf16.mxu0 0
        %5476 = vmatpush1.bf16.msra.mxu0 0
        %5477 = vmatprep.subr.bf16.mxu0 0
        %5478 = vmatpush1.bf16.msra.mxu0 0
        %5479 = vmatprep.subr.bf16.mxu0 0
        %5480 = vmatpush1.bf16.msra.mxu0 0
        %5481 = vmatprep.subr.bf16.mxu0 0
        %5482 = vmatpush1.bf16.msra.mxu0 0
        %5483 = vmatprep.subr.bf16.mxu0 0
        %5484 = vmatpush1.bf16.msra.mxu0 0
        %5485 = vmatprep.subr.bf16.mxu0 0
        %5486 = vmatpush1.bf16.msra.mxu0 0
        %5487 = vmatprep.subr.bf16.mxu0 0
        %5488 = vmatpush1.bf16.msra.mxu0 0
        %5489 = vmatprep.mubr.bf16.mxu0 0
        %5490 = vmatmul.mubr.bf16.gmra.mrb[0].mxu0 %v5455
        %v5491 = vpop.f32.mrb[0].mxu0
        %v5492 = vadd.f32 0.0, %v5491
        %v5493 = vpop.f32.mrb[0].mxu0
        %v5494 = vpop.f32.mrb[0].mxu0
        %v5495 = vpop.f32.mrb[0].mxu0
        %5496 = vdwg.mxu0
        %v5497 = vadd.f32 %v5435, %v5492
        %s5498 = scalar_lea.vmem %s5, 80
        %v5499 = vld [vmem:[%s5498] sm:$0xf]
        %v5500 = vld [vmem:[%s5498 + $0x4] sm:$0xf]
        %v5501 = vld [vmem:[%s5498 + $0x8] sm:$0xf]
        %v5502 = vld [vmem:[%s5498 + $0xc] sm:$0xf]
        %v5503 = vrot.slane %v5373, 2
        %v5504 = vrot.slane %v5376, 3
        %v5505 = vor.u32 %v5503, %v5504
        %v5510 = vunpack.c.l.b16 %v5499
        %v5511 = vunpack.c.l.b16 %v5500
        %v5512 = vunpack.c.l.b16 %v5501
        %v5513 = vunpack.c.l.b16 %v5502
        %v5514 = vpack.c.b16 %v5511, %v5510
        %v5515 = vpack.c.b16 %v5513, %v5512
        %v5519 = vsel %vm1501, %v5505, 0
        %5521 = vmatprep.subr.bf16.mxu0 0
        %5522 = vmatpush1.bf16.msra.mxu0 %v5514
        %5523 = vmatprep.subr.bf16.mxu0 0
        %5524 = vmatpush1.bf16.msra.mxu0 %v5515
        %5525 = vmatprep.subr.bf16.mxu0 0
        %5526 = vmatpush1.bf16.msra.mxu0 0
        %5527 = vmatprep.subr.bf16.mxu0 0
        %5528 = vmatpush1.bf16.msra.mxu0 0
        %5529 = vmatprep.subr.bf16.mxu0 0
        %5530 = vmatpush1.bf16.msra.mxu0 0
        %5531 = vmatprep.subr.bf16.mxu0 0
        %5532 = vmatpush1.bf16.msra.mxu0 0
        %5533 = vmatprep.subr.bf16.mxu0 0
        %5534 = vmatpush1.bf16.msra.mxu0 0
        %5535 = vmatprep.subr.bf16.mxu0 0
        %5536 = vmatpush1.bf16.msra.mxu0 0
        %5537 = vmatprep.subr.bf16.mxu0 0
        %5538 = vmatpush1.bf16.msra.mxu0 0
        %5539 = vmatprep.subr.bf16.mxu0 0
        %5540 = vmatpush1.bf16.msra.mxu0 0
        %5541 = vmatprep.subr.bf16.mxu0 0
        %5542 = vmatpush1.bf16.msra.mxu0 0
        %5543 = vmatprep.subr.bf16.mxu0 0
        %5544 = vmatpush1.bf16.msra.mxu0 0
        %5545 = vmatprep.subr.bf16.mxu0 0
        %5546 = vmatpush1.bf16.msra.mxu0 0
        %5547 = vmatprep.subr.bf16.mxu0 0
        %5548 = vmatpush1.bf16.msra.mxu0 0
        %5549 = vmatprep.subr.bf16.mxu0 0
        %5550 = vmatpush1.bf16.msra.mxu0 0
        %5551 = vmatprep.subr.bf16.mxu0 0
        %5552 = vmatpush1.bf16.msra.mxu0 0
        %5553 = vmatprep.mubr.bf16.mxu0 0
        %5554 = vmatmul.mubr.bf16.gmra.mrb[0].mxu0 %v5519
        %v5555 = vpop.f32.mrb[0].mxu0
        %v5556 = vadd.f32 0.0, %v5555
        %v5557 = vpop.f32.mrb[0].mxu0
        %v5558 = vpop.f32.mrb[0].mxu0
        %v5559 = vpop.f32.mrb[0].mxu0
        %5560 = vdwg.mxu0
        %v5561 = vadd.f32 %v5497, %v5556
        %s5562 = scalar_lea.vmem %s5, 96
        %v5563 = vld [vmem:[%s5562] sm:$0xf]
        %v5564 = vld [vmem:[%s5562 + $0x4] sm:$0xf]
        %v5565 = vld [vmem:[%s5562 + $0x8] sm:$0xf]
        %v5566 = vld [vmem:[%s5562 + $0xc] sm:$0xf]
        %v5567 = vrot.slane %v5303, 3
        %v5572 = vunpack.c.l.b16 %v5563
        %v5573 = vunpack.c.l.b16 %v5564
        %v5574 = vunpack.c.l.b16 %v5565
        %v5575 = vunpack.c.l.b16 %v5566
        %v5576 = vpack.c.b16 %v5573, %v5572
        %v5577 = vpack.c.b16 %v5575, %v5574
        %v5581 = vsel %vm1501, %v5567, 0
        %5583 = vmatprep.subr.bf16.mxu0 0
        %5584 = vmatpush1.bf16.msra.mxu0 %v5576
        %5585 = vmatprep.subr.bf16.mxu0 0
        %5586 = vmatpush1.bf16.msra.mxu0 %v5577
        %5587 = vmatprep.subr.bf16.mxu0 0
        %5588 = vmatpush1.bf16.msra.mxu0 0
        %5589 = vmatprep.subr.bf16.mxu0 0
        %5590 = vmatpush1.bf16.msra.mxu0 0
        %5591 = vmatprep.subr.bf16.mxu0 0
        %5592 = vmatpush1.bf16.msra.mxu0 0
        %5593 = vmatprep.subr.bf16.mxu0 0
        %5594 = vmatpush1.bf16.msra.mxu0 0
        %5595 = vmatprep.subr.bf16.mxu0 0
        %5596 = vmatpush1.bf16.msra.mxu0 0
        %5597 = vmatprep.subr.bf16.mxu0 0
        %5598 = vmatpush1.bf16.msra.mxu0 0
        %5599 = vmatprep.subr.bf16.mxu0 0
        %5600 = vmatpush1.bf16.msra.mxu0 0
        %5601 = vmatprep.subr.bf16.mxu0 0
        %5602 = vmatpush1.bf16.msra.mxu0 0
        %5603 = vmatprep.subr.bf16.mxu0 0
        %5604 = vmatpush1.bf16.msra.mxu0 0
        %5605 = vmatprep.subr.bf16.mxu0 0
        %5606 = vmatpush1.bf16.msra.mxu0 0
        %5607 = vmatprep.subr.bf16.mxu0 0
        %5608 = vmatpush1.bf16.msra.mxu0 0
        %5609 = vmatprep.subr.bf16.mxu0 0
        %5610 = vmatpush1.bf16.msra.mxu0 0
        %5611 = vmatprep.subr.bf16.mxu0 0
        %5612 = vmatpush1.bf16.msra.mxu0 0
        %5613 = vmatprep.subr.bf16.mxu0 0
        %5614 = vmatpush1.bf16.msra.mxu0 0
        %5615 = vmatprep.mubr.bf16.mxu0 0
        %5616 = vmatmul.mubr.bf16.gmra.mrb[0].mxu0 %v5581
        %v5617 = vpop.f32.mrb[0].mxu0
        %v5618 = vadd.f32 0.0, %v5617
        %v5619 = vpop.f32.mrb[0].mxu0
        %v5620 = vpop.f32.mrb[0].mxu0
        %v5621 = vpop.f32.mrb[0].mxu0
        %5622 = vdwg.mxu0
        %v5623 = vadd.f32 %v5561, %v5618
        %v5625 = vlaneseq
        %v5626 = vshrl.u32 %v5625, 7
        %v5627 = vsub.s32 0, %v5626
        %v5628 = vrot.slane %v5176, %v5627
        %v5630 = vadd.f32 %v5623, %v5628
        %v5631 = vmax.f32 %v5630, 0.0
        %v5632 = vsel %vm4320, %v5631, -inf
        %v5633 = vrot.slane %v5632, 4
        %v5634 = vmax.f32 %v5632, %v5633
        %v5635 = vrot.slane %v5634, 2
        %v5636 = vmax.f32 %v5634, %v5635
        %v5637 = vrot.slane %v5636, 1
        %v5638 = vmax.f32 %v5636, %v5637
        %v5639 = vadd.f32 %v5638, 0.0
        %v5640 = vld [vmem:[%s7] sm:$0xff]
        %v5641 = vld [vmem:[%s7 + $0x8] sm:$0xff]
        %v5642 = vld [vmem:[%s7 + $0x10] sm:$0xff]
        %v5643 = vld [vmem:[%s7 + $0x18] sm:$0xff]
        %v5644 = vld [vmem:[%s8] sm:$0x1]
        %v5646 = vsel %vm1501, %v5639, 0
        %5648 = vmatprep.subr.mxu0 0.0
        %5649 = vmatpush1.msra.mxu0 %v5640
        %5650 = vmatprep.subr.mxu0 0.0
        %5651 = vmatpush1.msra.mxu0 %v5641
        %5652 = vmatprep.subr.mxu0 0.0
        %5653 = vmatpush1.msra.mxu0 %v5642
        %5654 = vmatprep.subr.mxu0 0.0
        %5655 = vmatpush1.msra.mxu0 %v5643
        %5656 = vmatprep.subr.mxu0 0.0
        %5657 = vmatpush1.msra.mxu0 0.0
        %5658 = vmatprep.subr.mxu0 0.0
        %5659 = vmatpush1.msra.mxu0 0.0
        %5660 = vmatprep.subr.mxu0 0.0
        %5661 = vmatpush1.msra.mxu0 0.0
        %5662 = vmatprep.subr.mxu0 0.0
        %5663 = vmatpush1.msra.mxu0 0.0
        %5664 = vmatprep.subr.mxu0 0.0
        %5665 = vmatpush1.msra.mxu0 0.0
        %5666 = vmatprep.subr.mxu0 0.0
        %5667 = vmatpush1.msra.mxu0 0.0
        %5668 = vmatprep.subr.mxu0 0.0
        %5669 = vmatpush1.msra.mxu0 0.0
        %5670 = vmatprep.subr.mxu0 0.0
        %5671 = vmatpush1.msra.mxu0 0.0
        %5672 = vmatprep.subr.mxu0 0.0
        %5673 = vmatpush1.msra.mxu0 0.0
        %5674 = vmatprep.subr.mxu0 0.0
        %5675 = vmatpush1.msra.mxu0 0.0
        %5676 = vmatprep.subr.mxu0 0.0
        %5677 = vmatpush1.msra.mxu0 0.0
        %5678 = vmatprep.subr.mxu0 0.0
        %5679 = vmatpush1.msra.mxu0 0.0
        %5680 = vmatprep.subr.mxu0 0.0
        %5681 = vmatpush1.msra.mxu0 0.0
        %5682 = vmatprep.subr.mxu0 0.0
        %5683 = vmatpush1.msra.mxu0 0.0
        %5684 = vmatprep.subr.mxu0 0.0
        %5685 = vmatpush1.msra.mxu0 0.0
        %5686 = vmatprep.subr.mxu0 0.0
        %5687 = vmatpush1.msra.mxu0 0.0
        %5688 = vmatprep.subr.mxu0 0.0
        %5689 = vmatpush1.msra.mxu0 0.0
        %5690 = vmatprep.subr.mxu0 0.0
        %5691 = vmatpush1.msra.mxu0 0.0
        %5692 = vmatprep.subr.mxu0 0.0
        %5693 = vmatpush1.msra.mxu0 0.0
        %5694 = vmatprep.subr.mxu0 0.0
        %5695 = vmatpush1.msra.mxu0 0.0
        %5696 = vmatprep.subr.mxu0 0.0
        %5697 = vmatpush1.msra.mxu0 0.0
        %5698 = vmatprep.subr.mxu0 0.0
        %5699 = vmatpush1.msra.mxu0 0.0
        %5700 = vmatprep.subr.mxu0 0.0
        %5701 = vmatpush1.msra.mxu0 0.0
        %5702 = vmatprep.subr.mxu0 0.0
        %5703 = vmatpush1.msra.mxu0 0.0
        %5704 = vmatprep.subr.mxu0 0.0
        %5705 = vmatpush1.msra.mxu0 0.0
        %5706 = vmatprep.subr.mxu0 0.0
        %5707 = vmatpush1.msra.mxu0 0.0
        %5708 = vmatprep.subr.mxu0 0.0
        %5709 = vmatpush1.msra.mxu0 0.0
        %5710 = vmatprep.subr.mxu0 0.0
        %5711 = vmatpush1.msra.mxu0 0.0
        %5712 = vmatprep.mubr.f32.mxu0 0.0
        %5713 = vmatmul.mubr.f32.gmra.mrb[0].mxu0 %v5646
        %v5714 = vpop.f32.mrb[0].mxu0
        %v5715 = vadd.f32 %v5644, %v5714
        %v5716 = vpop.f32.mrb[0].mxu0
        %5717 = vdwg.mxu0
        %5718 = vst [vmem:[%s324] sm:$0x1] %v5715
        %s5719 = sand.u32 %s225, 1
        %s5720 = scalar_lea.sflag [#allocation4], %s5719
        %s5721 = sand.u32 %s225, 1
        %s5722 = scalar_lea.vmem [#allocation3], %s5721
        // Predicated region
        $region57: #{tpu_custom_call.1} parent=55 // pred_check
          %p5723 = pneg %p235
        $region58: #{tpu_custom_call.1} parent=55 // pred_check_branch
          %5725 = sbr.rel (%p5723) target = $region60
        $region59: #{tpu_custom_call.1} parent=55 // pred_region
          %s5727 = ssub.s32 16, 16
          %5728 = vsyncadd %s5720, %s5727
          %s5729 = smul.addr %s23, 16
          %s5730 = scalar_lea.hbm %s9, %s5729
          %s5732 = sshll.u32 %s5722, 4
          %s5733 = int_to_ptr.vmem [resolvable:$true] %s5732
          %5735 = dma.vmem_to_hbm [thread:$0]  %s5733, 16, %s5730, %s5720
        $region60: #{tpu_custom_call.1} parent=55 // pred_fallthru
          _
      $region56: #{tpu_custom_call.1} parent=5 // pred_fallthru
        _
      %p5736 = scmp.le.s32.totalorder 2, %s18
      // Predicated region
      $region61: #{tpu_custom_call.1} parent=5 // pred_check
        %p5737 = pneg %p5736
      $region62: #{tpu_custom_call.1} parent=5 // pred_check_branch
        %5739 = sbr.rel (%p5737) target = $region64
      $region63: #{tpu_custom_call.1} parent=5 // pred_region
        %s5740 = ssub.s32 %s18, 2
        // Predicated region
        $region65: #{tpu_custom_call.1} parent=63 // pred_check
          %p5741 = pneg %p241
        $region66: #{tpu_custom_call.1} parent=63 // pred_check_branch
          %5743 = sbr.rel (%p5741) target = $region68
        $region67: #{tpu_custom_call.1} parent=63 // pred_region
          %s5744 = sand.u32 %s226, 1
          %s5745 = scalar_lea.sflag [#allocation4], %s5744
          %s5746 = sand.u32 %s226, 1
          %s5747 = scalar_lea.vmem [#allocation3], %s5746
          %5748 = dma.done %s5745, 16
        $region68: #{tpu_custom_call.1} parent=63 // pred_fallthru
          _
      $region64: #{tpu_custom_call.1} parent=5 // pred_fallthru
        _
    $region6: #{tpu_custom_call.1} parent=1 // loop_footer
      %s22 = sadd.s32 1, %s18
    $region7: #{tpu_custom_call.1} parent=1 // loop_footer_branch
      %17 = sbr.rel target = $region3
    $region8: #{tpu_custom_call.1} parent=1 // loop_exit
      _
    %5749 = vsyncpa [#allocation4], 1
    %s5750 = scalar_lea.sflag [#allocation4], 1
    %5751 = vsyncpa %s5750, 1

</llo_original>
